<compile_context>
chip_gen: v6e
topology: v6e:2x2x1
jax: 0.10.0
libtpu: 0.0.40
codegen_flags: <defaults>
</compile_context>

<pallas_src>
import jax
import jax.numpy as jnp
from jax.experimental import pallas as pl
from jax.experimental.pallas import tpu as pltpu


def _round_up(x, m):
    return ((x + m - 1) // m) * m


def _fused_autoencoder_kernel(
    x_ref,
    w0_ref, b0_ref, w1_ref, b1_ref, w2_ref, b2_ref,
    w3_ref, b3_ref, w4_ref, b4_ref, w5_ref, b5_ref,
    latent_ref, recon_ref,
):
    """One batch tile of the 6-layer AutoEncoder forward.

    Weights are bf16 (VMEM-resident across all grid steps), intermediate
    activations are carried bf16, accumulation / bias / ReLU are f32.
    """

    def layer(h, w_ref, b_ref, relu):
        acc = jnp.dot(
            h.astype(w_ref.dtype), w_ref[...],
            preferred_element_type=jnp.float32,
        )
        acc = acc + b_ref[...]          # bias broadcast (1, N) -> (TM, N), f32
        if relu:
            acc = jnp.maximum(acc, 0.0)
        return acc

    h = x_ref[...]                                               # (TM, input_dim)
    # encoder (carry bf16 between layers to halve live intermediate footprint)
    h = layer(h, w0_ref, b0_ref, relu=True).astype(w1_ref.dtype)   # (TM, 1024) bf16
    h = layer(h, w1_ref, b1_ref, relu=True).astype(w2_ref.dtype)   # (TM, 512)  bf16
    latent = layer(h, w2_ref, b2_ref, relu=False)                  # (TM, latent) f32
    latent_ref[...] = latent.astype(latent_ref.dtype)
    # decoder
    h = layer(latent, w3_ref, b3_ref, relu=True).astype(w4_ref.dtype)  # (TM, 512)
    h = layer(h, w4_ref, b4_ref, relu=True).astype(w5_ref.dtype)       # (TM, 1024)
    recon = layer(h, w5_ref, b5_ref, relu=False)                       # (TM, input_dim)
    recon_ref[...] = recon.astype(recon_ref.dtype)


def autoencoder_forward(x, params, *, tm=256):
    """Matches AutoEncoder.forward: returns (latent, reconstructed).

    Single pallas_call with a batch-axis grid. Weights/biases use constant
    index_maps (loaded once, pinned in VMEM); activation tiles are pipelined.
    VMEM footprint at TM=256: ~3.3 MB weights + ~2 MB of double-buffered
    activation tiles + ~1 MB of live intermediates — well under every
    generation's scoped VMEM default (incl. v5e's 16 MiB).
    """
    M, input_dim = x.shape
    latent_dim = params[2][0].shape[1]

    # Batch tile: multiple of 8 (f32 sublane tile); 256 fills the v6e/v7x MXU.
    TM = min(tm, _round_up(M, 8))
    M_pad = _round_up(M, TM)
    x_in = jnp.pad(x, ((0, M_pad - M), (0, 0))) if M_pad != M else x
    grid = (M_pad // TM,)

    flat_params = [a for wb in params for a in wb]   # w0,b0,...,w5,b5
    # Full-array blocks with a constant block index -> DMA'd once, VMEM-resident.
    param_specs = [
        pl.BlockSpec(p.shape, lambda i: (0, 0)) for p in flat_params
    ]

    latent, recon = pl.pallas_call(
        _fused_autoencoder_kernel,
        out_shape=(
            jax.ShapeDtypeStruct((M_pad, latent_dim), x.dtype),
            jax.ShapeDtypeStruct((M_pad, input_dim), x.dtype),
        ),
        grid=grid,
        in_specs=[pl.BlockSpec((TM, input_dim), lambda i: (i, 0))] + param_specs,
        out_specs=(
            pl.BlockSpec((TM, latent_dim), lambda i: (i, 0)),
            pl.BlockSpec((TM, input_dim), lambda i: (i, 0)),
        ),
        compiler_params=pltpu.CompilerParams(
            dimension_semantics=("parallel",),
        ),
    )(x_in, *flat_params)

    if M_pad != M:
        latent = latent[:M]
        recon = recon[:M]
    return latent, recon


def init_autoencoder_params(key, input_dim, latent_dim,
                            weight_dtype=jnp.bfloat16, bias_dtype=jnp.float32):
    """Deterministic synthetic params matching the nn.Module layer shapes.

    Weights stored in bf16 (halves HBM streaming; MXU-native on v6e/v7x),
    biases in f32 (epilogue stays f32 on all generations, incl. v5e).
    """
    dims = [
        (input_dim, 1024),   # encoder[0]
        (1024, 512),         # encoder[2]
        (512, latent_dim),   # encoder[4]
        (latent_dim, 512),   # decoder[0]
        (512, 1024),         # decoder[2]
        (1024, input_dim),   # decoder[4]
    ]
    params = []
    for (fan_in, fan_out) in dims:
        key, wk, bk = jax.random.split(key, 3)
        bound = 1.0 / jnp.sqrt(fan_in)
        w = jax.random.uniform(wk, (fan_in, fan_out), jnp.float32, -bound, bound)
        b = jax.random.uniform(bk, (1, fan_out), jnp.float32, -bound, bound)
        params.append((w.astype(weight_dtype), b.astype(bias_dtype)))
    return params


def autoencoder_forward_ref(x, params):
    """Pure-JAX reference with the same mixed precision as the kernel."""
    def layer(h, w, b, relu):
        y = jnp.dot(h.astype(w.dtype), w, preferred_element_type=jnp.float32) + b
        return jnp.maximum(y, 0.0) if relu else y

    (w0, b0), (w1, b1), (w2, b2), (w3, b3), (w4, b4), (w5, b5) = params
    h = layer(x, w0, b0, True)
    h = layer(h, w1, b1, True)
    latent = layer(h, w2, b2, False)
    h = layer(latent, w3, b3, True)
    h = layer(h, w4, b4, True)
    reconstructed = layer(h, w5, b5, False)
    return latent.astype(x.dtype), reconstructed.astype(x.dtype)


if __name__ == "__main__":
    INPUT_DIM = 256
    LATENT_DIM = 32
    BATCH = 8

    key = jax.random.PRNGKey(0)
    key, xk = jax.random.split(key)
    params = init_autoencoder_params(key, INPUT_DIM, LATENT_DIM)

    # --- small-batch path (grid == 1) ---
    x = jax.random.normal(xk, (BATCH, INPUT_DIM), jnp.float32)
    latent, reconstructed = jax.jit(autoencoder_forward)(x, params)
    jax.block_until_ready((latent, reconstructed))

    lat_ref, rec_ref = autoencoder_forward_ref(x, params)
    assert latent.shape == (BATCH, LATENT_DIM)
    assert reconstructed.shape == (BATCH, INPUT_DIM)
    assert jnp.allclose(latent, lat_ref, atol=1e-3, rtol=1e-3)
    assert jnp.allclose(reconstructed, rec_ref, atol=1e-3, rtol=1e-3)

    # --- multi-tile grid path with a ragged batch (exercises padding + grid) ---
    key, xk2 = jax.random.split(key)
    BATCH2, TM2 = 40, 16
    x2 = jax.random.normal(xk2, (BATCH2, INPUT_DIM), jnp.float32)
    lat2, rec2 = jax.jit(lambda xx: autoencoder_forward(xx, params, tm=TM2))(x2)
    jax.block_until_ready((lat2, rec2))
    lat2_ref, rec2_ref = autoencoder_forward_ref(x2, params)
    assert lat2.shape == (BATCH2, LATENT_DIM)
    assert rec2.shape == (BATCH2, INPUT_DIM)
    assert jnp.allclose(lat2, lat2_ref, atol=1e-3, rtol=1e-3)
    assert jnp.allclose(rec2, rec2_ref, atol=1e-3, rtol=1e-3)

    print("KERNEL_OK")
</pallas_src>

<mosaic_0001>
module attributes {stable_mosaic.version = 11 : i64} {
  func.func @_fused_autoencoder_kernel(%arg0: i32, %arg1: memref<8x256xf32, #tpu.memory_space<vmem>>, %arg2: memref<256x1024xbf16, #tpu.memory_space<vmem>>, %arg3: memref<1x1024xf32, #tpu.memory_space<vmem>>, %arg4: memref<1024x512xbf16, #tpu.memory_space<vmem>>, %arg5: memref<1x512xf32, #tpu.memory_space<vmem>>, %arg6: memref<512x32xbf16, #tpu.memory_space<vmem>>, %arg7: memref<1x32xf32, #tpu.memory_space<vmem>>, %arg8: memref<32x512xbf16, #tpu.memory_space<vmem>>, %arg9: memref<1x512xf32, #tpu.memory_space<vmem>>, %arg10: memref<512x1024xbf16, #tpu.memory_space<vmem>>, %arg11: memref<1x1024xf32, #tpu.memory_space<vmem>>, %arg12: memref<1024x256xbf16, #tpu.memory_space<vmem>>, %arg13: memref<1x256xf32, #tpu.memory_space<vmem>>, %arg14: memref<8x32xf32, #tpu.memory_space<vmem>>, %arg15: memref<8x256xf32, #tpu.memory_space<vmem>>) attributes {dimension_semantics = [#tpu.dimension_semantics<parallel>], iteration_bounds = array<i64: 1>, scalar_prefetch = 0 : i64, scratch_operands = 0 : i64, tpu.core_type = #tpu.core_type<tc>, window_params = [{transform_indices = @transform_0, window_bounds = array<i64: 8, 256>}, {pipeline_mode = #tpu.pipeline_mode<synchronous>, transform_indices = @transform_1, window_bounds = array<i64: 256, 1024>}, {pipeline_mode = #tpu.pipeline_mode<synchronous>, transform_indices = @transform_2, window_bounds = array<i64: 1, 1024>}, {pipeline_mode = #tpu.pipeline_mode<synchronous>, transform_indices = @transform_3, window_bounds = array<i64: 1024, 512>}, {pipeline_mode = #tpu.pipeline_mode<synchronous>, transform_indices = @transform_4, window_bounds = array<i64: 1, 512>}, {pipeline_mode = #tpu.pipeline_mode<synchronous>, transform_indices = @transform_5, window_bounds = array<i64: 512, 32>}, {pipeline_mode = #tpu.pipeline_mode<synchronous>, transform_indices = @transform_6, window_bounds = array<i64: 1, 32>}, {pipeline_mode = #tpu.pipeline_mode<synchronous>, transform_indices = @transform_7, window_bounds = array<i64: 32, 512>}, {pipeline_mode = #tpu.pipeline_mode<synchronous>, transform_indices = @transform_8, window_bounds = array<i64: 1, 512>}, {pipeline_mode = #tpu.pipeline_mode<synchronous>, transform_indices = @transform_9, window_bounds = array<i64: 512, 1024>}, {pipeline_mode = #tpu.pipeline_mode<synchronous>, transform_indices = @transform_10, window_bounds = array<i64: 1, 1024>}, {pipeline_mode = #tpu.pipeline_mode<synchronous>, transform_indices = @transform_11, window_bounds = array<i64: 1024, 256>}, {pipeline_mode = #tpu.pipeline_mode<synchronous>, transform_indices = @transform_12, window_bounds = array<i64: 1, 256>}, {transform_indices = @transform_13, window_bounds = array<i64: 8, 32>}, {transform_indices = @transform_14, window_bounds = array<i64: 8, 256>}]} {
    %c0 = arith.constant 0 : index
    %c0_0 = arith.constant 0 : index
    %0 = vector.load %arg1[%c0, %c0_0] : memref<8x256xf32, #tpu.memory_space<vmem>>, vector<8x256xf32>
    %1 = arith.truncf %0 : vector<8x256xf32> to vector<8x256xbf16>
    %c0_1 = arith.constant 0 : index
    %c0_2 = arith.constant 0 : index
    %2 = vector.load %arg2[%c0_1, %c0_2] : memref<256x1024xbf16, #tpu.memory_space<vmem>>, vector<256x1024xbf16>
    %cst = arith.constant dense<0.000000e+00> : vector<8x1024xf32>
    %3 = tpu.matmul %1, %2, %cst {dimension_numbers = #tpu.dot_dimension_numbers<[1], [0], [0], [1], [0, 0, 1, 1], [], []>} : vector<8x256xbf16>, vector<256x1024xbf16>, vector<8x1024xf32> -> vector<8x1024xf32>
    %c0_3 = arith.constant 0 : index
    %c0_4 = arith.constant 0 : index
    %4 = vector.load %arg3[%c0_3, %c0_4] : memref<1x1024xf32, #tpu.memory_space<vmem>>, vector<1x1024xf32>
    %5 = vector.broadcast %4 : vector<1x1024xf32> to vector<8x1024xf32>
    %6 = arith.addf %3, %5 : vector<8x1024xf32>
    %cst_5 = arith.constant 0.000000e+00 : f32
    %7 = vector.broadcast %cst_5 : f32 to vector<8x1024xf32>
    %8 = arith.maximumf %6, %7 : vector<8x1024xf32>
    %9 = arith.truncf %8 : vector<8x1024xf32> to vector<8x1024xbf16>
    %c0_6 = arith.constant 0 : index
    %c0_7 = arith.constant 0 : index
    %10 = vector.load %arg4[%c0_6, %c0_7] : memref<1024x512xbf16, #tpu.memory_space<vmem>>, vector<1024x512xbf16>
    %cst_8 = arith.constant dense<0.000000e+00> : vector<8x512xf32>
    %11 = tpu.matmul %9, %10, %cst_8 {dimension_numbers = #tpu.dot_dimension_numbers<[1], [0], [0], [1], [0, 0, 1, 1], [], []>} : vector<8x1024xbf16>, vector<1024x512xbf16>, vector<8x512xf32> -> vector<8x512xf32>
    %c0_9 = arith.constant 0 : index
    %c0_10 = arith.constant 0 : index
    %12 = vector.load %arg5[%c0_9, %c0_10] : memref<1x512xf32, #tpu.memory_space<vmem>>, vector<1x512xf32>
    %13 = vector.broadcast %12 : vector<1x512xf32> to vector<8x512xf32>
    %14 = arith.addf %11, %13 : vector<8x512xf32>
    %cst_11 = arith.constant 0.000000e+00 : f32
    %15 = vector.broadcast %cst_11 : f32 to vector<8x512xf32>
    %16 = arith.maximumf %14, %15 : vector<8x512xf32>
    %17 = arith.truncf %16 : vector<8x512xf32> to vector<8x512xbf16>
    %c0_12 = arith.constant 0 : index
    %c0_13 = arith.constant 0 : index
    %18 = vector.load %arg6[%c0_12, %c0_13] : memref<512x32xbf16, #tpu.memory_space<vmem>>, vector<512x32xbf16>
    %cst_14 = arith.constant dense<0.000000e+00> : vector<8x32xf32>
    %19 = tpu.matmul %17, %18, %cst_14 {dimension_numbers = #tpu.dot_dimension_numbers<[1], [0], [0], [1], [0, 0, 1, 1], [], []>} : vector<8x512xbf16>, vector<512x32xbf16>, vector<8x32xf32> -> vector<8x32xf32>
    %c0_15 = arith.constant 0 : index
    %c0_16 = arith.constant 0 : index
    %20 = vector.load %arg7[%c0_15, %c0_16] : memref<1x32xf32, #tpu.memory_space<vmem>>, vector<1x32xf32>
    %21 = vector.broadcast %20 : vector<1x32xf32> to vector<8x32xf32>
    %22 = arith.addf %19, %21 : vector<8x32xf32>
    %c0_17 = arith.constant 0 : index
    %c0_18 = arith.constant 0 : index
    %23 = vector.load %arg14[%c0_17, %c0_18] : memref<8x32xf32, #tpu.memory_space<vmem>>, vector<8x32xf32>
    tpu.vector_store %arg14[%c0_17, %c0_18], %22 {strides = array<i32>} : memref<8x32xf32, #tpu.memory_space<vmem>>, vector<8x32xf32>,
    %24 = arith.truncf %22 : vector<8x32xf32> to vector<8x32xbf16>
    %c0_19 = arith.constant 0 : index
    %c0_20 = arith.constant 0 : index
    %25 = vector.load %arg8[%c0_19, %c0_20] : memref<32x512xbf16, #tpu.memory_space<vmem>>, vector<32x512xbf16>
    %cst_21 = arith.constant dense<0.000000e+00> : vector<8x512xf32>
    %26 = tpu.matmul %24, %25, %cst_21 {dimension_numbers = #tpu.dot_dimension_numbers<[1], [0], [0], [1], [0, 0, 1, 1], [], []>} : vector<8x32xbf16>, vector<32x512xbf16>, vector<8x512xf32> -> vector<8x512xf32>
    %c0_22 = arith.constant 0 : index
    %c0_23 = arith.constant 0 : index
    %27 = vector.load %arg9[%c0_22, %c0_23] : memref<1x512xf32, #tpu.memory_space<vmem>>, vector<1x512xf32>
    %28 = vector.broadcast %27 : vector<1x512xf32> to vector<8x512xf32>
    %29 = arith.addf %26, %28 : vector<8x512xf32>
    %cst_24 = arith.constant 0.000000e+00 : f32
    %30 = vector.broadcast %cst_24 : f32 to vector<8x512xf32>
    %31 = arith.maximumf %29, %30 : vector<8x512xf32>
    %32 = arith.truncf %31 : vector<8x512xf32> to vector<8x512xbf16>
    %c0_25 = arith.constant 0 : index
    %c0_26 = arith.constant 0 : index
    %33 = vector.load %arg10[%c0_25, %c0_26] : memref<512x1024xbf16, #tpu.memory_space<vmem>>, vector<512x1024xbf16>
    %cst_27 = arith.constant dense<0.000000e+00> : vector<8x1024xf32>
    %34 = tpu.matmul %32, %33, %cst_27 {dimension_numbers = #tpu.dot_dimension_numbers<[1], [0], [0], [1], [0, 0, 1, 1], [], []>} : vector<8x512xbf16>, vector<512x1024xbf16>, vector<8x1024xf32> -> vector<8x1024xf32>
    %c0_28 = arith.constant 0 : index
    %c0_29 = arith.constant 0 : index
    %35 = vector.load %arg11[%c0_28, %c0_29] : memref<1x1024xf32, #tpu.memory_space<vmem>>, vector<1x1024xf32>
    %36 = vector.broadcast %35 : vector<1x1024xf32> to vector<8x1024xf32>
    %37 = arith.addf %34, %36 : vector<8x1024xf32>
    %cst_30 = arith.constant 0.000000e+00 : f32
    %38 = vector.broadcast %cst_30 : f32 to vector<8x1024xf32>
    %39 = arith.maximumf %37, %38 : vector<8x1024xf32>
    %40 = arith.truncf %39 : vector<8x1024xf32> to vector<8x1024xbf16>
    %c0_31 = arith.constant 0 : index
    %c0_32 = arith.constant 0 : index
    %41 = vector.load %arg12[%c0_31, %c0_32] : memref<1024x256xbf16, #tpu.memory_space<vmem>>, vector<1024x256xbf16>
    %cst_33 = arith.constant dense<0.000000e+00> : vector<8x256xf32>
    %42 = tpu.matmul %40, %41, %cst_33 {dimension_numbers = #tpu.dot_dimension_numbers<[1], [0], [0], [1], [0, 0, 1, 1], [], []>} : vector<8x1024xbf16>, vector<1024x256xbf16>, vector<8x256xf32> -> vector<8x256xf32>
    %c0_34 = arith.constant 0 : index
    %c0_35 = arith.constant 0 : index
    %43 = vector.load %arg13[%c0_34, %c0_35] : memref<1x256xf32, #tpu.memory_space<vmem>>, vector<1x256xf32>
    %44 = vector.broadcast %43 : vector<1x256xf32> to vector<8x256xf32>
    %45 = arith.addf %42, %44 : vector<8x256xf32>
    %c0_36 = arith.constant 0 : index
    %c0_37 = arith.constant 0 : index
    %46 = vector.load %arg15[%c0_36, %c0_37] : memref<8x256xf32, #tpu.memory_space<vmem>>, vector<8x256xf32>
    tpu.vector_store %arg15[%c0_36, %c0_37], %45 {strides = array<i32>} : memref<8x256xf32, #tpu.memory_space<vmem>>, vector<8x256xf32>,
    return
  }
  func.func @transform_0(%arg0: i32) -> (i32, i32) {
    %c0_i32 = arith.constant 0 : i32
    %c0_i32_0 = arith.constant 0 : i32
    return %arg0, %c0_i32 : i32, i32
  }
  func.func @transform_1(%arg0: i32) -> (i32, i32) {
    %c0_i32 = arith.constant 0 : i32
    %c0_i32_0 = arith.constant 0 : i32
    %c0_i32_1 = arith.constant 0 : i32
    return %c0_i32, %c0_i32_0 : i32, i32
  }
  func.func @transform_2(%arg0: i32) -> (i32, i32) {
    %c0_i32 = arith.constant 0 : i32
    %c0_i32_0 = arith.constant 0 : i32
    %c0_i32_1 = arith.constant 0 : i32
    return %c0_i32, %c0_i32_0 : i32, i32
  }
  func.func @transform_3(%arg0: i32) -> (i32, i32) {
    %c0_i32 = arith.constant 0 : i32
    %c0_i32_0 = arith.constant 0 : i32
    %c0_i32_1 = arith.constant 0 : i32
    return %c0_i32, %c0_i32_0 : i32, i32
  }
  func.func @transform_4(%arg0: i32) -> (i32, i32) {
    %c0_i32 = arith.constant 0 : i32
    %c0_i32_0 = arith.constant 0 : i32
    %c0_i32_1 = arith.constant 0 : i32
    return %c0_i32, %c0_i32_0 : i32, i32
  }
  func.func @transform_5(%arg0: i32) -> (i32, i32) {
    %c0_i32 = arith.constant 0 : i32
    %c0_i32_0 = arith.constant 0 : i32
    %c0_i32_1 = arith.constant 0 : i32
    return %c0_i32, %c0_i32_0 : i32, i32
  }
  func.func @transform_6(%arg0: i32) -> (i32, i32) {
    %c0_i32 = arith.constant 0 : i32
    %c0_i32_0 = arith.constant 0 : i32
    %c0_i32_1 = arith.constant 0 : i32
    return %c0_i32, %c0_i32_0 : i32, i32
  }
  func.func @transform_7(%arg0: i32) -> (i32, i32) {
    %c0_i32 = arith.constant 0 : i32
    %c0_i32_0 = arith.constant 0 : i32
    %c0_i32_1 = arith.constant 0 : i32
    return %c0_i32, %c0_i32_0 : i32, i32
  }
  func.func @transform_8(%arg0: i32) -> (i32, i32) {
    %c0_i32 = arith.constant 0 : i32
    %c0_i32_0 = arith.constant 0 : i32
    %c0_i32_1 = arith.constant 0 : i32
    return %c0_i32, %c0_i32_0 : i32, i32
  }
  func.func @transform_9(%arg0: i32) -> (i32, i32) {
    %c0_i32 = arith.constant 0 : i32
    %c0_i32_0 = arith.constant 0 : i32
    %c0_i32_1 = arith.constant 0 : i32
    return %c0_i32, %c0_i32_0 : i32, i32
  }
  func.func @transform_10(%arg0: i32) -> (i32, i32) {
    %c0_i32 = arith.constant 0 : i32
    %c0_i32_0 = arith.constant 0 : i32
    %c0_i32_1 = arith.constant 0 : i32
    return %c0_i32, %c0_i32_0 : i32, i32
  }
  func.func @transform_11(%arg0: i32) -> (i32, i32) {
    %c0_i32 = arith.constant 0 : i32
    %c0_i32_0 = arith.constant 0 : i32
    %c0_i32_1 = arith.constant 0 : i32
    return %c0_i32, %c0_i32_0 : i32, i32
  }
  func.func @transform_12(%arg0: i32) -> (i32, i32) {
    %c0_i32 = arith.constant 0 : i32
    %c0_i32_0 = arith.constant 0 : i32
    %c0_i32_1 = arith.constant 0 : i32
    return %c0_i32, %c0_i32_0 : i32, i32
  }
  func.func @transform_13(%arg0: i32) -> (i32, i32) {
    %c0_i32 = arith.constant 0 : i32
    %c0_i32_0 = arith.constant 0 : i32
    return %arg0, %c0_i32 : i32, i32
  }
  func.func @transform_14(%arg0: i32) -> (i32, i32) {
    %c0_i32 = arith.constant 0 : i32
    %c0_i32_0 = arith.constant 0 : i32
    return %arg0, %c0_i32 : i32, i32
  }
}

</mosaic_0001>

<llo_original>
// kernel: autoencoder_forward.1
$region0: #{autoencoder_forward.1}
  #allocation0 [shape = 'u32[]', space=smem, size = 0x4, offset = 0x4, fixed_abs, tag = 'smem constant byte address 0x4 - core index']
  #allocation1 [shape = 'u32[144,128]{1,0:T(1,128)}', space=vmem, size = 0x12000, scoped, tag = 'internal scratch']
  %s0 = inlined_call_operand.vmem [shape: f32[8,256], index: 0, kind: input, shape index: {}]
  %s1 = inlined_call_operand.hbm [shape: bf16[256,1024], index: 1, kind: input, shape index: {}]
  %s2 = inlined_call_operand.vmem [shape: f32[1,1024], index: 2, kind: input, shape index: {}]
  %s3 = inlined_call_operand.hbm [shape: bf16[1024,512], index: 3, kind: input, shape index: {}]
  %s4 = inlined_call_operand.vmem [shape: f32[1,512], index: 4, kind: input, shape index: {}]
  %s5 = inlined_call_operand.vmem [shape: bf16[512,32], index: 5, kind: input, shape index: {}]
  %s6 = inlined_call_operand.vmem [shape: f32[1,32], index: 6, kind: input, shape index: {}]
  %s7 = inlined_call_operand.vmem [shape: bf16[32,512], index: 7, kind: input, shape index: {}]
  %s8 = inlined_call_operand.vmem [shape: f32[1,512], index: 8, kind: input, shape index: {}]
  %s9 = inlined_call_operand.hbm [shape: bf16[512,1024], index: 9, kind: input, shape index: {}]
  %s10 = inlined_call_operand.vmem [shape: f32[1,1024], index: 10, kind: input, shape index: {}]
  %s11 = inlined_call_operand.hbm [shape: bf16[1024,256], index: 11, kind: input, shape index: {}]
  %s12 = inlined_call_operand.vmem [shape: f32[1,256], index: 12, kind: input, shape index: {}]
  %s13 = inlined_call_operand.hbm [shape: f32[8,32], index: 13, kind: output, shape index: {0}]
  %s14 = inlined_call_operand.hbm [shape: f32[8,256], index: 14, kind: output, shape index: {1}]
  %15 = xla_tuple %s13, %s14
  %s16 = sld [smem:[#allocation0]]
  $region86: #{autoencoder_forward.1} parent=0
    _
  %s18 = ssub.s32 1, %s16
  %s19 = scalar_select 0, %s18, %s16
  $region1: #{autoencoder_forward.1} parent=0
    #allocation2 [shape = 'u8[524288]{0}', space=vmem, size = 0x80000, scoped, tag = 'input window, operand 1, single buffered']
    #allocation3 [shape = 's32[1]{0}', space=sflag, size = 0x4, scoped, tag = 'scoped memory for autoencoder_forward.1']
    #allocation4 [shape = 's32[1]{0}', space=sflag, size = 0x4, scoped, tag = 'scoped memory for autoencoder_forward.1']
    #allocation5 [shape = 'u8[1048576]{0}', space=vmem, size = 0x100000, scoped, tag = 'input window, operand 3, single buffered']
    #allocation6 [shape = 's32[1]{0}', space=sflag, size = 0x4, scoped, tag = 'scoped memory for autoencoder_forward.1']
    #allocation7 [shape = 'u8[1048576]{0}', space=vmem, size = 0x100000, scoped, tag = 'input window, operand 9, single buffered']
    #allocation8 [shape = 'u8[524288]{0}', space=vmem, size = 0x80000, scoped, tag = 'input window, operand 11, single buffered']
    #allocation9 [shape = 's32[1]{0}', space=sflag, size = 0x4, scoped, tag = 'scoped memory for autoencoder_forward.1']
    #allocation10 [shape = 'u8[4096]{0}', space=vmem, size = 0x1000, scoped, tag = 'output window, operand 0, single buffered']
    #allocation11 [shape = 'u8[8192]{0}', space=vmem, size = 0x2000, scoped, tag = 'output window, operand 1, single buffered']
    #allocation12 [shape = 's32[1]{0}', space=sflag, size = 0x4, scoped, tag = 'scoped memory for autoencoder_forward.1']
    %20 = vsyncpa [#allocation3], 0
    %21 = vsyncpa [#allocation6], 0
    %22 = vsyncpa [#allocation9], 0
    %23 = vsyncpa [#allocation4], 0
    %24 = vsyncpa [#allocation12], 0
    // Predicated region
    $region2: #{autoencoder_forward.1} parent=1 // pred_check
      _
    $region3: #{autoencoder_forward.1} parent=1 // pred_check_branch
      %26 = sbr.rel (0) target = $region5
    $region4: #{autoencoder_forward.1} parent=1 // pred_region
      _
    $region5: #{autoencoder_forward.1} parent=1 // pred_fallthru
      _
    // Predicated region
    $region6: #{autoencoder_forward.1} parent=1 // pred_check
      _
    $region7: #{autoencoder_forward.1} parent=1 // pred_check_branch
      %28 = sbr.rel (0) target = $region9
    $region8: #{autoencoder_forward.1} parent=1 // pred_region
      %s30 = ssub.s32 16384, 16384
      %31 = vsyncadd [#allocation3], %s30
      %s32 = sshll.u32 [#allocation2], 4
      %s33 = int_to_ptr.vmem [resolvable:$true] %s32
      %38 = dma.hbm_to_vmem [thread:$0]  %s1, 16384, %s33, [#allocation3], 512, 512, 32
    $region9: #{autoencoder_forward.1} parent=1 // pred_fallthru
      _
    // Predicated region
    $region10: #{autoencoder_forward.1} parent=1 // pred_check
      _
    $region11: #{autoencoder_forward.1} parent=1 // pred_check_branch
      %40 = sbr.rel (0) target = $region13
    $region12: #{autoencoder_forward.1} parent=1 // pred_region
      _
    $region13: #{autoencoder_forward.1} parent=1 // pred_fallthru
      _
    // Predicated region
    $region14: #{autoencoder_forward.1} parent=1 // pred_check
      _
    $region15: #{autoencoder_forward.1} parent=1 // pred_check_branch
      %42 = sbr.rel (0) target = $region17
    $region16: #{autoencoder_forward.1} parent=1 // pred_region
      %s44 = ssub.s32 32768, 32768
      %45 = vsyncadd [#allocation6], %s44
      %s46 = sshll.u32 [#allocation5], 4
      %s47 = int_to_ptr.vmem [resolvable:$true] %s46
      %52 = dma.hbm_to_vmem [thread:$0]  %s3, 32768, %s47, [#allocation6], 256, 256, 16
    $region17: #{autoencoder_forward.1} parent=1 // pred_fallthru
      _
    // Predicated region
    $region18: #{autoencoder_forward.1} parent=1 // pred_check
      _
    $region19: #{autoencoder_forward.1} parent=1 // pred_check_branch
      %54 = sbr.rel (0) target = $region21
    $region20: #{autoencoder_forward.1} parent=1 // pred_region
      _
    $region21: #{autoencoder_forward.1} parent=1 // pred_fallthru
      _
    // Predicated region
    $region22: #{autoencoder_forward.1} parent=1 // pred_check
      _
    $region23: #{autoencoder_forward.1} parent=1 // pred_check_branch
      %56 = sbr.rel (0) target = $region25
    $region24: #{autoencoder_forward.1} parent=1 // pred_region
      _
    $region25: #{autoencoder_forward.1} parent=1 // pred_fallthru
      _
    // Predicated region
    $region26: #{autoencoder_forward.1} parent=1 // pred_check
      _
    $region27: #{autoencoder_forward.1} parent=1 // pred_check_branch
      %58 = sbr.rel (0) target = $region29
    $region28: #{autoencoder_forward.1} parent=1 // pred_region
      _
    $region29: #{autoencoder_forward.1} parent=1 // pred_fallthru
      _
    // Predicated region
    $region30: #{autoencoder_forward.1} parent=1 // pred_check
      _
    $region31: #{autoencoder_forward.1} parent=1 // pred_check_branch
      %60 = sbr.rel (0) target = $region33
    $region32: #{autoencoder_forward.1} parent=1 // pred_region
      _
    $region33: #{autoencoder_forward.1} parent=1 // pred_fallthru
      _
    // Predicated region
    $region34: #{autoencoder_forward.1} parent=1 // pred_check
      _
    $region35: #{autoencoder_forward.1} parent=1 // pred_check_branch
      %62 = sbr.rel (0) target = $region37
    $region36: #{autoencoder_forward.1} parent=1 // pred_region
      _
    $region37: #{autoencoder_forward.1} parent=1 // pred_fallthru
      _
    // Predicated region
    $region38: #{autoencoder_forward.1} parent=1 // pred_check
      _
    $region39: #{autoencoder_forward.1} parent=1 // pred_check_branch
      %64 = sbr.rel (0) target = $region41
    $region40: #{autoencoder_forward.1} parent=1 // pred_region
      %s66 = ssub.s32 32768, 32768
      %67 = vsyncadd [#allocation6], %s66
      %s68 = sshll.u32 [#allocation7], 4
      %s69 = int_to_ptr.vmem [resolvable:$true] %s68
      %74 = dma.hbm_to_vmem [thread:$0]  %s9, 32768, %s69, [#allocation6], 512, 512, 32
    $region41: #{autoencoder_forward.1} parent=1 // pred_fallthru
      _
    // Predicated region
    $region42: #{autoencoder_forward.1} parent=1 // pred_check
      _
    $region43: #{autoencoder_forward.1} parent=1 // pred_check_branch
      %76 = sbr.rel (0) target = $region45
    $region44: #{autoencoder_forward.1} parent=1 // pred_region
      _
    $region45: #{autoencoder_forward.1} parent=1 // pred_fallthru
      _
    // Predicated region
    $region46: #{autoencoder_forward.1} parent=1 // pred_check
      _
    $region47: #{autoencoder_forward.1} parent=1 // pred_check_branch
      %78 = sbr.rel (0) target = $region49
    $region48: #{autoencoder_forward.1} parent=1 // pred_region
      %s80 = ssub.s32 16384, 16384
      %81 = vsyncadd [#allocation9], %s80
      %s82 = sshll.u32 [#allocation8], 4
      %s83 = int_to_ptr.vmem [resolvable:$true] %s82
      %88 = dma.hbm_to_vmem [thread:$0]  %s11, 16384, %s83, [#allocation9], 128, 128, 8
    $region49: #{autoencoder_forward.1} parent=1 // pred_fallthru
      _
    // Predicated region
    $region50: #{autoencoder_forward.1} parent=1 // pred_check
      _
    $region51: #{autoencoder_forward.1} parent=1 // pred_check_branch
      %90 = sbr.rel (0) target = $region53
    $region52: #{autoencoder_forward.1} parent=1 // pred_region
      _
    $region53: #{autoencoder_forward.1} parent=1 // pred_fallthru
      _
    // Predicated region
    $region54: #{autoencoder_forward.1} parent=1 // pred_check
      _
    $region55: #{autoencoder_forward.1} parent=1 // pred_check_branch
      %92 = sbr.rel (0) target = $region57
    $region56: #{autoencoder_forward.1} parent=1 // pred_region
      %93 = dma.done [#allocation3], 16384
    $region57: #{autoencoder_forward.1} parent=1 // pred_fallthru
      _
    // Predicated region
    $region58: #{autoencoder_forward.1} parent=1 // pred_check
      _
    $region59: #{autoencoder_forward.1} parent=1 // pred_check_branch
      %95 = sbr.rel (0) target = $region61
    $region60: #{autoencoder_forward.1} parent=1 // pred_region
      %96 = dma.done [#allocation6], 32768
    $region61: #{autoencoder_forward.1} parent=1 // pred_fallthru
      _
    // Predicated region
    $region62: #{autoencoder_forward.1} parent=1 // pred_check
      _
    $region63: #{autoencoder_forward.1} parent=1 // pred_check_branch
      %98 = sbr.rel (0) target = $region65
    $region64: #{autoencoder_forward.1} parent=1 // pred_region
      %99 = dma.done [#allocation6], 32768
    $region65: #{autoencoder_forward.1} parent=1 // pred_fallthru
      _
    // Predicated region
    $region66: #{autoencoder_forward.1} parent=1 // pred_check
      _
    $region67: #{autoencoder_forward.1} parent=1 // pred_check_branch
      %101 = sbr.rel (0) target = $region69
    $region68: #{autoencoder_forward.1} parent=1 // pred_region
      %102 = dma.done [#allocation9], 16384
    $region69: #{autoencoder_forward.1} parent=1 // pred_fallthru
      _
    %v104 = vld [vmem:[%s0] sm:$0xff]
    %v105 = vld [vmem:[%s0 + $0x8] sm:$0xff]
    %v106 = vpack.c.bf16 %v104, %v104
    %v107 = vpack.c.bf16 %v105, %v105
    %v108 = vld [vmem:[#allocation2] sm:$0xff]
    %v109 = vld [vmem:[#allocation2 + $0x8] sm:$0xff]
    %v110 = vld [vmem:[#allocation2 + $0x10] sm:$0xff]
    %v111 = vld [vmem:[#allocation2 + $0x18] sm:$0xff]
    %v112 = vld [vmem:[#allocation2 + $0x20] sm:$0xff]
    %v113 = vld [vmem:[#allocation2 + $0x28] sm:$0xff]
    %v114 = vld [vmem:[#allocation2 + $0x30] sm:$0xff]
    %v115 = vld [vmem:[#allocation2 + $0x38] sm:$0xff]
    %v116 = vld [vmem:[#allocation2 + $0x40] sm:$0xff]
    %v117 = vld [vmem:[#allocation2 + $0x48] sm:$0xff]
    %v118 = vld [vmem:[#allocation2 + $0x50] sm:$0xff]
    %v119 = vld [vmem:[#allocation2 + $0x58] sm:$0xff]
    %v120 = vld [vmem:[#allocation2 + $0x60] sm:$0xff]
    %v121 = vld [vmem:[#allocation2 + $0x68] sm:$0xff]
    %v122 = vld [vmem:[#allocation2 + $0x70] sm:$0xff]
    %v123 = vld [vmem:[#allocation2 + $0x78] sm:$0xff]
    %v124 = vld [vmem:[#allocation2 + $0x80] sm:$0xff]
    %v125 = vld [vmem:[#allocation2 + $0x88] sm:$0xff]
    %v126 = vld [vmem:[#allocation2 + $0x90] sm:$0xff]
    %v127 = vld [vmem:[#allocation2 + $0x98] sm:$0xff]
    %v128 = vld [vmem:[#allocation2 + $0xa0] sm:$0xff]
    %v129 = vld [vmem:[#allocation2 + $0xa8] sm:$0xff]
    %v130 = vld [vmem:[#allocation2 + $0xb0] sm:$0xff]
    %v131 = vld [vmem:[#allocation2 + $0xb8] sm:$0xff]
    %v132 = vld [vmem:[#allocation2 + $0xc0] sm:$0xff]
    %v133 = vld [vmem:[#allocation2 + $0xc8] sm:$0xff]
    %v134 = vld [vmem:[#allocation2 + $0xd0] sm:$0xff]
    %v135 = vld [vmem:[#allocation2 + $0xd8] sm:$0xff]
    %v136 = vld [vmem:[#allocation2 + $0xe0] sm:$0xff]
    %v137 = vld [vmem:[#allocation2 + $0xe8] sm:$0xff]
    %v138 = vld [vmem:[#allocation2 + $0xf0] sm:$0xff]
    %v139 = vld [vmem:[#allocation2 + $0xf8] sm:$0xff]
    %v140 = vld [vmem:[#allocation2 + $0x100] sm:$0xff]
    %v141 = vld [vmem:[#allocation2 + $0x108] sm:$0xff]
    %v142 = vld [vmem:[#allocation2 + $0x110] sm:$0xff]
    %v143 = vld [vmem:[#allocation2 + $0x118] sm:$0xff]
    %v144 = vld [vmem:[#allocation2 + $0x120] sm:$0xff]
    %v145 = vld [vmem:[#allocation2 + $0x128] sm:$0xff]
    %v146 = vld [vmem:[#allocation2 + $0x130] sm:$0xff]
    %v147 = vld [vmem:[#allocation2 + $0x138] sm:$0xff]
    %v148 = vld [vmem:[#allocation2 + $0x140] sm:$0xff]
    %v149 = vld [vmem:[#allocation2 + $0x148] sm:$0xff]
    %v150 = vld [vmem:[#allocation2 + $0x150] sm:$0xff]
    %v151 = vld [vmem:[#allocation2 + $0x158] sm:$0xff]
    %v152 = vld [vmem:[#allocation2 + $0x160] sm:$0xff]
    %v153 = vld [vmem:[#allocation2 + $0x168] sm:$0xff]
    %v154 = vld [vmem:[#allocation2 + $0x170] sm:$0xff]
    %v155 = vld [vmem:[#allocation2 + $0x178] sm:$0xff]
    %v156 = vld [vmem:[#allocation2 + $0x180] sm:$0xff]
    %v157 = vld [vmem:[#allocation2 + $0x188] sm:$0xff]
    %v158 = vld [vmem:[#allocation2 + $0x190] sm:$0xff]
    %v159 = vld [vmem:[#allocation2 + $0x198] sm:$0xff]
    %v160 = vld [vmem:[#allocation2 + $0x1a0] sm:$0xff]
    %v161 = vld [vmem:[#allocation2 + $0x1a8] sm:$0xff]
    %v162 = vld [vmem:[#allocation2 + $0x1b0] sm:$0xff]
    %v163 = vld [vmem:[#allocation2 + $0x1b8] sm:$0xff]
    %v164 = vld [vmem:[#allocation2 + $0x1c0] sm:$0xff]
    %v165 = vld [vmem:[#allocation2 + $0x1c8] sm:$0xff]
    %v166 = vld [vmem:[#allocation2 + $0x1d0] sm:$0xff]
    %v167 = vld [vmem:[#allocation2 + $0x1d8] sm:$0xff]
    %v168 = vld [vmem:[#allocation2 + $0x1e0] sm:$0xff]
    %v169 = vld [vmem:[#allocation2 + $0x1e8] sm:$0xff]
    %v170 = vld [vmem:[#allocation2 + $0x1f0] sm:$0xff]
    %v171 = vld [vmem:[#allocation2 + $0x1f8] sm:$0xff]
    %v172 = vld [vmem:[#allocation2 + $0x200] sm:$0xff]
    %v173 = vld [vmem:[#allocation2 + $0x208] sm:$0xff]
    %v174 = vld [vmem:[#allocation2 + $0x210] sm:$0xff]
    %v175 = vld [vmem:[#allocation2 + $0x218] sm:$0xff]
    %v176 = vld [vmem:[#allocation2 + $0x220] sm:$0xff]
    %v177 = vld [vmem:[#allocation2 + $0x228] sm:$0xff]
    %v178 = vld [vmem:[#allocation2 + $0x230] sm:$0xff]
    %v179 = vld [vmem:[#allocation2 + $0x238] sm:$0xff]
    %v180 = vld [vmem:[#allocation2 + $0x240] sm:$0xff]
    %v181 = vld [vmem:[#allocation2 + $0x248] sm:$0xff]
    %v182 = vld [vmem:[#allocation2 + $0x250] sm:$0xff]
    %v183 = vld [vmem:[#allocation2 + $0x258] sm:$0xff]
    %v184 = vld [vmem:[#allocation2 + $0x260] sm:$0xff]
    %v185 = vld [vmem:[#allocation2 + $0x268] sm:$0xff]
    %v186 = vld [vmem:[#allocation2 + $0x270] sm:$0xff]
    %v187 = vld [vmem:[#allocation2 + $0x278] sm:$0xff]
    %v188 = vld [vmem:[#allocation2 + $0x280] sm:$0xff]
    %v189 = vld [vmem:[#allocation2 + $0x288] sm:$0xff]
    %v190 = vld [vmem:[#allocation2 + $0x290] sm:$0xff]
    %v191 = vld [vmem:[#allocation2 + $0x298] sm:$0xff]
    %v192 = vld [vmem:[#allocation2 + $0x2a0] sm:$0xff]
    %v193 = vld [vmem:[#allocation2 + $0x2a8] sm:$0xff]
    %v194 = vld [vmem:[#allocation2 + $0x2b0] sm:$0xff]
    %v195 = vld [vmem:[#allocation2 + $0x2b8] sm:$0xff]
    %v196 = vld [vmem:[#allocation2 + $0x2c0] sm:$0xff]
    %v197 = vld [vmem:[#allocation2 + $0x2c8] sm:$0xff]
    %v198 = vld [vmem:[#allocation2 + $0x2d0] sm:$0xff]
    %v199 = vld [vmem:[#allocation2 + $0x2d8] sm:$0xff]
    %v200 = vld [vmem:[#allocation2 + $0x2e0] sm:$0xff]
    %v201 = vld [vmem:[#allocation2 + $0x2e8] sm:$0xff]
    %v202 = vld [vmem:[#allocation2 + $0x2f0] sm:$0xff]
    %v203 = vld [vmem:[#allocation2 + $0x2f8] sm:$0xff]
    %v204 = vld [vmem:[#allocation2 + $0x300] sm:$0xff]
    %v205 = vld [vmem:[#allocation2 + $0x308] sm:$0xff]
    %v206 = vld [vmem:[#allocation2 + $0x310] sm:$0xff]
    %v207 = vld [vmem:[#allocation2 + $0x318] sm:$0xff]
    %v208 = vld [vmem:[#allocation2 + $0x320] sm:$0xff]
    %v209 = vld [vmem:[#allocation2 + $0x328] sm:$0xff]
    %v210 = vld [vmem:[#allocation2 + $0x330] sm:$0xff]
    %v211 = vld [vmem:[#allocation2 + $0x338] sm:$0xff]
    %v212 = vld [vmem:[#allocation2 + $0x340] sm:$0xff]
    %v213 = vld [vmem:[#allocation2 + $0x348] sm:$0xff]
    %v214 = vld [vmem:[#allocation2 + $0x350] sm:$0xff]
    %v215 = vld [vmem:[#allocation2 + $0x358] sm:$0xff]
    %v216 = vld [vmem:[#allocation2 + $0x360] sm:$0xff]
    %v217 = vld [vmem:[#allocation2 + $0x368] sm:$0xff]
    %v218 = vld [vmem:[#allocation2 + $0x370] sm:$0xff]
    %v219 = vld [vmem:[#allocation2 + $0x378] sm:$0xff]
    %v220 = vld [vmem:[#allocation2 + $0x380] sm:$0xff]
    %v221 = vld [vmem:[#allocation2 + $0x388] sm:$0xff]
    %v222 = vld [vmem:[#allocation2 + $0x390] sm:$0xff]
    %v223 = vld [vmem:[#allocation2 + $0x398] sm:$0xff]
    %v224 = vld [vmem:[#allocation2 + $0x3a0] sm:$0xff]
    %v225 = vld [vmem:[#allocation2 + $0x3a8] sm:$0xff]
    %v226 = vld [vmem:[#allocation2 + $0x3b0] sm:$0xff]
    %v227 = vld [vmem:[#allocation2 + $0x3b8] sm:$0xff]
    %v228 = vld [vmem:[#allocation2 + $0x3c0] sm:$0xff]
    %v229 = vld [vmem:[#allocation2 + $0x3c8] sm:$0xff]
    %v230 = vld [vmem:[#allocation2 + $0x3d0] sm:$0xff]
    %v231 = vld [vmem:[#allocation2 + $0x3d8] sm:$0xff]
    %v232 = vld [vmem:[#allocation2 + $0x3e0] sm:$0xff]
    %v233 = vld [vmem:[#allocation2 + $0x3e8] sm:$0xff]
    %v234 = vld [vmem:[#allocation2 + $0x3f0] sm:$0xff]
    %v235 = vld [vmem:[#allocation2 + $0x3f8] sm:$0xff]
    %v236 = vld [vmem:[%s2] sm:$0xff]
    %v238 = vlaneseq
    %v239 = vshrl.u32 %v238, 7
    %v240 = vsub.s32 0, %v239
    %v241 = vrot.slane %v236, %v240
    %v242 = vlaneseq
    %v243 = vshrl.u32 %v242, 7
    %v244 = vsub.s32 1, %v243
    %v245 = vrot.slane %v236, %v244
    %v246 = vlaneseq
    %v247 = vshrl.u32 %v246, 7
    %v248 = vsub.s32 2, %v247
    %v249 = vrot.slane %v236, %v248
    %v250 = vlaneseq
    %v251 = vshrl.u32 %v250, 7
    %v252 = vsub.s32 3, %v251
    %v253 = vrot.slane %v236, %v252
    %v254 = vlaneseq
    %v255 = vshrl.u32 %v254, 7
    %v256 = vsub.s32 4, %v255
    %v257 = vrot.slane %v236, %v256
    %v258 = vlaneseq
    %v259 = vshrl.u32 %v258, 7
    %v260 = vsub.s32 5, %v259
    %v261 = vrot.slane %v236, %v260
    %v262 = vlaneseq
    %v263 = vshrl.u32 %v262, 7
    %v264 = vsub.s32 6, %v263
    %v265 = vrot.slane %v236, %v264
    %v266 = vlaneseq
    %v267 = vshrl.u32 %v266, 7
    %v268 = vsub.s32 7, %v267
    %v269 = vrot.slane %v236, %v268
    %v406 = vunpack.c.l.b16 %v108
    %v407 = vunpack.c.h.b16 %v108
    %v408 = vunpack.c.l.b16 %v109
    %v409 = vunpack.c.h.b16 %v109
    %v410 = vunpack.c.l.b16 %v110
    %v411 = vunpack.c.h.b16 %v110
    %v412 = vunpack.c.l.b16 %v111
    %v413 = vunpack.c.h.b16 %v111
    %v414 = vunpack.c.l.b16 %v112
    %v415 = vunpack.c.h.b16 %v112
    %v416 = vunpack.c.l.b16 %v113
    %v417 = vunpack.c.h.b16 %v113
    %v418 = vunpack.c.l.b16 %v114
    %v419 = vunpack.c.h.b16 %v114
    %v420 = vunpack.c.l.b16 %v115
    %v421 = vunpack.c.h.b16 %v115
    %v422 = vunpack.c.l.b16 %v116
    %v423 = vunpack.c.h.b16 %v116
    %v424 = vunpack.c.l.b16 %v117
    %v425 = vunpack.c.h.b16 %v117
    %v426 = vunpack.c.l.b16 %v118
    %v427 = vunpack.c.h.b16 %v118
    %v428 = vunpack.c.l.b16 %v119
    %v429 = vunpack.c.h.b16 %v119
    %v430 = vunpack.c.l.b16 %v120
    %v431 = vunpack.c.h.b16 %v120
    %v432 = vunpack.c.l.b16 %v121
    %v433 = vunpack.c.h.b16 %v121
    %v434 = vunpack.c.l.b16 %v122
    %v435 = vunpack.c.h.b16 %v122
    %v436 = vunpack.c.l.b16 %v123
    %v437 = vunpack.c.h.b16 %v123
    %v438 = vunpack.c.l.b16 %v124
    %v439 = vunpack.c.h.b16 %v124
    %v440 = vunpack.c.l.b16 %v125
    %v441 = vunpack.c.h.b16 %v125
    %v442 = vunpack.c.l.b16 %v126
    %v443 = vunpack.c.h.b16 %v126
    %v444 = vunpack.c.l.b16 %v127
    %v445 = vunpack.c.h.b16 %v127
    %v446 = vunpack.c.l.b16 %v128
    %v447 = vunpack.c.h.b16 %v128
    %v448 = vunpack.c.l.b16 %v129
    %v449 = vunpack.c.h.b16 %v129
    %v450 = vunpack.c.l.b16 %v130
    %v451 = vunpack.c.h.b16 %v130
    %v452 = vunpack.c.l.b16 %v131
    %v453 = vunpack.c.h.b16 %v131
    %v454 = vunpack.c.l.b16 %v132
    %v455 = vunpack.c.h.b16 %v132
    %v456 = vunpack.c.l.b16 %v133
    %v457 = vunpack.c.h.b16 %v133
    %v458 = vunpack.c.l.b16 %v134
    %v459 = vunpack.c.h.b16 %v134
    %v460 = vunpack.c.l.b16 %v135
    %v461 = vunpack.c.h.b16 %v135
    %v462 = vunpack.c.l.b16 %v136
    %v463 = vunpack.c.h.b16 %v136
    %v464 = vunpack.c.l.b16 %v137
    %v465 = vunpack.c.h.b16 %v137
    %v466 = vunpack.c.l.b16 %v138
    %v467 = vunpack.c.h.b16 %v138
    %v468 = vunpack.c.l.b16 %v139
    %v469 = vunpack.c.h.b16 %v139
    %v470 = vunpack.c.l.b16 %v140
    %v471 = vunpack.c.h.b16 %v140
    %v472 = vunpack.c.l.b16 %v141
    %v473 = vunpack.c.h.b16 %v141
    %v474 = vunpack.c.l.b16 %v142
    %v475 = vunpack.c.h.b16 %v142
    %v476 = vunpack.c.l.b16 %v143
    %v477 = vunpack.c.h.b16 %v143
    %v478 = vunpack.c.l.b16 %v144
    %v479 = vunpack.c.h.b16 %v144
    %v480 = vunpack.c.l.b16 %v145
    %v481 = vunpack.c.h.b16 %v145
    %v482 = vunpack.c.l.b16 %v146
    %v483 = vunpack.c.h.b16 %v146
    %v484 = vunpack.c.l.b16 %v147
    %v485 = vunpack.c.h.b16 %v147
    %v486 = vunpack.c.l.b16 %v148
    %v487 = vunpack.c.h.b16 %v148
    %v488 = vunpack.c.l.b16 %v149
    %v489 = vunpack.c.h.b16 %v149
    %v490 = vunpack.c.l.b16 %v150
    %v491 = vunpack.c.h.b16 %v150
    %v492 = vunpack.c.l.b16 %v151
    %v493 = vunpack.c.h.b16 %v151
    %v494 = vunpack.c.l.b16 %v152
    %v495 = vunpack.c.h.b16 %v152
    %v496 = vunpack.c.l.b16 %v153
    %v497 = vunpack.c.h.b16 %v153
    %v498 = vunpack.c.l.b16 %v154
    %v499 = vunpack.c.h.b16 %v154
    %v500 = vunpack.c.l.b16 %v155
    %v501 = vunpack.c.h.b16 %v155
    %v502 = vunpack.c.l.b16 %v156
    %v503 = vunpack.c.h.b16 %v156
    %v504 = vunpack.c.l.b16 %v157
    %v505 = vunpack.c.h.b16 %v157
    %v506 = vunpack.c.l.b16 %v158
    %v507 = vunpack.c.h.b16 %v158
    %v508 = vunpack.c.l.b16 %v159
    %v509 = vunpack.c.h.b16 %v159
    %v510 = vunpack.c.l.b16 %v160
    %v511 = vunpack.c.h.b16 %v160
    %v512 = vunpack.c.l.b16 %v161
    %v513 = vunpack.c.h.b16 %v161
    %v514 = vunpack.c.l.b16 %v162
    %v515 = vunpack.c.h.b16 %v162
    %v516 = vunpack.c.l.b16 %v163
    %v517 = vunpack.c.h.b16 %v163
    %v518 = vunpack.c.l.b16 %v164
    %v519 = vunpack.c.h.b16 %v164
    %v520 = vunpack.c.l.b16 %v165
    %v521 = vunpack.c.h.b16 %v165
    %v522 = vunpack.c.l.b16 %v166
    %v523 = vunpack.c.h.b16 %v166
    %v524 = vunpack.c.l.b16 %v167
    %v525 = vunpack.c.h.b16 %v167
    %v526 = vunpack.c.l.b16 %v168
    %v527 = vunpack.c.h.b16 %v168
    %v528 = vunpack.c.l.b16 %v169
    %v529 = vunpack.c.h.b16 %v169
    %v530 = vunpack.c.l.b16 %v170
    %v531 = vunpack.c.h.b16 %v170
    %v532 = vunpack.c.l.b16 %v171
    %v533 = vunpack.c.h.b16 %v171
    %v534 = vunpack.c.l.b16 %v172
    %v535 = vunpack.c.h.b16 %v172
    %v536 = vunpack.c.l.b16 %v173
    %v537 = vunpack.c.h.b16 %v173
    %v538 = vunpack.c.l.b16 %v174
    %v539 = vunpack.c.h.b16 %v174
    %v540 = vunpack.c.l.b16 %v175
    %v541 = vunpack.c.h.b16 %v175
    %v542 = vunpack.c.l.b16 %v176
    %v543 = vunpack.c.h.b16 %v176
    %v544 = vunpack.c.l.b16 %v177
    %v545 = vunpack.c.h.b16 %v177
    %v546 = vunpack.c.l.b16 %v178
    %v547 = vunpack.c.h.b16 %v178
    %v548 = vunpack.c.l.b16 %v179
    %v549 = vunpack.c.h.b16 %v179
    %v550 = vunpack.c.l.b16 %v180
    %v551 = vunpack.c.h.b16 %v180
    %v552 = vunpack.c.l.b16 %v181
    %v553 = vunpack.c.h.b16 %v181
    %v554 = vunpack.c.l.b16 %v182
    %v555 = vunpack.c.h.b16 %v182
    %v556 = vunpack.c.l.b16 %v183
    %v557 = vunpack.c.h.b16 %v183
    %v558 = vunpack.c.l.b16 %v184
    %v559 = vunpack.c.h.b16 %v184
    %v560 = vunpack.c.l.b16 %v185
    %v561 = vunpack.c.h.b16 %v185
    %v562 = vunpack.c.l.b16 %v186
    %v563 = vunpack.c.h.b16 %v186
    %v564 = vunpack.c.l.b16 %v187
    %v565 = vunpack.c.h.b16 %v187
    %v566 = vunpack.c.l.b16 %v188
    %v567 = vunpack.c.h.b16 %v188
    %v568 = vunpack.c.l.b16 %v189
    %v569 = vunpack.c.h.b16 %v189
    %v570 = vunpack.c.l.b16 %v190
    %v571 = vunpack.c.h.b16 %v190
    %v572 = vunpack.c.l.b16 %v191
    %v573 = vunpack.c.h.b16 %v191
    %v574 = vunpack.c.l.b16 %v192
    %v575 = vunpack.c.h.b16 %v192
    %v576 = vunpack.c.l.b16 %v193
    %v577 = vunpack.c.h.b16 %v193
    %v578 = vunpack.c.l.b16 %v194
    %v579 = vunpack.c.h.b16 %v194
    %v580 = vunpack.c.l.b16 %v195
    %v581 = vunpack.c.h.b16 %v195
    %v582 = vunpack.c.l.b16 %v196
    %v583 = vunpack.c.h.b16 %v196
    %v584 = vunpack.c.l.b16 %v197
    %v585 = vunpack.c.h.b16 %v197
    %v586 = vunpack.c.l.b16 %v198
    %v587 = vunpack.c.h.b16 %v198
    %v588 = vunpack.c.l.b16 %v199
    %v589 = vunpack.c.h.b16 %v199
    %v590 = vunpack.c.l.b16 %v200
    %v591 = vunpack.c.h.b16 %v200
    %v592 = vunpack.c.l.b16 %v201
    %v593 = vunpack.c.h.b16 %v201
    %v594 = vunpack.c.l.b16 %v202
    %v595 = vunpack.c.h.b16 %v202
    %v596 = vunpack.c.l.b16 %v203
    %v597 = vunpack.c.h.b16 %v203
    %v598 = vunpack.c.l.b16 %v204
    %v599 = vunpack.c.h.b16 %v204
    %v600 = vunpack.c.l.b16 %v205
    %v601 = vunpack.c.h.b16 %v205
    %v602 = vunpack.c.l.b16 %v206
    %v603 = vunpack.c.h.b16 %v206
    %v604 = vunpack.c.l.b16 %v207
    %v605 = vunpack.c.h.b16 %v207
    %v606 = vunpack.c.l.b16 %v208
    %v607 = vunpack.c.h.b16 %v208
    %v608 = vunpack.c.l.b16 %v209
    %v609 = vunpack.c.h.b16 %v209
    %v610 = vunpack.c.l.b16 %v210
    %v611 = vunpack.c.h.b16 %v210
    %v612 = vunpack.c.l.b16 %v211
    %v613 = vunpack.c.h.b16 %v211
    %v614 = vunpack.c.l.b16 %v212
    %v615 = vunpack.c.h.b16 %v212
    %v616 = vunpack.c.l.b16 %v213
    %v617 = vunpack.c.h.b16 %v213
    %v618 = vunpack.c.l.b16 %v214
    %v619 = vunpack.c.h.b16 %v214
    %v620 = vunpack.c.l.b16 %v215
    %v621 = vunpack.c.h.b16 %v215
    %v622 = vunpack.c.l.b16 %v216
    %v623 = vunpack.c.h.b16 %v216
    %v624 = vunpack.c.l.b16 %v217
    %v625 = vunpack.c.h.b16 %v217
    %v626 = vunpack.c.l.b16 %v218
    %v627 = vunpack.c.h.b16 %v218
    %v628 = vunpack.c.l.b16 %v219
    %v629 = vunpack.c.h.b16 %v219
    %v630 = vunpack.c.l.b16 %v220
    %v631 = vunpack.c.h.b16 %v220
    %v632 = vunpack.c.l.b16 %v221
    %v633 = vunpack.c.h.b16 %v221
    %v634 = vunpack.c.l.b16 %v222
    %v635 = vunpack.c.h.b16 %v222
    %v636 = vunpack.c.l.b16 %v223
    %v637 = vunpack.c.h.b16 %v223
    %v638 = vunpack.c.l.b16 %v224
    %v639 = vunpack.c.h.b16 %v224
    %v640 = vunpack.c.l.b16 %v225
    %v641 = vunpack.c.h.b16 %v225
    %v642 = vunpack.c.l.b16 %v226
    %v643 = vunpack.c.h.b16 %v226
    %v644 = vunpack.c.l.b16 %v227
    %v645 = vunpack.c.h.b16 %v227
    %v646 = vunpack.c.l.b16 %v228
    %v647 = vunpack.c.h.b16 %v228
    %v648 = vunpack.c.l.b16 %v229
    %v649 = vunpack.c.h.b16 %v229
    %v650 = vunpack.c.l.b16 %v230
    %v651 = vunpack.c.h.b16 %v230
    %v652 = vunpack.c.l.b16 %v231
    %v653 = vunpack.c.h.b16 %v231
    %v654 = vunpack.c.l.b16 %v232
    %v655 = vunpack.c.h.b16 %v232
    %v656 = vunpack.c.l.b16 %v233
    %v657 = vunpack.c.h.b16 %v233
    %v658 = vunpack.c.l.b16 %v234
    %v659 = vunpack.c.h.b16 %v234
    %v660 = vunpack.c.l.b16 %v235
    %v661 = vunpack.c.h.b16 %v235
    %v662 = vpack.c.b16 %v414, %v406
    %v663 = vpack.c.b16 %v415, %v407
    %v664 = vpack.c.b16 %v416, %v408
    %v665 = vpack.c.b16 %v417, %v409
    %v666 = vpack.c.b16 %v418, %v410
    %v667 = vpack.c.b16 %v419, %v411
    %v668 = vpack.c.b16 %v420, %v412
    %v669 = vpack.c.b16 %v421, %v413
    %v670 = vpack.c.b16 %v430, %v422
    %v671 = vpack.c.b16 %v431, %v423
    %v672 = vpack.c.b16 %v432, %v424
    %v673 = vpack.c.b16 %v433, %v425
    %v674 = vpack.c.b16 %v434, %v426
    %v675 = vpack.c.b16 %v435, %v427
    %v676 = vpack.c.b16 %v436, %v428
    %v677 = vpack.c.b16 %v437, %v429
    %v678 = vpack.c.b16 %v446, %v438
    %v679 = vpack.c.b16 %v447, %v439
    %v680 = vpack.c.b16 %v448, %v440
    %v681 = vpack.c.b16 %v449, %v441
    %v682 = vpack.c.b16 %v450, %v442
    %v683 = vpack.c.b16 %v451, %v443
    %v684 = vpack.c.b16 %v452, %v444
    %v685 = vpack.c.b16 %v453, %v445
    %v686 = vpack.c.b16 %v462, %v454
    %v687 = vpack.c.b16 %v463, %v455
    %v688 = vpack.c.b16 %v464, %v456
    %v689 = vpack.c.b16 %v465, %v457
    %v690 = vpack.c.b16 %v466, %v458
    %v691 = vpack.c.b16 %v467, %v459
    %v692 = vpack.c.b16 %v468, %v460
    %v693 = vpack.c.b16 %v469, %v461
    %v694 = vpack.c.b16 %v478, %v470
    %v695 = vpack.c.b16 %v479, %v471
    %v696 = vpack.c.b16 %v480, %v472
    %v697 = vpack.c.b16 %v481, %v473
    %v698 = vpack.c.b16 %v482, %v474
    %v699 = vpack.c.b16 %v483, %v475
    %v700 = vpack.c.b16 %v484, %v476
    %v701 = vpack.c.b16 %v485, %v477
    %v702 = vpack.c.b16 %v494, %v486
    %v703 = vpack.c.b16 %v495, %v487
    %v704 = vpack.c.b16 %v496, %v488
    %v705 = vpack.c.b16 %v497, %v489
    %v706 = vpack.c.b16 %v498, %v490
    %v707 = vpack.c.b16 %v499, %v491
    %v708 = vpack.c.b16 %v500, %v492
    %v709 = vpack.c.b16 %v501, %v493
    %v710 = vpack.c.b16 %v510, %v502
    %v711 = vpack.c.b16 %v511, %v503
    %v712 = vpack.c.b16 %v512, %v504
    %v713 = vpack.c.b16 %v513, %v505
    %v714 = vpack.c.b16 %v514, %v506
    %v715 = vpack.c.b16 %v515, %v507
    %v716 = vpack.c.b16 %v516, %v508
    %v717 = vpack.c.b16 %v517, %v509
    %v718 = vpack.c.b16 %v526, %v518
    %v719 = vpack.c.b16 %v527, %v519
    %v720 = vpack.c.b16 %v528, %v520
    %v721 = vpack.c.b16 %v529, %v521
    %v722 = vpack.c.b16 %v530, %v522
    %v723 = vpack.c.b16 %v531, %v523
    %v724 = vpack.c.b16 %v532, %v524
    %v725 = vpack.c.b16 %v533, %v525
    %v726 = vpack.c.b16 %v542, %v534
    %v727 = vpack.c.b16 %v543, %v535
    %v728 = vpack.c.b16 %v544, %v536
    %v729 = vpack.c.b16 %v545, %v537
    %v730 = vpack.c.b16 %v546, %v538
    %v731 = vpack.c.b16 %v547, %v539
    %v732 = vpack.c.b16 %v548, %v540
    %v733 = vpack.c.b16 %v549, %v541
    %v734 = vpack.c.b16 %v558, %v550
    %v735 = vpack.c.b16 %v559, %v551
    %v736 = vpack.c.b16 %v560, %v552
    %v737 = vpack.c.b16 %v561, %v553
    %v738 = vpack.c.b16 %v562, %v554
    %v739 = vpack.c.b16 %v563, %v555
    %v740 = vpack.c.b16 %v564, %v556
    %v741 = vpack.c.b16 %v565, %v557
    %v742 = vpack.c.b16 %v574, %v566
    %v743 = vpack.c.b16 %v575, %v567
    %v744 = vpack.c.b16 %v576, %v568
    %v745 = vpack.c.b16 %v577, %v569
    %v746 = vpack.c.b16 %v578, %v570
    %v747 = vpack.c.b16 %v579, %v571
    %v748 = vpack.c.b16 %v580, %v572
    %v749 = vpack.c.b16 %v581, %v573
    %v750 = vpack.c.b16 %v590, %v582
    %v751 = vpack.c.b16 %v591, %v583
    %v752 = vpack.c.b16 %v592, %v584
    %v753 = vpack.c.b16 %v593, %v585
    %v754 = vpack.c.b16 %v594, %v586
    %v755 = vpack.c.b16 %v595, %v587
    %v756 = vpack.c.b16 %v596, %v588
    %v757 = vpack.c.b16 %v597, %v589
    %v758 = vpack.c.b16 %v606, %v598
    %v759 = vpack.c.b16 %v607, %v599
    %v760 = vpack.c.b16 %v608, %v600
    %v761 = vpack.c.b16 %v609, %v601
    %v762 = vpack.c.b16 %v610, %v602
    %v763 = vpack.c.b16 %v611, %v603
    %v764 = vpack.c.b16 %v612, %v604
    %v765 = vpack.c.b16 %v613, %v605
    %v766 = vpack.c.b16 %v622, %v614
    %v767 = vpack.c.b16 %v623, %v615
    %v768 = vpack.c.b16 %v624, %v616
    %v769 = vpack.c.b16 %v625, %v617
    %v770 = vpack.c.b16 %v626, %v618
    %v771 = vpack.c.b16 %v627, %v619
    %v772 = vpack.c.b16 %v628, %v620
    %v773 = vpack.c.b16 %v629, %v621
    %v774 = vpack.c.b16 %v638, %v630
    %v775 = vpack.c.b16 %v639, %v631
    %v776 = vpack.c.b16 %v640, %v632
    %v777 = vpack.c.b16 %v641, %v633
    %v778 = vpack.c.b16 %v642, %v634
    %v779 = vpack.c.b16 %v643, %v635
    %v780 = vpack.c.b16 %v644, %v636
    %v781 = vpack.c.b16 %v645, %v637
    %v782 = vpack.c.b16 %v654, %v646
    %v783 = vpack.c.b16 %v655, %v647
    %v784 = vpack.c.b16 %v656, %v648
    %v785 = vpack.c.b16 %v657, %v649
    %v786 = vpack.c.b16 %v658, %v650
    %v787 = vpack.c.b16 %v659, %v651
    %v788 = vpack.c.b16 %v660, %v652
    %v789 = vpack.c.b16 %v661, %v653
    %918 = vmatprep.subr.bf16.mxu0 %v719
    %919 = vmatpush1.bf16.msra.mxu0 %v718
    %920 = vmatprep.subr.bf16.mxu0 %v711
    %921 = vmatpush1.bf16.msra.mxu0 %v710
    %922 = vmatprep.subr.bf16.mxu0 %v703
    %923 = vmatpush1.bf16.msra.mxu0 %v702
    %924 = vmatprep.subr.bf16.mxu0 %v695
    %925 = vmatpush1.bf16.msra.mxu0 %v694
    %926 = vmatprep.subr.bf16.mxu0 %v687
    %927 = vmatpush1.bf16.msra.mxu0 %v686
    %928 = vmatprep.subr.bf16.mxu0 %v679
    %929 = vmatpush1.bf16.msra.mxu0 %v678
    %930 = vmatprep.subr.bf16.mxu0 %v671
    %931 = vmatpush1.bf16.msra.mxu0 %v670
    %932 = vmatprep.subr.bf16.mxu0 %v663
    %933 = vmatpush1.bf16.msra.mxu0 %v662
    %934 = vmatprep.subr.bf16.mxu0 %v783
    %935 = vmatpush2.bf16.msra.mxu0 %v782
    %936 = vmatprep.subr.bf16.mxu0 %v775
    %937 = vmatpush2.bf16.msra.mxu0 %v774
    %938 = vmatprep.subr.bf16.mxu0 %v767
    %939 = vmatpush2.bf16.msra.mxu0 %v766
    %940 = vmatprep.subr.bf16.mxu0 %v759
    %941 = vmatpush2.bf16.msra.mxu0 %v758
    %942 = vmatprep.subr.bf16.mxu0 %v751
    %943 = vmatpush2.bf16.msra.mxu0 %v750
    %944 = vmatprep.subr.bf16.mxu0 %v743
    %945 = vmatpush2.bf16.msra.mxu0 %v742
    %946 = vmatprep.subr.bf16.mxu0 %v735
    %947 = vmatpush2.bf16.msra.mxu0 %v734
    %948 = vmatprep.subr.bf16.mxu0 %v727
    %949 = vmatpush2.bf16.msra.mxu0 %v726
    %950 = vmatprep.mubr.bf16.mxu0 %v107
    %951 = vmatmul.mubr.bf16.gmra.mxu0 %v106
    %v952 = vpop.f32.mrf.mxu0
    %v953 = vadd.f32 %v241, %v952
    %v954 = vpop.f32.mrf.mxu0
    %v955 = vadd.f32 %v245, %v954
    %v956 = vpop.f32.mrf.mxu0
    %v957 = vpop.f32.mrf.mxu0
    %958 = vdwg.mxu0
    %959 = vmatprep.subr.bf16.mxu0 %v721
    %960 = vmatpush1.bf16.msra.mxu0 %v720
    %961 = vmatprep.subr.bf16.mxu0 %v713
    %962 = vmatpush1.bf16.msra.mxu0 %v712
    %963 = vmatprep.subr.bf16.mxu0 %v705
    %964 = vmatpush1.bf16.msra.mxu0 %v704
    %965 = vmatprep.subr.bf16.mxu0 %v697
    %966 = vmatpush1.bf16.msra.mxu0 %v696
    %967 = vmatprep.subr.bf16.mxu0 %v689
    %968 = vmatpush1.bf16.msra.mxu0 %v688
    %969 = vmatprep.subr.bf16.mxu0 %v681
    %970 = vmatpush1.bf16.msra.mxu0 %v680
    %971 = vmatprep.subr.bf16.mxu0 %v673
    %972 = vmatpush1.bf16.msra.mxu0 %v672
    %973 = vmatprep.subr.bf16.mxu0 %v665
    %974 = vmatpush1.bf16.msra.mxu0 %v664
    %975 = vmatprep.subr.bf16.mxu0 %v785
    %976 = vmatpush2.bf16.msra.mxu0 %v784
    %977 = vmatprep.subr.bf16.mxu0 %v777
    %978 = vmatpush2.bf16.msra.mxu0 %v776
    %979 = vmatprep.subr.bf16.mxu0 %v769
    %980 = vmatpush2.bf16.msra.mxu0 %v768
    %981 = vmatprep.subr.bf16.mxu0 %v761
    %982 = vmatpush2.bf16.msra.mxu0 %v760
    %983 = vmatprep.subr.bf16.mxu0 %v753
    %984 = vmatpush2.bf16.msra.mxu0 %v752
    %985 = vmatprep.subr.bf16.mxu0 %v745
    %986 = vmatpush2.bf16.msra.mxu0 %v744
    %987 = vmatprep.subr.bf16.mxu0 %v737
    %988 = vmatpush2.bf16.msra.mxu0 %v736
    %989 = vmatprep.subr.bf16.mxu0 %v729
    %990 = vmatpush2.bf16.msra.mxu0 %v728
    %991 = vmatprep.mubr.bf16.mxu0 %v107
    %992 = vmatmul.mubr.bf16.gmra.mxu0 %v106
    %v993 = vpop.f32.mrf.mxu0
    %v994 = vadd.f32 %v249, %v993
    %v995 = vpop.f32.mrf.mxu0
    %v996 = vadd.f32 %v253, %v995
    %v997 = vpop.f32.mrf.mxu0
    %v998 = vpop.f32.mrf.mxu0
    %999 = vdwg.mxu0
    %1000 = vmatprep.subr.bf16.mxu0 %v723
    %1001 = vmatpush1.bf16.msra.mxu0 %v722
    %1002 = vmatprep.subr.bf16.mxu0 %v715
    %1003 = vmatpush1.bf16.msra.mxu0 %v714
    %1004 = vmatprep.subr.bf16.mxu0 %v707
    %1005 = vmatpush1.bf16.msra.mxu0 %v706
    %1006 = vmatprep.subr.bf16.mxu0 %v699
    %1007 = vmatpush1.bf16.msra.mxu0 %v698
    %1008 = vmatprep.subr.bf16.mxu0 %v691
    %1009 = vmatpush1.bf16.msra.mxu0 %v690
    %1010 = vmatprep.subr.bf16.mxu0 %v683
    %1011 = vmatpush1.bf16.msra.mxu0 %v682
    %1012 = vmatprep.subr.bf16.mxu0 %v675
    %1013 = vmatpush1.bf16.msra.mxu0 %v674
    %1014 = vmatprep.subr.bf16.mxu0 %v667
    %1015 = vmatpush1.bf16.msra.mxu0 %v666
    %1016 = vmatprep.subr.bf16.mxu0 %v787
    %1017 = vmatpush2.bf16.msra.mxu0 %v786
    %1018 = vmatprep.subr.bf16.mxu0 %v779
    %1019 = vmatpush2.bf16.msra.mxu0 %v778
    %1020 = vmatprep.subr.bf16.mxu0 %v771
    %1021 = vmatpush2.bf16.msra.mxu0 %v770
    %1022 = vmatprep.subr.bf16.mxu0 %v763
    %1023 = vmatpush2.bf16.msra.mxu0 %v762
    %1024 = vmatprep.subr.bf16.mxu0 %v755
    %1025 = vmatpush2.bf16.msra.mxu0 %v754
    %1026 = vmatprep.subr.bf16.mxu0 %v747
    %1027 = vmatpush2.bf16.msra.mxu0 %v746
    %1028 = vmatprep.subr.bf16.mxu0 %v739
    %1029 = vmatpush2.bf16.msra.mxu0 %v738
    %1030 = vmatprep.subr.bf16.mxu0 %v731
    %1031 = vmatpush2.bf16.msra.mxu0 %v730
    %1032 = vmatprep.mubr.bf16.mxu0 %v107
    %1033 = vmatmul.mubr.bf16.gmra.mxu0 %v106
    %v1034 = vpop.f32.mrf.mxu0
    %v1035 = vadd.f32 %v257, %v1034
    %v1036 = vpop.f32.mrf.mxu0
    %v1037 = vadd.f32 %v261, %v1036
    %v1038 = vpop.f32.mrf.mxu0
    %v1039 = vpop.f32.mrf.mxu0
    %1040 = vdwg.mxu0
    %1041 = vmatprep.subr.bf16.mxu0 %v725
    %1042 = vmatpush1.bf16.msra.mxu0 %v724
    %1043 = vmatprep.subr.bf16.mxu0 %v717
    %1044 = vmatpush1.bf16.msra.mxu0 %v716
    %1045 = vmatprep.subr.bf16.mxu0 %v709
    %1046 = vmatpush1.bf16.msra.mxu0 %v708
    %1047 = vmatprep.subr.bf16.mxu0 %v701
    %1048 = vmatpush1.bf16.msra.mxu0 %v700
    %1049 = vmatprep.subr.bf16.mxu0 %v693
    %1050 = vmatpush1.bf16.msra.mxu0 %v692
    %1051 = vmatprep.subr.bf16.mxu0 %v685
    %1052 = vmatpush1.bf16.msra.mxu0 %v684
    %1053 = vmatprep.subr.bf16.mxu0 %v677
    %1054 = vmatpush1.bf16.msra.mxu0 %v676
    %1055 = vmatprep.subr.bf16.mxu0 %v669
    %1056 = vmatpush1.bf16.msra.mxu0 %v668
    %1057 = vmatprep.subr.bf16.mxu0 %v789
    %1058 = vmatpush2.bf16.msra.mxu0 %v788
    %1059 = vmatprep.subr.bf16.mxu0 %v781
    %1060 = vmatpush2.bf16.msra.mxu0 %v780
    %1061 = vmatprep.subr.bf16.mxu0 %v773
    %1062 = vmatpush2.bf16.msra.mxu0 %v772
    %1063 = vmatprep.subr.bf16.mxu0 %v765
    %1064 = vmatpush2.bf16.msra.mxu0 %v764
    %1065 = vmatprep.subr.bf16.mxu0 %v757
    %1066 = vmatpush2.bf16.msra.mxu0 %v756
    %1067 = vmatprep.subr.bf16.mxu0 %v749
    %1068 = vmatpush2.bf16.msra.mxu0 %v748
    %1069 = vmatprep.subr.bf16.mxu0 %v741
    %1070 = vmatpush2.bf16.msra.mxu0 %v740
    %1071 = vmatprep.subr.bf16.mxu0 %v733
    %1072 = vmatpush2.bf16.msra.mxu0 %v732
    %1073 = vmatprep.mubr.bf16.mxu0 %v107
    %1074 = vmatmul.mubr.bf16.gmra.mxu0 %v106
    %v1075 = vpop.f32.mrf.mxu0
    %v1076 = vadd.f32 %v265, %v1075
    %v1077 = vpop.f32.mrf.mxu0
    %v1078 = vadd.f32 %v269, %v1077
    %v1079 = vpop.f32.mrf.mxu0
    %v1080 = vpop.f32.mrf.mxu0
    %1081 = vdwg.mxu0
    %v1082 = vmax.f32 %v953, 0.0
    %v1083 = vmax.f32 %v955, 0.0
    %v1084 = vmax.f32 %v994, 0.0
    %v1085 = vmax.f32 %v996, 0.0
    %v1086 = vmax.f32 %v1035, 0.0
    %v1087 = vmax.f32 %v1037, 0.0
    %v1088 = vmax.f32 %v1076, 0.0
    %v1089 = vmax.f32 %v1078, 0.0
    %v1090 = vpack.c.bf16 %v1082, %v1082
    %v1091 = vpack.c.bf16 %v1083, %v1083
    %v1092 = vpack.c.bf16 %v1084, %v1084
    %v1093 = vpack.c.bf16 %v1085, %v1085
    %v1094 = vpack.c.bf16 %v1086, %v1086
    %v1095 = vpack.c.bf16 %v1087, %v1087
    %v1096 = vpack.c.bf16 %v1088, %v1088
    %v1097 = vpack.c.bf16 %v1089, %v1089
    %v1098 = vld [vmem:[#allocation5] sm:$0xff]
    %v1099 = vld [vmem:[#allocation5 + $0x8] sm:$0xff]
    %v1100 = vld [vmem:[#allocation5 + $0x10] sm:$0xff]
    %v1101 = vld [vmem:[#allocation5 + $0x18] sm:$0xff]
    %v1102 = vld [vmem:[#allocation5 + $0x20] sm:$0xff]
    %v1103 = vld [vmem:[#allocation5 + $0x28] sm:$0xff]
    %v1104 = vld [vmem:[#allocation5 + $0x30] sm:$0xff]
    %v1105 = vld [vmem:[#allocation5 + $0x38] sm:$0xff]
    %v1106 = vld [vmem:[#allocation5 + $0x40] sm:$0xff]
    %v1107 = vld [vmem:[#allocation5 + $0x48] sm:$0xff]
    %v1108 = vld [vmem:[#allocation5 + $0x50] sm:$0xff]
    %v1109 = vld [vmem:[#allocation5 + $0x58] sm:$0xff]
    %v1110 = vld [vmem:[#allocation5 + $0x60] sm:$0xff]
    %v1111 = vld [vmem:[#allocation5 + $0x68] sm:$0xff]
    %v1112 = vld [vmem:[#allocation5 + $0x70] sm:$0xff]
    %v1113 = vld [vmem:[#allocation5 + $0x78] sm:$0xff]
    %v1114 = vld [vmem:[#allocation5 + $0x80] sm:$0xff]
    %v1115 = vld [vmem:[#allocation5 + $0x88] sm:$0xff]
    %v1116 = vld [vmem:[#allocation5 + $0x90] sm:$0xff]
    %v1117 = vld [vmem:[#allocation5 + $0x98] sm:$0xff]
    %v1118 = vld [vmem:[#allocation5 + $0xa0] sm:$0xff]
    %v1119 = vld [vmem:[#allocation5 + $0xa8] sm:$0xff]
    %v1120 = vld [vmem:[#allocation5 + $0xb0] sm:$0xff]
    %v1121 = vld [vmem:[#allocation5 + $0xb8] sm:$0xff]
    %v1122 = vld [vmem:[#allocation5 + $0xc0] sm:$0xff]
    %v1123 = vld [vmem:[#allocation5 + $0xc8] sm:$0xff]
    %v1124 = vld [vmem:[#allocation5 + $0xd0] sm:$0xff]
    %v1125 = vld [vmem:[#allocation5 + $0xd8] sm:$0xff]
    %v1126 = vld [vmem:[#allocation5 + $0xe0] sm:$0xff]
    %v1127 = vld [vmem:[#allocation5 + $0xe8] sm:$0xff]
    %v1128 = vld [vmem:[#allocation5 + $0xf0] sm:$0xff]
    %v1129 = vld [vmem:[#allocation5 + $0xf8] sm:$0xff]
    %v1130 = vld [vmem:[#allocation5 + $0x100] sm:$0xff]
    %v1131 = vld [vmem:[#allocation5 + $0x108] sm:$0xff]
    %v1132 = vld [vmem:[#allocation5 + $0x110] sm:$0xff]
    %v1133 = vld [vmem:[#allocation5 + $0x118] sm:$0xff]
    %v1134 = vld [vmem:[#allocation5 + $0x120] sm:$0xff]
    %v1135 = vld [vmem:[#allocation5 + $0x128] sm:$0xff]
    %v1136 = vld [vmem:[#allocation5 + $0x130] sm:$0xff]
    %v1137 = vld [vmem:[#allocation5 + $0x138] sm:$0xff]
    %v1138 = vld [vmem:[#allocation5 + $0x140] sm:$0xff]
    %v1139 = vld [vmem:[#allocation5 + $0x148] sm:$0xff]
    %v1140 = vld [vmem:[#allocation5 + $0x150] sm:$0xff]
    %v1141 = vld [vmem:[#allocation5 + $0x158] sm:$0xff]
    %v1142 = vld [vmem:[#allocation5 + $0x160] sm:$0xff]
    %v1143 = vld [vmem:[#allocation5 + $0x168] sm:$0xff]
    %v1144 = vld [vmem:[#allocation5 + $0x170] sm:$0xff]
    %v1145 = vld [vmem:[#allocation5 + $0x178] sm:$0xff]
    %v1146 = vld [vmem:[#allocation5 + $0x180] sm:$0xff]
    %v1147 = vld [vmem:[#allocation5 + $0x188] sm:$0xff]
    %v1148 = vld [vmem:[#allocation5 + $0x190] sm:$0xff]
    %v1149 = vld [vmem:[#allocation5 + $0x198] sm:$0xff]
    %v1150 = vld [vmem:[#allocation5 + $0x1a0] sm:$0xff]
    %v1151 = vld [vmem:[#allocation5 + $0x1a8] sm:$0xff]
    %v1152 = vld [vmem:[#allocation5 + $0x1b0] sm:$0xff]
    %v1153 = vld [vmem:[#allocation5 + $0x1b8] sm:$0xff]
    %v1154 = vld [vmem:[#allocation5 + $0x1c0] sm:$0xff]
    %v1155 = vld [vmem:[#allocation5 + $0x1c8] sm:$0xff]
    %v1156 = vld [vmem:[#allocation5 + $0x1d0] sm:$0xff]
    %v1157 = vld [vmem:[#allocation5 + $0x1d8] sm:$0xff]
    %v1158 = vld [vmem:[#allocation5 + $0x1e0] sm:$0xff]
    %v1159 = vld [vmem:[#allocation5 + $0x1e8] sm:$0xff]
    %v1160 = vld [vmem:[#allocation5 + $0x1f0] sm:$0xff]
    %v1161 = vld [vmem:[#allocation5 + $0x1f8] sm:$0xff]
    %v1162 = vld [vmem:[#allocation5 + $0x200] sm:$0xff]
    %v1163 = vld [vmem:[#allocation5 + $0x208] sm:$0xff]
    %v1164 = vld [vmem:[#allocation5 + $0x210] sm:$0xff]
    %v1165 = vld [vmem:[#allocation5 + $0x218] sm:$0xff]
    %v1166 = vld [vmem:[#allocation5 + $0x220] sm:$0xff]
    %v1167 = vld [vmem:[#allocation5 + $0x228] sm:$0xff]
    %v1168 = vld [vmem:[#allocation5 + $0x230] sm:$0xff]
    %v1169 = vld [vmem:[#allocation5 + $0x238] sm:$0xff]
    %v1170 = vld [vmem:[#allocation5 + $0x240] sm:$0xff]
    %v1171 = vld [vmem:[#allocation5 + $0x248] sm:$0xff]
    %v1172 = vld [vmem:[#allocation5 + $0x250] sm:$0xff]
    %v1173 = vld [vmem:[#allocation5 + $0x258] sm:$0xff]
    %v1174 = vld [vmem:[#allocation5 + $0x260] sm:$0xff]
    %v1175 = vld [vmem:[#allocation5 + $0x268] sm:$0xff]
    %v1176 = vld [vmem:[#allocation5 + $0x270] sm:$0xff]
    %v1177 = vld [vmem:[#allocation5 + $0x278] sm:$0xff]
    %v1178 = vld [vmem:[#allocation5 + $0x280] sm:$0xff]
    %v1179 = vld [vmem:[#allocation5 + $0x288] sm:$0xff]
    %v1180 = vld [vmem:[#allocation5 + $0x290] sm:$0xff]
    %v1181 = vld [vmem:[#allocation5 + $0x298] sm:$0xff]
    %v1182 = vld [vmem:[#allocation5 + $0x2a0] sm:$0xff]
    %v1183 = vld [vmem:[#allocation5 + $0x2a8] sm:$0xff]
    %v1184 = vld [vmem:[#allocation5 + $0x2b0] sm:$0xff]
    %v1185 = vld [vmem:[#allocation5 + $0x2b8] sm:$0xff]
    %v1186 = vld [vmem:[#allocation5 + $0x2c0] sm:$0xff]
    %v1187 = vld [vmem:[#allocation5 + $0x2c8] sm:$0xff]
    %v1188 = vld [vmem:[#allocation5 + $0x2d0] sm:$0xff]
    %v1189 = vld [vmem:[#allocation5 + $0x2d8] sm:$0xff]
    %v1190 = vld [vmem:[#allocation5 + $0x2e0] sm:$0xff]
    %v1191 = vld [vmem:[#allocation5 + $0x2e8] sm:$0xff]
    %v1192 = vld [vmem:[#allocation5 + $0x2f0] sm:$0xff]
    %v1193 = vld [vmem:[#allocation5 + $0x2f8] sm:$0xff]
    %v1194 = vld [vmem:[#allocation5 + $0x300] sm:$0xff]
    %v1195 = vld [vmem:[#allocation5 + $0x308] sm:$0xff]
    %v1196 = vld [vmem:[#allocation5 + $0x310] sm:$0xff]
    %v1197 = vld [vmem:[#allocation5 + $0x318] sm:$0xff]
    %v1198 = vld [vmem:[#allocation5 + $0x320] sm:$0xff]
    %v1199 = vld [vmem:[#allocation5 + $0x328] sm:$0xff]
    %v1200 = vld [vmem:[#allocation5 + $0x330] sm:$0xff]
    %v1201 = vld [vmem:[#allocation5 + $0x338] sm:$0xff]
    %v1202 = vld [vmem:[#allocation5 + $0x340] sm:$0xff]
    %v1203 = vld [vmem:[#allocation5 + $0x348] sm:$0xff]
    %v1204 = vld [vmem:[#allocation5 + $0x350] sm:$0xff]
    %v1205 = vld [vmem:[#allocation5 + $0x358] sm:$0xff]
    %v1206 = vld [vmem:[#allocation5 + $0x360] sm:$0xff]
    %v1207 = vld [vmem:[#allocation5 + $0x368] sm:$0xff]
    %v1208 = vld [vmem:[#allocation5 + $0x370] sm:$0xff]
    %v1209 = vld [vmem:[#allocation5 + $0x378] sm:$0xff]
    %v1210 = vld [vmem:[#allocation5 + $0x380] sm:$0xff]
    %v1211 = vld [vmem:[#allocation5 + $0x388] sm:$0xff]
    %v1212 = vld [vmem:[#allocation5 + $0x390] sm:$0xff]
    %v1213 = vld [vmem:[#allocation5 + $0x398] sm:$0xff]
    %v1214 = vld [vmem:[#allocation5 + $0x3a0] sm:$0xff]
    %v1215 = vld [vmem:[#allocation5 + $0x3a8] sm:$0xff]
    %v1216 = vld [vmem:[#allocation5 + $0x3b0] sm:$0xff]
    %v1217 = vld [vmem:[#allocation5 + $0x3b8] sm:$0xff]
    %v1218 = vld [vmem:[#allocation5 + $0x3c0] sm:$0xff]
    %v1219 = vld [vmem:[#allocation5 + $0x3c8] sm:$0xff]
    %v1220 = vld [vmem:[#allocation5 + $0x3d0] sm:$0xff]
    %v1221 = vld [vmem:[#allocation5 + $0x3d8] sm:$0xff]
    %v1222 = vld [vmem:[#allocation5 + $0x3e0] sm:$0xff]
    %v1223 = vld [vmem:[#allocation5 + $0x3e8] sm:$0xff]
    %v1224 = vld [vmem:[#allocation5 + $0x3f0] sm:$0xff]
    %v1225 = vld [vmem:[#allocation5 + $0x3f8] sm:$0xff]
    %v1226 = vld [vmem:[#allocation5 + $0x400] sm:$0xff]
    %v1227 = vld [vmem:[#allocation5 + $0x408] sm:$0xff]
    %v1228 = vld [vmem:[#allocation5 + $0x410] sm:$0xff]
    %v1229 = vld [vmem:[#allocation5 + $0x418] sm:$0xff]
    %v1230 = vld [vmem:[#allocation5 + $0x420] sm:$0xff]
    %v1231 = vld [vmem:[#allocation5 + $0x428] sm:$0xff]
    %v1232 = vld [vmem:[#allocation5 + $0x430] sm:$0xff]
    %v1233 = vld [vmem:[#allocation5 + $0x438] sm:$0xff]
    %v1234 = vld [vmem:[#allocation5 + $0x440] sm:$0xff]
    %v1235 = vld [vmem:[#allocation5 + $0x448] sm:$0xff]
    %v1236 = vld [vmem:[#allocation5 + $0x450] sm:$0xff]
    %v1237 = vld [vmem:[#allocation5 + $0x458] sm:$0xff]
    %v1238 = vld [vmem:[#allocation5 + $0x460] sm:$0xff]
    %v1239 = vld [vmem:[#allocation5 + $0x468] sm:$0xff]
    %v1240 = vld [vmem:[#allocation5 + $0x470] sm:$0xff]
    %v1241 = vld [vmem:[#allocation5 + $0x478] sm:$0xff]
    %v1242 = vld [vmem:[#allocation5 + $0x480] sm:$0xff]
    %v1243 = vld [vmem:[#allocation5 + $0x488] sm:$0xff]
    %v1244 = vld [vmem:[#allocation5 + $0x490] sm:$0xff]
    %v1245 = vld [vmem:[#allocation5 + $0x498] sm:$0xff]
    %v1246 = vld [vmem:[#allocation5 + $0x4a0] sm:$0xff]
    %v1247 = vld [vmem:[#allocation5 + $0x4a8] sm:$0xff]
    %v1248 = vld [vmem:[#allocation5 + $0x4b0] sm:$0xff]
    %v1249 = vld [vmem:[#allocation5 + $0x4b8] sm:$0xff]
    %v1250 = vld [vmem:[#allocation5 + $0x4c0] sm:$0xff]
    %v1251 = vld [vmem:[#allocation5 + $0x4c8] sm:$0xff]
    %v1252 = vld [vmem:[#allocation5 + $0x4d0] sm:$0xff]
    %v1253 = vld [vmem:[#allocation5 + $0x4d8] sm:$0xff]
    %v1254 = vld [vmem:[#allocation5 + $0x4e0] sm:$0xff]
    %v1255 = vld [vmem:[#allocation5 + $0x4e8] sm:$0xff]
    %v1256 = vld [vmem:[#allocation5 + $0x4f0] sm:$0xff]
    %v1257 = vld [vmem:[#allocation5 + $0x4f8] sm:$0xff]
    %v1258 = vld [vmem:[#allocation5 + $0x500] sm:$0xff]
    %v1259 = vld [vmem:[#allocation5 + $0x508] sm:$0xff]
    %v1260 = vld [vmem:[#allocation5 + $0x510] sm:$0xff]
    %v1261 = vld [vmem:[#allocation5 + $0x518] sm:$0xff]
    %v1262 = vld [vmem:[#allocation5 + $0x520] sm:$0xff]
    %v1263 = vld [vmem:[#allocation5 + $0x528] sm:$0xff]
    %v1264 = vld [vmem:[#allocation5 + $0x530] sm:$0xff]
    %v1265 = vld [vmem:[#allocation5 + $0x538] sm:$0xff]
    %v1266 = vld [vmem:[#allocation5 + $0x540] sm:$0xff]
    %v1267 = vld [vmem:[#allocation5 + $0x548] sm:$0xff]
    %v1268 = vld [vmem:[#allocation5 + $0x550] sm:$0xff]
    %v1269 = vld [vmem:[#allocation5 + $0x558] sm:$0xff]
    %v1270 = vld [vmem:[#allocation5 + $0x560] sm:$0xff]
    %v1271 = vld [vmem:[#allocation5 + $0x568] sm:$0xff]
    %v1272 = vld [vmem:[#allocation5 + $0x570] sm:$0xff]
    %v1273 = vld [vmem:[#allocation5 + $0x578] sm:$0xff]
    %v1274 = vld [vmem:[#allocation5 + $0x580] sm:$0xff]
    %v1275 = vld [vmem:[#allocation5 + $0x588] sm:$0xff]
    %v1276 = vld [vmem:[#allocation5 + $0x590] sm:$0xff]
    %v1277 = vld [vmem:[#allocation5 + $0x598] sm:$0xff]
    %v1278 = vld [vmem:[#allocation5 + $0x5a0] sm:$0xff]
    %v1279 = vld [vmem:[#allocation5 + $0x5a8] sm:$0xff]
    %v1280 = vld [vmem:[#allocation5 + $0x5b0] sm:$0xff]
    %v1281 = vld [vmem:[#allocation5 + $0x5b8] sm:$0xff]
    %v1282 = vld [vmem:[#allocation5 + $0x5c0] sm:$0xff]
    %v1283 = vld [vmem:[#allocation5 + $0x5c8] sm:$0xff]
    %v1284 = vld [vmem:[#allocation5 + $0x5d0] sm:$0xff]
    %v1285 = vld [vmem:[#allocation5 + $0x5d8] sm:$0xff]
    %v1286 = vld [vmem:[#allocation5 + $0x5e0] sm:$0xff]
    %v1287 = vld [vmem:[#allocation5 + $0x5e8] sm:$0xff]
    %v1288 = vld [vmem:[#allocation5 + $0x5f0] sm:$0xff]
    %v1289 = vld [vmem:[#allocation5 + $0x5f8] sm:$0xff]
    %v1290 = vld [vmem:[#allocation5 + $0x600] sm:$0xff]
    %v1291 = vld [vmem:[#allocation5 + $0x608] sm:$0xff]
    %v1292 = vld [vmem:[#allocation5 + $0x610] sm:$0xff]
    %v1293 = vld [vmem:[#allocation5 + $0x618] sm:$0xff]
    %v1294 = vld [vmem:[#allocation5 + $0x620] sm:$0xff]
    %v1295 = vld [vmem:[#allocation5 + $0x628] sm:$0xff]
    %v1296 = vld [vmem:[#allocation5 + $0x630] sm:$0xff]
    %v1297 = vld [vmem:[#allocation5 + $0x638] sm:$0xff]
    %v1298 = vld [vmem:[#allocation5 + $0x640] sm:$0xff]
    %v1299 = vld [vmem:[#allocation5 + $0x648] sm:$0xff]
    %v1300 = vld [vmem:[#allocation5 + $0x650] sm:$0xff]
    %v1301 = vld [vmem:[#allocation5 + $0x658] sm:$0xff]
    %v1302 = vld [vmem:[#allocation5 + $0x660] sm:$0xff]
    %v1303 = vld [vmem:[#allocation5 + $0x668] sm:$0xff]
    %v1304 = vld [vmem:[#allocation5 + $0x670] sm:$0xff]
    %v1305 = vld [vmem:[#allocation5 + $0x678] sm:$0xff]
    %v1306 = vld [vmem:[#allocation5 + $0x680] sm:$0xff]
    %v1307 = vld [vmem:[#allocation5 + $0x688] sm:$0xff]
    %v1308 = vld [vmem:[#allocation5 + $0x690] sm:$0xff]
    %v1309 = vld [vmem:[#allocation5 + $0x698] sm:$0xff]
    %v1310 = vld [vmem:[#allocation5 + $0x6a0] sm:$0xff]
    %v1311 = vld [vmem:[#allocation5 + $0x6a8] sm:$0xff]
    %v1312 = vld [vmem:[#allocation5 + $0x6b0] sm:$0xff]
    %v1313 = vld [vmem:[#allocation5 + $0x6b8] sm:$0xff]
    %v1314 = vld [vmem:[#allocation5 + $0x6c0] sm:$0xff]
    %v1315 = vld [vmem:[#allocation5 + $0x6c8] sm:$0xff]
    %v1316 = vld [vmem:[#allocation5 + $0x6d0] sm:$0xff]
    %v1317 = vld [vmem:[#allocation5 + $0x6d8] sm:$0xff]
    %v1318 = vld [vmem:[#allocation5 + $0x6e0] sm:$0xff]
    %v1319 = vld [vmem:[#allocation5 + $0x6e8] sm:$0xff]
    %v1320 = vld [vmem:[#allocation5 + $0x6f0] sm:$0xff]
    %v1321 = vld [vmem:[#allocation5 + $0x6f8] sm:$0xff]
    %v1322 = vld [vmem:[#allocation5 + $0x700] sm:$0xff]
    %v1323 = vld [vmem:[#allocation5 + $0x708] sm:$0xff]
    %v1324 = vld [vmem:[#allocation5 + $0x710] sm:$0xff]
    %v1325 = vld [vmem:[#allocation5 + $0x718] sm:$0xff]
    %v1326 = vld [vmem:[#allocation5 + $0x720] sm:$0xff]
    %v1327 = vld [vmem:[#allocation5 + $0x728] sm:$0xff]
    %v1328 = vld [vmem:[#allocation5 + $0x730] sm:$0xff]
    %v1329 = vld [vmem:[#allocation5 + $0x738] sm:$0xff]
    %v1330 = vld [vmem:[#allocation5 + $0x740] sm:$0xff]
    %v1331 = vld [vmem:[#allocation5 + $0x748] sm:$0xff]
    %v1332 = vld [vmem:[#allocation5 + $0x750] sm:$0xff]
    %v1333 = vld [vmem:[#allocation5 + $0x758] sm:$0xff]
    %v1334 = vld [vmem:[#allocation5 + $0x760] sm:$0xff]
    %v1335 = vld [vmem:[#allocation5 + $0x768] sm:$0xff]
    %v1336 = vld [vmem:[#allocation5 + $0x770] sm:$0xff]
    %v1337 = vld [vmem:[#allocation5 + $0x778] sm:$0xff]
    %v1338 = vld [vmem:[#allocation5 + $0x780] sm:$0xff]
    %v1339 = vld [vmem:[#allocation5 + $0x788] sm:$0xff]
    %v1340 = vld [vmem:[#allocation5 + $0x790] sm:$0xff]
    %v1341 = vld [vmem:[#allocation5 + $0x798] sm:$0xff]
    %v1342 = vld [vmem:[#allocation5 + $0x7a0] sm:$0xff]
    %v1343 = vld [vmem:[#allocation5 + $0x7a8] sm:$0xff]
    %v1344 = vld [vmem:[#allocation5 + $0x7b0] sm:$0xff]
    %v1345 = vld [vmem:[#allocation5 + $0x7b8] sm:$0xff]
    %v1346 = vld [vmem:[#allocation5 + $0x7c0] sm:$0xff]
    %v1347 = vld [vmem:[#allocation5 + $0x7c8] sm:$0xff]
    %v1348 = vld [vmem:[#allocation5 + $0x7d0] sm:$0xff]
    %v1349 = vld [vmem:[#allocation5 + $0x7d8] sm:$0xff]
    %v1350 = vld [vmem:[#allocation5 + $0x7e0] sm:$0xff]
    %v1351 = vld [vmem:[#allocation5 + $0x7e8] sm:$0xff]
    %v1352 = vld [vmem:[#allocation5 + $0x7f0] sm:$0xff]
    %v1353 = vld [vmem:[#allocation5 + $0x7f8] sm:$0xff]
    %v1354 = vld [vmem:[%s4] sm:$0xf]
    %v1356 = vlaneseq
    %v1357 = vshrl.u32 %v1356, 7
    %v1358 = vsub.s32 0, %v1357
    %v1359 = vrot.slane %v1354, %v1358
    %v1360 = vlaneseq
    %v1361 = vshrl.u32 %v1360, 7
    %v1362 = vsub.s32 1, %v1361
    %v1363 = vrot.slane %v1354, %v1362
    %v1364 = vlaneseq
    %v1365 = vshrl.u32 %v1364, 7
    %v1366 = vsub.s32 2, %v1365
    %v1367 = vrot.slane %v1354, %v1366
    %v1368 = vlaneseq
    %v1369 = vshrl.u32 %v1368, 7
    %v1370 = vsub.s32 3, %v1369
    %v1371 = vrot.slane %v1354, %v1370
    %v1632 = vunpack.c.l.b16 %v1098
    %v1633 = vunpack.c.h.b16 %v1098
    %v1634 = vunpack.c.l.b16 %v1099
    %v1635 = vunpack.c.h.b16 %v1099
    %v1636 = vunpack.c.l.b16 %v1100
    %v1637 = vunpack.c.h.b16 %v1100
    %v1638 = vunpack.c.l.b16 %v1101
    %v1639 = vunpack.c.h.b16 %v1101
    %v1640 = vunpack.c.l.b16 %v1102
    %v1641 = vunpack.c.h.b16 %v1102
    %v1642 = vunpack.c.l.b16 %v1103
    %v1643 = vunpack.c.h.b16 %v1103
    %v1644 = vunpack.c.l.b16 %v1104
    %v1645 = vunpack.c.h.b16 %v1104
    %v1646 = vunpack.c.l.b16 %v1105
    %v1647 = vunpack.c.h.b16 %v1105
    %v1648 = vunpack.c.l.b16 %v1106
    %v1649 = vunpack.c.h.b16 %v1106
    %v1650 = vunpack.c.l.b16 %v1107
    %v1651 = vunpack.c.h.b16 %v1107
    %v1652 = vunpack.c.l.b16 %v1108
    %v1653 = vunpack.c.h.b16 %v1108
    %v1654 = vunpack.c.l.b16 %v1109
    %v1655 = vunpack.c.h.b16 %v1109
    %v1656 = vunpack.c.l.b16 %v1110
    %v1657 = vunpack.c.h.b16 %v1110
    %v1658 = vunpack.c.l.b16 %v1111
    %v1659 = vunpack.c.h.b16 %v1111
    %v1660 = vunpack.c.l.b16 %v1112
    %v1661 = vunpack.c.h.b16 %v1112
    %v1662 = vunpack.c.l.b16 %v1113
    %v1663 = vunpack.c.h.b16 %v1113
    %v1664 = vunpack.c.l.b16 %v1114
    %v1665 = vunpack.c.h.b16 %v1114
    %v1666 = vunpack.c.l.b16 %v1115
    %v1667 = vunpack.c.h.b16 %v1115
    %v1668 = vunpack.c.l.b16 %v1116
    %v1669 = vunpack.c.h.b16 %v1116
    %v1670 = vunpack.c.l.b16 %v1117
    %v1671 = vunpack.c.h.b16 %v1117
    %v1672 = vunpack.c.l.b16 %v1118
    %v1673 = vunpack.c.h.b16 %v1118
    %v1674 = vunpack.c.l.b16 %v1119
    %v1675 = vunpack.c.h.b16 %v1119
    %v1676 = vunpack.c.l.b16 %v1120
    %v1677 = vunpack.c.h.b16 %v1120
    %v1678 = vunpack.c.l.b16 %v1121
    %v1679 = vunpack.c.h.b16 %v1121
    %v1680 = vunpack.c.l.b16 %v1122
    %v1681 = vunpack.c.h.b16 %v1122
    %v1682 = vunpack.c.l.b16 %v1123
    %v1683 = vunpack.c.h.b16 %v1123
    %v1684 = vunpack.c.l.b16 %v1124
    %v1685 = vunpack.c.h.b16 %v1124
    %v1686 = vunpack.c.l.b16 %v1125
    %v1687 = vunpack.c.h.b16 %v1125
    %v1688 = vunpack.c.l.b16 %v1126
    %v1689 = vunpack.c.h.b16 %v1126
    %v1690 = vunpack.c.l.b16 %v1127
    %v1691 = vunpack.c.h.b16 %v1127
    %v1692 = vunpack.c.l.b16 %v1128
    %v1693 = vunpack.c.h.b16 %v1128
    %v1694 = vunpack.c.l.b16 %v1129
    %v1695 = vunpack.c.h.b16 %v1129
    %v1696 = vunpack.c.l.b16 %v1130
    %v1697 = vunpack.c.h.b16 %v1130
    %v1698 = vunpack.c.l.b16 %v1131
    %v1699 = vunpack.c.h.b16 %v1131
    %v1700 = vunpack.c.l.b16 %v1132
    %v1701 = vunpack.c.h.b16 %v1132
    %v1702 = vunpack.c.l.b16 %v1133
    %v1703 = vunpack.c.h.b16 %v1133
    %v1704 = vunpack.c.l.b16 %v1134
    %v1705 = vunpack.c.h.b16 %v1134
    %v1706 = vunpack.c.l.b16 %v1135
    %v1707 = vunpack.c.h.b16 %v1135
    %v1708 = vunpack.c.l.b16 %v1136
    %v1709 = vunpack.c.h.b16 %v1136
    %v1710 = vunpack.c.l.b16 %v1137
    %v1711 = vunpack.c.h.b16 %v1137
    %v1712 = vunpack.c.l.b16 %v1138
    %v1713 = vunpack.c.h.b16 %v1138
    %v1714 = vunpack.c.l.b16 %v1139
    %v1715 = vunpack.c.h.b16 %v1139
    %v1716 = vunpack.c.l.b16 %v1140
    %v1717 = vunpack.c.h.b16 %v1140
    %v1718 = vunpack.c.l.b16 %v1141
    %v1719 = vunpack.c.h.b16 %v1141
    %v1720 = vunpack.c.l.b16 %v1142
    %v1721 = vunpack.c.h.b16 %v1142
    %v1722 = vunpack.c.l.b16 %v1143
    %v1723 = vunpack.c.h.b16 %v1143
    %v1724 = vunpack.c.l.b16 %v1144
    %v1725 = vunpack.c.h.b16 %v1144
    %v1726 = vunpack.c.l.b16 %v1145
    %v1727 = vunpack.c.h.b16 %v1145
    %v1728 = vunpack.c.l.b16 %v1146
    %v1729 = vunpack.c.h.b16 %v1146
    %v1730 = vunpack.c.l.b16 %v1147
    %v1731 = vunpack.c.h.b16 %v1147
    %v1732 = vunpack.c.l.b16 %v1148
    %v1733 = vunpack.c.h.b16 %v1148
    %v1734 = vunpack.c.l.b16 %v1149
    %v1735 = vunpack.c.h.b16 %v1149
    %v1736 = vunpack.c.l.b16 %v1150
    %v1737 = vunpack.c.h.b16 %v1150
    %v1738 = vunpack.c.l.b16 %v1151
    %v1739 = vunpack.c.h.b16 %v1151
    %v1740 = vunpack.c.l.b16 %v1152
    %v1741 = vunpack.c.h.b16 %v1152
    %v1742 = vunpack.c.l.b16 %v1153
    %v1743 = vunpack.c.h.b16 %v1153
    %v1744 = vunpack.c.l.b16 %v1154
    %v1745 = vunpack.c.h.b16 %v1154
    %v1746 = vunpack.c.l.b16 %v1155
    %v1747 = vunpack.c.h.b16 %v1155
    %v1748 = vunpack.c.l.b16 %v1156
    %v1749 = vunpack.c.h.b16 %v1156
    %v1750 = vunpack.c.l.b16 %v1157
    %v1751 = vunpack.c.h.b16 %v1157
    %v1752 = vunpack.c.l.b16 %v1158
    %v1753 = vunpack.c.h.b16 %v1158
    %v1754 = vunpack.c.l.b16 %v1159
    %v1755 = vunpack.c.h.b16 %v1159
    %v1756 = vunpack.c.l.b16 %v1160
    %v1757 = vunpack.c.h.b16 %v1160
    %v1758 = vunpack.c.l.b16 %v1161
    %v1759 = vunpack.c.h.b16 %v1161
    %v1760 = vunpack.c.l.b16 %v1162
    %v1761 = vunpack.c.h.b16 %v1162
    %v1762 = vunpack.c.l.b16 %v1163
    %v1763 = vunpack.c.h.b16 %v1163
    %v1764 = vunpack.c.l.b16 %v1164
    %v1765 = vunpack.c.h.b16 %v1164
    %v1766 = vunpack.c.l.b16 %v1165
    %v1767 = vunpack.c.h.b16 %v1165
    %v1768 = vunpack.c.l.b16 %v1166
    %v1769 = vunpack.c.h.b16 %v1166
    %v1770 = vunpack.c.l.b16 %v1167
    %v1771 = vunpack.c.h.b16 %v1167
    %v1772 = vunpack.c.l.b16 %v1168
    %v1773 = vunpack.c.h.b16 %v1168
    %v1774 = vunpack.c.l.b16 %v1169
    %v1775 = vunpack.c.h.b16 %v1169
    %v1776 = vunpack.c.l.b16 %v1170
    %v1777 = vunpack.c.h.b16 %v1170
    %v1778 = vunpack.c.l.b16 %v1171
    %v1779 = vunpack.c.h.b16 %v1171
    %v1780 = vunpack.c.l.b16 %v1172
    %v1781 = vunpack.c.h.b16 %v1172
    %v1782 = vunpack.c.l.b16 %v1173
    %v1783 = vunpack.c.h.b16 %v1173
    %v1784 = vunpack.c.l.b16 %v1174
    %v1785 = vunpack.c.h.b16 %v1174
    %v1786 = vunpack.c.l.b16 %v1175
    %v1787 = vunpack.c.h.b16 %v1175
    %v1788 = vunpack.c.l.b16 %v1176
    %v1789 = vunpack.c.h.b16 %v1176
    %v1790 = vunpack.c.l.b16 %v1177
    %v1791 = vunpack.c.h.b16 %v1177
    %v1792 = vunpack.c.l.b16 %v1178
    %v1793 = vunpack.c.h.b16 %v1178
    %v1794 = vunpack.c.l.b16 %v1179
    %v1795 = vunpack.c.h.b16 %v1179
    %v1796 = vunpack.c.l.b16 %v1180
    %v1797 = vunpack.c.h.b16 %v1180
    %v1798 = vunpack.c.l.b16 %v1181
    %v1799 = vunpack.c.h.b16 %v1181
    %v1800 = vunpack.c.l.b16 %v1182
    %v1801 = vunpack.c.h.b16 %v1182
    %v1802 = vunpack.c.l.b16 %v1183
    %v1803 = vunpack.c.h.b16 %v1183
    %v1804 = vunpack.c.l.b16 %v1184
    %v1805 = vunpack.c.h.b16 %v1184
    %v1806 = vunpack.c.l.b16 %v1185
    %v1807 = vunpack.c.h.b16 %v1185
    %v1808 = vunpack.c.l.b16 %v1186
    %v1809 = vunpack.c.h.b16 %v1186
    %v1810 = vunpack.c.l.b16 %v1187
    %v1811 = vunpack.c.h.b16 %v1187
    %v1812 = vunpack.c.l.b16 %v1188
    %v1813 = vunpack.c.h.b16 %v1188
    %v1814 = vunpack.c.l.b16 %v1189
    %v1815 = vunpack.c.h.b16 %v1189
    %v1816 = vunpack.c.l.b16 %v1190
    %v1817 = vunpack.c.h.b16 %v1190
    %v1818 = vunpack.c.l.b16 %v1191
    %v1819 = vunpack.c.h.b16 %v1191
    %v1820 = vunpack.c.l.b16 %v1192
    %v1821 = vunpack.c.h.b16 %v1192
    %v1822 = vunpack.c.l.b16 %v1193
    %v1823 = vunpack.c.h.b16 %v1193
    %v1824 = vunpack.c.l.b16 %v1194
    %v1825 = vunpack.c.h.b16 %v1194
    %v1826 = vunpack.c.l.b16 %v1195
    %v1827 = vunpack.c.h.b16 %v1195
    %v1828 = vunpack.c.l.b16 %v1196
    %v1829 = vunpack.c.h.b16 %v1196
    %v1830 = vunpack.c.l.b16 %v1197
    %v1831 = vunpack.c.h.b16 %v1197
    %v1832 = vunpack.c.l.b16 %v1198
    %v1833 = vunpack.c.h.b16 %v1198
    %v1834 = vunpack.c.l.b16 %v1199
    %v1835 = vunpack.c.h.b16 %v1199
    %v1836 = vunpack.c.l.b16 %v1200
    %v1837 = vunpack.c.h.b16 %v1200
    %v1838 = vunpack.c.l.b16 %v1201
    %v1839 = vunpack.c.h.b16 %v1201
    %v1840 = vunpack.c.l.b16 %v1202
    %v1841 = vunpack.c.h.b16 %v1202
    %v1842 = vunpack.c.l.b16 %v1203
    %v1843 = vunpack.c.h.b16 %v1203
    %v1844 = vunpack.c.l.b16 %v1204
    %v1845 = vunpack.c.h.b16 %v1204
    %v1846 = vunpack.c.l.b16 %v1205
    %v1847 = vunpack.c.h.b16 %v1205
    %v1848 = vunpack.c.l.b16 %v1206
    %v1849 = vunpack.c.h.b16 %v1206
    %v1850 = vunpack.c.l.b16 %v1207
    %v1851 = vunpack.c.h.b16 %v1207
    %v1852 = vunpack.c.l.b16 %v1208
    %v1853 = vunpack.c.h.b16 %v1208
    %v1854 = vunpack.c.l.b16 %v1209
    %v1855 = vunpack.c.h.b16 %v1209
    %v1856 = vunpack.c.l.b16 %v1210
    %v1857 = vunpack.c.h.b16 %v1210
    %v1858 = vunpack.c.l.b16 %v1211
    %v1859 = vunpack.c.h.b16 %v1211
    %v1860 = vunpack.c.l.b16 %v1212
    %v1861 = vunpack.c.h.b16 %v1212
    %v1862 = vunpack.c.l.b16 %v1213
    %v1863 = vunpack.c.h.b16 %v1213
    %v1864 = vunpack.c.l.b16 %v1214
    %v1865 = vunpack.c.h.b16 %v1214
    %v1866 = vunpack.c.l.b16 %v1215
    %v1867 = vunpack.c.h.b16 %v1215
    %v1868 = vunpack.c.l.b16 %v1216
    %v1869 = vunpack.c.h.b16 %v1216
    %v1870 = vunpack.c.l.b16 %v1217
    %v1871 = vunpack.c.h.b16 %v1217
    %v1872 = vunpack.c.l.b16 %v1218
    %v1873 = vunpack.c.h.b16 %v1218
    %v1874 = vunpack.c.l.b16 %v1219
    %v1875 = vunpack.c.h.b16 %v1219
    %v1876 = vunpack.c.l.b16 %v1220
    %v1877 = vunpack.c.h.b16 %v1220
    %v1878 = vunpack.c.l.b16 %v1221
    %v1879 = vunpack.c.h.b16 %v1221
    %v1880 = vunpack.c.l.b16 %v1222
    %v1881 = vunpack.c.h.b16 %v1222
    %v1882 = vunpack.c.l.b16 %v1223
    %v1883 = vunpack.c.h.b16 %v1223
    %v1884 = vunpack.c.l.b16 %v1224
    %v1885 = vunpack.c.h.b16 %v1224
    %v1886 = vunpack.c.l.b16 %v1225
    %v1887 = vunpack.c.h.b16 %v1225
    %v1888 = vunpack.c.l.b16 %v1226
    %v1889 = vunpack.c.h.b16 %v1226
    %v1890 = vunpack.c.l.b16 %v1227
    %v1891 = vunpack.c.h.b16 %v1227
    %v1892 = vunpack.c.l.b16 %v1228
    %v1893 = vunpack.c.h.b16 %v1228
    %v1894 = vunpack.c.l.b16 %v1229
    %v1895 = vunpack.c.h.b16 %v1229
    %v1896 = vunpack.c.l.b16 %v1230
    %v1897 = vunpack.c.h.b16 %v1230
    %v1898 = vunpack.c.l.b16 %v1231
    %v1899 = vunpack.c.h.b16 %v1231
    %v1900 = vunpack.c.l.b16 %v1232
    %v1901 = vunpack.c.h.b16 %v1232
    %v1902 = vunpack.c.l.b16 %v1233
    %v1903 = vunpack.c.h.b16 %v1233
    %v1904 = vunpack.c.l.b16 %v1234
    %v1905 = vunpack.c.h.b16 %v1234
    %v1906 = vunpack.c.l.b16 %v1235
    %v1907 = vunpack.c.h.b16 %v1235
    %v1908 = vunpack.c.l.b16 %v1236
    %v1909 = vunpack.c.h.b16 %v1236
    %v1910 = vunpack.c.l.b16 %v1237
    %v1911 = vunpack.c.h.b16 %v1237
    %v1912 = vunpack.c.l.b16 %v1238
    %v1913 = vunpack.c.h.b16 %v1238
    %v1914 = vunpack.c.l.b16 %v1239
    %v1915 = vunpack.c.h.b16 %v1239
    %v1916 = vunpack.c.l.b16 %v1240
    %v1917 = vunpack.c.h.b16 %v1240
    %v1918 = vunpack.c.l.b16 %v1241
    %v1919 = vunpack.c.h.b16 %v1241
    %v1920 = vunpack.c.l.b16 %v1242
    %v1921 = vunpack.c.h.b16 %v1242
    %v1922 = vunpack.c.l.b16 %v1243
    %v1923 = vunpack.c.h.b16 %v1243
    %v1924 = vunpack.c.l.b16 %v1244
    %v1925 = vunpack.c.h.b16 %v1244
    %v1926 = vunpack.c.l.b16 %v1245
    %v1927 = vunpack.c.h.b16 %v1245
    %v1928 = vunpack.c.l.b16 %v1246
    %v1929 = vunpack.c.h.b16 %v1246
    %v1930 = vunpack.c.l.b16 %v1247
    %v1931 = vunpack.c.h.b16 %v1247
    %v1932 = vunpack.c.l.b16 %v1248
    %v1933 = vunpack.c.h.b16 %v1248
    %v1934 = vunpack.c.l.b16 %v1249
    %v1935 = vunpack.c.h.b16 %v1249
    %v1936 = vunpack.c.l.b16 %v1250
    %v1937 = vunpack.c.h.b16 %v1250
    %v1938 = vunpack.c.l.b16 %v1251
    %v1939 = vunpack.c.h.b16 %v1251
    %v1940 = vunpack.c.l.b16 %v1252
    %v1941 = vunpack.c.h.b16 %v1252
    %v1942 = vunpack.c.l.b16 %v1253
    %v1943 = vunpack.c.h.b16 %v1253
    %v1944 = vunpack.c.l.b16 %v1254
    %v1945 = vunpack.c.h.b16 %v1254
    %v1946 = vunpack.c.l.b16 %v1255
    %v1947 = vunpack.c.h.b16 %v1255
    %v1948 = vunpack.c.l.b16 %v1256
    %v1949 = vunpack.c.h.b16 %v1256
    %v1950 = vunpack.c.l.b16 %v1257
    %v1951 = vunpack.c.h.b16 %v1257
    %v1952 = vunpack.c.l.b16 %v1258
    %v1953 = vunpack.c.h.b16 %v1258
    %v1954 = vunpack.c.l.b16 %v1259
    %v1955 = vunpack.c.h.b16 %v1259
    %v1956 = vunpack.c.l.b16 %v1260
    %v1957 = vunpack.c.h.b16 %v1260
    %v1958 = vunpack.c.l.b16 %v1261
    %v1959 = vunpack.c.h.b16 %v1261
    %v1960 = vunpack.c.l.b16 %v1262
    %v1961 = vunpack.c.h.b16 %v1262
    %v1962 = vunpack.c.l.b16 %v1263
    %v1963 = vunpack.c.h.b16 %v1263
    %v1964 = vunpack.c.l.b16 %v1264
    %v1965 = vunpack.c.h.b16 %v1264
    %v1966 = vunpack.c.l.b16 %v1265
    %v1967 = vunpack.c.h.b16 %v1265
    %v1968 = vunpack.c.l.b16 %v1266
    %v1969 = vunpack.c.h.b16 %v1266
    %v1970 = vunpack.c.l.b16 %v1267
    %v1971 = vunpack.c.h.b16 %v1267
    %v1972 = vunpack.c.l.b16 %v1268
    %v1973 = vunpack.c.h.b16 %v1268
    %v1974 = vunpack.c.l.b16 %v1269
    %v1975 = vunpack.c.h.b16 %v1269
    %v1976 = vunpack.c.l.b16 %v1270
    %v1977 = vunpack.c.h.b16 %v1270
    %v1978 = vunpack.c.l.b16 %v1271
    %v1979 = vunpack.c.h.b16 %v1271
    %v1980 = vunpack.c.l.b16 %v1272
    %v1981 = vunpack.c.h.b16 %v1272
    %v1982 = vunpack.c.l.b16 %v1273
    %v1983 = vunpack.c.h.b16 %v1273
    %v1984 = vunpack.c.l.b16 %v1274
    %v1985 = vunpack.c.h.b16 %v1274
    %v1986 = vunpack.c.l.b16 %v1275
    %v1987 = vunpack.c.h.b16 %v1275
    %v1988 = vunpack.c.l.b16 %v1276
    %v1989 = vunpack.c.h.b16 %v1276
    %v1990 = vunpack.c.l.b16 %v1277
    %v1991 = vunpack.c.h.b16 %v1277
    %v1992 = vunpack.c.l.b16 %v1278
    %v1993 = vunpack.c.h.b16 %v1278
    %v1994 = vunpack.c.l.b16 %v1279
    %v1995 = vunpack.c.h.b16 %v1279
    %v1996 = vunpack.c.l.b16 %v1280
    %v1997 = vunpack.c.h.b16 %v1280
    %v1998 = vunpack.c.l.b16 %v1281
    %v1999 = vunpack.c.h.b16 %v1281
    %v2000 = vunpack.c.l.b16 %v1282
    %v2001 = vunpack.c.h.b16 %v1282
    %v2002 = vunpack.c.l.b16 %v1283
    %v2003 = vunpack.c.h.b16 %v1283
    %v2004 = vunpack.c.l.b16 %v1284
    %v2005 = vunpack.c.h.b16 %v1284
    %v2006 = vunpack.c.l.b16 %v1285
    %v2007 = vunpack.c.h.b16 %v1285
    %v2008 = vunpack.c.l.b16 %v1286
    %v2009 = vunpack.c.h.b16 %v1286
    %v2010 = vunpack.c.l.b16 %v1287
    %v2011 = vunpack.c.h.b16 %v1287
    %v2012 = vunpack.c.l.b16 %v1288
    %v2013 = vunpack.c.h.b16 %v1288
    %v2014 = vunpack.c.l.b16 %v1289
    %v2015 = vunpack.c.h.b16 %v1289
    %v2016 = vunpack.c.l.b16 %v1290
    %v2017 = vunpack.c.h.b16 %v1290
    %v2018 = vunpack.c.l.b16 %v1291
    %v2019 = vunpack.c.h.b16 %v1291
    %v2020 = vunpack.c.l.b16 %v1292
    %v2021 = vunpack.c.h.b16 %v1292
    %v2022 = vunpack.c.l.b16 %v1293
    %v2023 = vunpack.c.h.b16 %v1293
    %v2024 = vunpack.c.l.b16 %v1294
    %v2025 = vunpack.c.h.b16 %v1294
    %v2026 = vunpack.c.l.b16 %v1295
    %v2027 = vunpack.c.h.b16 %v1295
    %v2028 = vunpack.c.l.b16 %v1296
    %v2029 = vunpack.c.h.b16 %v1296
    %v2030 = vunpack.c.l.b16 %v1297
    %v2031 = vunpack.c.h.b16 %v1297
    %v2032 = vunpack.c.l.b16 %v1298
    %v2033 = vunpack.c.h.b16 %v1298
    %v2034 = vunpack.c.l.b16 %v1299
    %v2035 = vunpack.c.h.b16 %v1299
    %v2036 = vunpack.c.l.b16 %v1300
    %v2037 = vunpack.c.h.b16 %v1300
    %v2038 = vunpack.c.l.b16 %v1301
    %v2039 = vunpack.c.h.b16 %v1301
    %v2040 = vunpack.c.l.b16 %v1302
    %v2041 = vunpack.c.h.b16 %v1302
    %v2042 = vunpack.c.l.b16 %v1303
    %v2043 = vunpack.c.h.b16 %v1303
    %v2044 = vunpack.c.l.b16 %v1304
    %v2045 = vunpack.c.h.b16 %v1304
    %v2046 = vunpack.c.l.b16 %v1305
    %v2047 = vunpack.c.h.b16 %v1305
    %v2048 = vunpack.c.l.b16 %v1306
    %v2049 = vunpack.c.h.b16 %v1306
    %v2050 = vunpack.c.l.b16 %v1307
    %v2051 = vunpack.c.h.b16 %v1307
    %v2052 = vunpack.c.l.b16 %v1308
    %v2053 = vunpack.c.h.b16 %v1308
    %v2054 = vunpack.c.l.b16 %v1309
    %v2055 = vunpack.c.h.b16 %v1309
    %v2056 = vunpack.c.l.b16 %v1310
    %v2057 = vunpack.c.h.b16 %v1310
    %v2058 = vunpack.c.l.b16 %v1311
    %v2059 = vunpack.c.h.b16 %v1311
    %v2060 = vunpack.c.l.b16 %v1312
    %v2061 = vunpack.c.h.b16 %v1312
    %v2062 = vunpack.c.l.b16 %v1313
    %v2063 = vunpack.c.h.b16 %v1313
    %v2064 = vunpack.c.l.b16 %v1314
    %v2065 = vunpack.c.h.b16 %v1314
    %v2066 = vunpack.c.l.b16 %v1315
    %v2067 = vunpack.c.h.b16 %v1315
    %v2068 = vunpack.c.l.b16 %v1316
    %v2069 = vunpack.c.h.b16 %v1316
    %v2070 = vunpack.c.l.b16 %v1317
    %v2071 = vunpack.c.h.b16 %v1317
    %v2072 = vunpack.c.l.b16 %v1318
    %v2073 = vunpack.c.h.b16 %v1318
    %v2074 = vunpack.c.l.b16 %v1319
    %v2075 = vunpack.c.h.b16 %v1319
    %v2076 = vunpack.c.l.b16 %v1320
    %v2077 = vunpack.c.h.b16 %v1320
    %v2078 = vunpack.c.l.b16 %v1321
    %v2079 = vunpack.c.h.b16 %v1321
    %v2080 = vunpack.c.l.b16 %v1322
    %v2081 = vunpack.c.h.b16 %v1322
    %v2082 = vunpack.c.l.b16 %v1323
    %v2083 = vunpack.c.h.b16 %v1323
    %v2084 = vunpack.c.l.b16 %v1324
    %v2085 = vunpack.c.h.b16 %v1324
    %v2086 = vunpack.c.l.b16 %v1325
    %v2087 = vunpack.c.h.b16 %v1325
    %v2088 = vunpack.c.l.b16 %v1326
    %v2089 = vunpack.c.h.b16 %v1326
    %v2090 = vunpack.c.l.b16 %v1327
    %v2091 = vunpack.c.h.b16 %v1327
    %v2092 = vunpack.c.l.b16 %v1328
    %v2093 = vunpack.c.h.b16 %v1328
    %v2094 = vunpack.c.l.b16 %v1329
    %v2095 = vunpack.c.h.b16 %v1329
    %v2096 = vunpack.c.l.b16 %v1330
    %v2097 = vunpack.c.h.b16 %v1330
    %v2098 = vunpack.c.l.b16 %v1331
    %v2099 = vunpack.c.h.b16 %v1331
    %v2100 = vunpack.c.l.b16 %v1332
    %v2101 = vunpack.c.h.b16 %v1332
    %v2102 = vunpack.c.l.b16 %v1333
    %v2103 = vunpack.c.h.b16 %v1333
    %v2104 = vunpack.c.l.b16 %v1334
    %v2105 = vunpack.c.h.b16 %v1334
    %v2106 = vunpack.c.l.b16 %v1335
    %v2107 = vunpack.c.h.b16 %v1335
    %v2108 = vunpack.c.l.b16 %v1336
    %v2109 = vunpack.c.h.b16 %v1336
    %v2110 = vunpack.c.l.b16 %v1337
    %v2111 = vunpack.c.h.b16 %v1337
    %v2112 = vunpack.c.l.b16 %v1338
    %v2113 = vunpack.c.h.b16 %v1338
    %v2114 = vunpack.c.l.b16 %v1339
    %v2115 = vunpack.c.h.b16 %v1339
    %v2116 = vunpack.c.l.b16 %v1340
    %v2117 = vunpack.c.h.b16 %v1340
    %v2118 = vunpack.c.l.b16 %v1341
    %v2119 = vunpack.c.h.b16 %v1341
    %v2120 = vunpack.c.l.b16 %v1342
    %v2121 = vunpack.c.h.b16 %v1342
    %v2122 = vunpack.c.l.b16 %v1343
    %v2123 = vunpack.c.h.b16 %v1343
    %v2124 = vunpack.c.l.b16 %v1344
    %v2125 = vunpack.c.h.b16 %v1344
    %v2126 = vunpack.c.l.b16 %v1345
    %v2127 = vunpack.c.h.b16 %v1345
    %v2128 = vunpack.c.l.b16 %v1346
    %v2129 = vunpack.c.h.b16 %v1346
    %v2130 = vunpack.c.l.b16 %v1347
    %v2131 = vunpack.c.h.b16 %v1347
    %v2132 = vunpack.c.l.b16 %v1348
    %v2133 = vunpack.c.h.b16 %v1348
    %v2134 = vunpack.c.l.b16 %v1349
    %v2135 = vunpack.c.h.b16 %v1349
    %v2136 = vunpack.c.l.b16 %v1350
    %v2137 = vunpack.c.h.b16 %v1350
    %v2138 = vunpack.c.l.b16 %v1351
    %v2139 = vunpack.c.h.b16 %v1351
    %v2140 = vunpack.c.l.b16 %v1352
    %v2141 = vunpack.c.h.b16 %v1352
    %v2142 = vunpack.c.l.b16 %v1353
    %v2143 = vunpack.c.h.b16 %v1353
    %v2144 = vpack.c.b16 %v1636, %v1632
    %v2145 = vpack.c.b16 %v1637, %v1633
    %v2146 = vpack.c.b16 %v1638, %v1634
    %v2147 = vpack.c.b16 %v1639, %v1635
    %v2148 = vpack.c.b16 %v1644, %v1640
    %v2149 = vpack.c.b16 %v1645, %v1641
    %v2150 = vpack.c.b16 %v1646, %v1642
    %v2151 = vpack.c.b16 %v1647, %v1643
    %v2152 = vpack.c.b16 %v1652, %v1648
    %v2153 = vpack.c.b16 %v1653, %v1649
    %v2154 = vpack.c.b16 %v1654, %v1650
    %v2155 = vpack.c.b16 %v1655, %v1651
    %v2156 = vpack.c.b16 %v1660, %v1656
    %v2157 = vpack.c.b16 %v1661, %v1657
    %v2158 = vpack.c.b16 %v1662, %v1658
    %v2159 = vpack.c.b16 %v1663, %v1659
    %v2160 = vpack.c.b16 %v1668, %v1664
    %v2161 = vpack.c.b16 %v1669, %v1665
    %v2162 = vpack.c.b16 %v1670, %v1666
    %v2163 = vpack.c.b16 %v1671, %v1667
    %v2164 = vpack.c.b16 %v1676, %v1672
    %v2165 = vpack.c.b16 %v1677, %v1673
    %v2166 = vpack.c.b16 %v1678, %v1674
    %v2167 = vpack.c.b16 %v1679, %v1675
    %v2168 = vpack.c.b16 %v1684, %v1680
    %v2169 = vpack.c.b16 %v1685, %v1681
    %v2170 = vpack.c.b16 %v1686, %v1682
    %v2171 = vpack.c.b16 %v1687, %v1683
    %v2172 = vpack.c.b16 %v1692, %v1688
    %v2173 = vpack.c.b16 %v1693, %v1689
    %v2174 = vpack.c.b16 %v1694, %v1690
    %v2175 = vpack.c.b16 %v1695, %v1691
    %v2176 = vpack.c.b16 %v1700, %v1696
    %v2177 = vpack.c.b16 %v1701, %v1697
    %v2178 = vpack.c.b16 %v1702, %v1698
    %v2179 = vpack.c.b16 %v1703, %v1699
    %v2180 = vpack.c.b16 %v1708, %v1704
    %v2181 = vpack.c.b16 %v1709, %v1705
    %v2182 = vpack.c.b16 %v1710, %v1706
    %v2183 = vpack.c.b16 %v1711, %v1707
    %v2184 = vpack.c.b16 %v1716, %v1712
    %v2185 = vpack.c.b16 %v1717, %v1713
    %v2186 = vpack.c.b16 %v1718, %v1714
    %v2187 = vpack.c.b16 %v1719, %v1715
    %v2188 = vpack.c.b16 %v1724, %v1720
    %v2189 = vpack.c.b16 %v1725, %v1721
    %v2190 = vpack.c.b16 %v1726, %v1722
    %v2191 = vpack.c.b16 %v1727, %v1723
    %v2192 = vpack.c.b16 %v1732, %v1728
    %v2193 = vpack.c.b16 %v1733, %v1729
    %v2194 = vpack.c.b16 %v1734, %v1730
    %v2195 = vpack.c.b16 %v1735, %v1731
    %v2196 = vpack.c.b16 %v1740, %v1736
    %v2197 = vpack.c.b16 %v1741, %v1737
    %v2198 = vpack.c.b16 %v1742, %v1738
    %v2199 = vpack.c.b16 %v1743, %v1739
    %v2200 = vpack.c.b16 %v1748, %v1744
    %v2201 = vpack.c.b16 %v1749, %v1745
    %v2202 = vpack.c.b16 %v1750, %v1746
    %v2203 = vpack.c.b16 %v1751, %v1747
    %v2204 = vpack.c.b16 %v1756, %v1752
    %v2205 = vpack.c.b16 %v1757, %v1753
    %v2206 = vpack.c.b16 %v1758, %v1754
    %v2207 = vpack.c.b16 %v1759, %v1755
    %v2208 = vpack.c.b16 %v1764, %v1760
    %v2209 = vpack.c.b16 %v1765, %v1761
    %v2210 = vpack.c.b16 %v1766, %v1762
    %v2211 = vpack.c.b16 %v1767, %v1763
    %v2212 = vpack.c.b16 %v1772, %v1768
    %v2213 = vpack.c.b16 %v1773, %v1769
    %v2214 = vpack.c.b16 %v1774, %v1770
    %v2215 = vpack.c.b16 %v1775, %v1771
    %v2216 = vpack.c.b16 %v1780, %v1776
    %v2217 = vpack.c.b16 %v1781, %v1777
    %v2218 = vpack.c.b16 %v1782, %v1778
    %v2219 = vpack.c.b16 %v1783, %v1779
    %v2220 = vpack.c.b16 %v1788, %v1784
    %v2221 = vpack.c.b16 %v1789, %v1785
    %v2222 = vpack.c.b16 %v1790, %v1786
    %v2223 = vpack.c.b16 %v1791, %v1787
    %v2224 = vpack.c.b16 %v1796, %v1792
    %v2225 = vpack.c.b16 %v1797, %v1793
    %v2226 = vpack.c.b16 %v1798, %v1794
    %v2227 = vpack.c.b16 %v1799, %v1795
    %v2228 = vpack.c.b16 %v1804, %v1800
    %v2229 = vpack.c.b16 %v1805, %v1801
    %v2230 = vpack.c.b16 %v1806, %v1802
    %v2231 = vpack.c.b16 %v1807, %v1803
    %v2232 = vpack.c.b16 %v1812, %v1808
    %v2233 = vpack.c.b16 %v1813, %v1809
    %v2234 = vpack.c.b16 %v1814, %v1810
    %v2235 = vpack.c.b16 %v1815, %v1811
    %v2236 = vpack.c.b16 %v1820, %v1816
    %v2237 = vpack.c.b16 %v1821, %v1817
    %v2238 = vpack.c.b16 %v1822, %v1818
    %v2239 = vpack.c.b16 %v1823, %v1819
    %v2240 = vpack.c.b16 %v1828, %v1824
    %v2241 = vpack.c.b16 %v1829, %v1825
    %v2242 = vpack.c.b16 %v1830, %v1826
    %v2243 = vpack.c.b16 %v1831, %v1827
    %v2244 = vpack.c.b16 %v1836, %v1832
    %v2245 = vpack.c.b16 %v1837, %v1833
    %v2246 = vpack.c.b16 %v1838, %v1834
    %v2247 = vpack.c.b16 %v1839, %v1835
    %v2248 = vpack.c.b16 %v1844, %v1840
    %v2249 = vpack.c.b16 %v1845, %v1841
    %v2250 = vpack.c.b16 %v1846, %v1842
    %v2251 = vpack.c.b16 %v1847, %v1843
    %v2252 = vpack.c.b16 %v1852, %v1848
    %v2253 = vpack.c.b16 %v1853, %v1849
    %v2254 = vpack.c.b16 %v1854, %v1850
    %v2255 = vpack.c.b16 %v1855, %v1851
    %v2256 = vpack.c.b16 %v1860, %v1856
    %v2257 = vpack.c.b16 %v1861, %v1857
    %v2258 = vpack.c.b16 %v1862, %v1858
    %v2259 = vpack.c.b16 %v1863, %v1859
    %v2260 = vpack.c.b16 %v1868, %v1864
    %v2261 = vpack.c.b16 %v1869, %v1865
    %v2262 = vpack.c.b16 %v1870, %v1866
    %v2263 = vpack.c.b16 %v1871, %v1867
    %v2264 = vpack.c.b16 %v1876, %v1872
    %v2265 = vpack.c.b16 %v1877, %v1873
    %v2266 = vpack.c.b16 %v1878, %v1874
    %v2267 = vpack.c.b16 %v1879, %v1875
    %v2268 = vpack.c.b16 %v1884, %v1880
    %v2269 = vpack.c.b16 %v1885, %v1881
    %v2270 = vpack.c.b16 %v1886, %v1882
    %v2271 = vpack.c.b16 %v1887, %v1883
    %v2272 = vpack.c.b16 %v1892, %v1888
    %v2273 = vpack.c.b16 %v1893, %v1889
    %v2274 = vpack.c.b16 %v1894, %v1890
    %v2275 = vpack.c.b16 %v1895, %v1891
    %v2276 = vpack.c.b16 %v1900, %v1896
    %v2277 = vpack.c.b16 %v1901, %v1897
    %v2278 = vpack.c.b16 %v1902, %v1898
    %v2279 = vpack.c.b16 %v1903, %v1899
    %v2280 = vpack.c.b16 %v1908, %v1904
    %v2281 = vpack.c.b16 %v1909, %v1905
    %v2282 = vpack.c.b16 %v1910, %v1906
    %v2283 = vpack.c.b16 %v1911, %v1907
    %v2284 = vpack.c.b16 %v1916, %v1912
    %v2285 = vpack.c.b16 %v1917, %v1913
    %v2286 = vpack.c.b16 %v1918, %v1914
    %v2287 = vpack.c.b16 %v1919, %v1915
    %v2288 = vpack.c.b16 %v1924, %v1920
    %v2289 = vpack.c.b16 %v1925, %v1921
    %v2290 = vpack.c.b16 %v1926, %v1922
    %v2291 = vpack.c.b16 %v1927, %v1923
    %v2292 = vpack.c.b16 %v1932, %v1928
    %v2293 = vpack.c.b16 %v1933, %v1929
    %v2294 = vpack.c.b16 %v1934, %v1930
    %v2295 = vpack.c.b16 %v1935, %v1931
    %v2296 = vpack.c.b16 %v1940, %v1936
    %v2297 = vpack.c.b16 %v1941, %v1937
    %v2298 = vpack.c.b16 %v1942, %v1938
    %v2299 = vpack.c.b16 %v1943, %v1939
    %v2300 = vpack.c.b16 %v1948, %v1944
    %v2301 = vpack.c.b16 %v1949, %v1945
    %v2302 = vpack.c.b16 %v1950, %v1946
    %v2303 = vpack.c.b16 %v1951, %v1947
    %v2304 = vpack.c.b16 %v1956, %v1952
    %v2305 = vpack.c.b16 %v1957, %v1953
    %v2306 = vpack.c.b16 %v1958, %v1954
    %v2307 = vpack.c.b16 %v1959, %v1955
    %v2308 = vpack.c.b16 %v1964, %v1960
    %v2309 = vpack.c.b16 %v1965, %v1961
    %v2310 = vpack.c.b16 %v1966, %v1962
    %v2311 = vpack.c.b16 %v1967, %v1963
    %v2312 = vpack.c.b16 %v1972, %v1968
    %v2313 = vpack.c.b16 %v1973, %v1969
    %v2314 = vpack.c.b16 %v1974, %v1970
    %v2315 = vpack.c.b16 %v1975, %v1971
    %v2316 = vpack.c.b16 %v1980, %v1976
    %v2317 = vpack.c.b16 %v1981, %v1977
    %v2318 = vpack.c.b16 %v1982, %v1978
    %v2319 = vpack.c.b16 %v1983, %v1979
    %v2320 = vpack.c.b16 %v1988, %v1984
    %v2321 = vpack.c.b16 %v1989, %v1985
    %v2322 = vpack.c.b16 %v1990, %v1986
    %v2323 = vpack.c.b16 %v1991, %v1987
    %v2324 = vpack.c.b16 %v1996, %v1992
    %v2325 = vpack.c.b16 %v1997, %v1993
    %v2326 = vpack.c.b16 %v1998, %v1994
    %v2327 = vpack.c.b16 %v1999, %v1995
    %v2328 = vpack.c.b16 %v2004, %v2000
    %v2329 = vpack.c.b16 %v2005, %v2001
    %v2330 = vpack.c.b16 %v2006, %v2002
    %v2331 = vpack.c.b16 %v2007, %v2003
    %v2332 = vpack.c.b16 %v2012, %v2008
    %v2333 = vpack.c.b16 %v2013, %v2009
    %v2334 = vpack.c.b16 %v2014, %v2010
    %v2335 = vpack.c.b16 %v2015, %v2011
    %v2336 = vpack.c.b16 %v2020, %v2016
    %v2337 = vpack.c.b16 %v2021, %v2017
    %v2338 = vpack.c.b16 %v2022, %v2018
    %v2339 = vpack.c.b16 %v2023, %v2019
    %v2340 = vpack.c.b16 %v2028, %v2024
    %v2341 = vpack.c.b16 %v2029, %v2025
    %v2342 = vpack.c.b16 %v2030, %v2026
    %v2343 = vpack.c.b16 %v2031, %v2027
    %v2344 = vpack.c.b16 %v2036, %v2032
    %v2345 = vpack.c.b16 %v2037, %v2033
    %v2346 = vpack.c.b16 %v2038, %v2034
    %v2347 = vpack.c.b16 %v2039, %v2035
    %v2348 = vpack.c.b16 %v2044, %v2040
    %v2349 = vpack.c.b16 %v2045, %v2041
    %v2350 = vpack.c.b16 %v2046, %v2042
    %v2351 = vpack.c.b16 %v2047, %v2043
    %v2352 = vpack.c.b16 %v2052, %v2048
    %v2353 = vpack.c.b16 %v2053, %v2049
    %v2354 = vpack.c.b16 %v2054, %v2050
    %v2355 = vpack.c.b16 %v2055, %v2051
    %v2356 = vpack.c.b16 %v2060, %v2056
    %v2357 = vpack.c.b16 %v2061, %v2057
    %v2358 = vpack.c.b16 %v2062, %v2058
    %v2359 = vpack.c.b16 %v2063, %v2059
    %v2360 = vpack.c.b16 %v2068, %v2064
    %v2361 = vpack.c.b16 %v2069, %v2065
    %v2362 = vpack.c.b16 %v2070, %v2066
    %v2363 = vpack.c.b16 %v2071, %v2067
    %v2364 = vpack.c.b16 %v2076, %v2072
    %v2365 = vpack.c.b16 %v2077, %v2073
    %v2366 = vpack.c.b16 %v2078, %v2074
    %v2367 = vpack.c.b16 %v2079, %v2075
    %v2368 = vpack.c.b16 %v2084, %v2080
    %v2369 = vpack.c.b16 %v2085, %v2081
    %v2370 = vpack.c.b16 %v2086, %v2082
    %v2371 = vpack.c.b16 %v2087, %v2083
    %v2372 = vpack.c.b16 %v2092, %v2088
    %v2373 = vpack.c.b16 %v2093, %v2089
    %v2374 = vpack.c.b16 %v2094, %v2090
    %v2375 = vpack.c.b16 %v2095, %v2091
    %v2376 = vpack.c.b16 %v2100, %v2096
    %v2377 = vpack.c.b16 %v2101, %v2097
    %v2378 = vpack.c.b16 %v2102, %v2098
    %v2379 = vpack.c.b16 %v2103, %v2099
    %v2380 = vpack.c.b16 %v2108, %v2104
    %v2381 = vpack.c.b16 %v2109, %v2105
    %v2382 = vpack.c.b16 %v2110, %v2106
    %v2383 = vpack.c.b16 %v2111, %v2107
    %v2384 = vpack.c.b16 %v2116, %v2112
    %v2385 = vpack.c.b16 %v2117, %v2113
    %v2386 = vpack.c.b16 %v2118, %v2114
    %v2387 = vpack.c.b16 %v2119, %v2115
    %v2388 = vpack.c.b16 %v2124, %v2120
    %v2389 = vpack.c.b16 %v2125, %v2121
    %v2390 = vpack.c.b16 %v2126, %v2122
    %v2391 = vpack.c.b16 %v2127, %v2123
    %v2392 = vpack.c.b16 %v2132, %v2128
    %v2393 = vpack.c.b16 %v2133, %v2129
    %v2394 = vpack.c.b16 %v2134, %v2130
    %v2395 = vpack.c.b16 %v2135, %v2131
    %v2396 = vpack.c.b16 %v2140, %v2136
    %v2397 = vpack.c.b16 %v2141, %v2137
    %v2398 = vpack.c.b16 %v2142, %v2138
    %v2399 = vpack.c.b16 %v2143, %v2139
    %2656 = vmatprep.subr.bf16.mxu0 %v2173
    %2657 = vmatpush1.bf16.msra.mxu0 %v2172
    %2658 = vmatprep.subr.bf16.mxu0 %v2169
    %2659 = vmatpush1.bf16.msra.mxu0 %v2168
    %2660 = vmatprep.subr.bf16.mxu0 %v2165
    %2661 = vmatpush1.bf16.msra.mxu0 %v2164
    %2662 = vmatprep.subr.bf16.mxu0 %v2161
    %2663 = vmatpush1.bf16.msra.mxu0 %v2160
    %2664 = vmatprep.subr.bf16.mxu0 %v2157
    %2665 = vmatpush1.bf16.msra.mxu0 %v2156
    %2666 = vmatprep.subr.bf16.mxu0 %v2153
    %2667 = vmatpush1.bf16.msra.mxu0 %v2152
    %2668 = vmatprep.subr.bf16.mxu0 %v2149
    %2669 = vmatpush1.bf16.msra.mxu0 %v2148
    %2670 = vmatprep.subr.bf16.mxu0 %v2145
    %2671 = vmatpush1.bf16.msra.mxu0 %v2144
    %2672 = vmatprep.subr.bf16.mxu0 %v2205
    %2673 = vmatpush2.bf16.msra.mxu0 %v2204
    %2674 = vmatprep.subr.bf16.mxu0 %v2201
    %2675 = vmatpush2.bf16.msra.mxu0 %v2200
    %2676 = vmatprep.subr.bf16.mxu0 %v2197
    %2677 = vmatpush2.bf16.msra.mxu0 %v2196
    %2678 = vmatprep.subr.bf16.mxu0 %v2193
    %2679 = vmatpush2.bf16.msra.mxu0 %v2192
    %2680 = vmatprep.subr.bf16.mxu0 %v2189
    %2681 = vmatpush2.bf16.msra.mxu0 %v2188
    %2682 = vmatprep.subr.bf16.mxu0 %v2185
    %2683 = vmatpush2.bf16.msra.mxu0 %v2184
    %2684 = vmatprep.subr.bf16.mxu0 %v2181
    %2685 = vmatpush2.bf16.msra.mxu0 %v2180
    %2686 = vmatprep.subr.bf16.mxu0 %v2177
    %2687 = vmatpush2.bf16.msra.mxu0 %v2176
    %2688 = vmatprep.mubr.bf16.mxu0 %v1091
    %2689 = vmatmul.mubr.bf16.gmra.mxu0 %v1090
    %v2690 = vpop.f32.mrf.mxu0
    %v2691 = vadd.f32 %v1359, %v2690
    %v2692 = vpop.f32.mrf.mxu0
    %v2693 = vadd.f32 %v1363, %v2692
    %v2694 = vpop.f32.mrf.mxu0
    %v2695 = vpop.f32.mrf.mxu0
    %2696 = vdwg.mxu0
    %2697 = vmatprep.subr.bf16.mxu0 %v2237
    %2698 = vmatpush1.bf16.msra.mxu0 %v2236
    %2699 = vmatprep.subr.bf16.mxu0 %v2233
    %2700 = vmatpush1.bf16.msra.mxu0 %v2232
    %2701 = vmatprep.subr.bf16.mxu0 %v2229
    %2702 = vmatpush1.bf16.msra.mxu0 %v2228
    %2703 = vmatprep.subr.bf16.mxu0 %v2225
    %2704 = vmatpush1.bf16.msra.mxu0 %v2224
    %2705 = vmatprep.subr.bf16.mxu0 %v2221
    %2706 = vmatpush1.bf16.msra.mxu0 %v2220
    %2707 = vmatprep.subr.bf16.mxu0 %v2217
    %2708 = vmatpush1.bf16.msra.mxu0 %v2216
    %2709 = vmatprep.subr.bf16.mxu0 %v2213
    %2710 = vmatpush1.bf16.msra.mxu0 %v2212
    %2711 = vmatprep.subr.bf16.mxu0 %v2209
    %2712 = vmatpush1.bf16.msra.mxu0 %v2208
    %2713 = vmatprep.subr.bf16.mxu0 %v2269
    %2714 = vmatpush2.bf16.msra.mxu0 %v2268
    %2715 = vmatprep.subr.bf16.mxu0 %v2265
    %2716 = vmatpush2.bf16.msra.mxu0 %v2264
    %2717 = vmatprep.subr.bf16.mxu0 %v2261
    %2718 = vmatpush2.bf16.msra.mxu0 %v2260
    %2719 = vmatprep.subr.bf16.mxu0 %v2257
    %2720 = vmatpush2.bf16.msra.mxu0 %v2256
    %2721 = vmatprep.subr.bf16.mxu0 %v2253
    %2722 = vmatpush2.bf16.msra.mxu0 %v2252
    %2723 = vmatprep.subr.bf16.mxu0 %v2249
    %2724 = vmatpush2.bf16.msra.mxu0 %v2248
    %2725 = vmatprep.subr.bf16.mxu0 %v2245
    %2726 = vmatpush2.bf16.msra.mxu0 %v2244
    %2727 = vmatprep.subr.bf16.mxu0 %v2241
    %2728 = vmatpush2.bf16.msra.mxu0 %v2240
    %2729 = vmatprep.mubr.bf16.mxu0 %v1093
    %2730 = vmatmul.mubr.bf16.gmra.mxu0 %v1092
    %v2731 = vpop.f32.mrf.mxu0
    %v2732 = vadd.f32 %v2691, %v2731
    %v2733 = vpop.f32.mrf.mxu0
    %v2734 = vadd.f32 %v2693, %v2733
    %v2735 = vpop.f32.mrf.mxu0
    %v2736 = vpop.f32.mrf.mxu0
    %2737 = vdwg.mxu0
    %2738 = vmatprep.subr.bf16.mxu0 %v2301
    %2739 = vmatpush1.bf16.msra.mxu0 %v2300
    %2740 = vmatprep.subr.bf16.mxu0 %v2297
    %2741 = vmatpush1.bf16.msra.mxu0 %v2296
    %2742 = vmatprep.subr.bf16.mxu0 %v2293
    %2743 = vmatpush1.bf16.msra.mxu0 %v2292
    %2744 = vmatprep.subr.bf16.mxu0 %v2289
    %2745 = vmatpush1.bf16.msra.mxu0 %v2288
    %2746 = vmatprep.subr.bf16.mxu0 %v2285
    %2747 = vmatpush1.bf16.msra.mxu0 %v2284
    %2748 = vmatprep.subr.bf16.mxu0 %v2281
    %2749 = vmatpush1.bf16.msra.mxu0 %v2280
    %2750 = vmatprep.subr.bf16.mxu0 %v2277
    %2751 = vmatpush1.bf16.msra.mxu0 %v2276
    %2752 = vmatprep.subr.bf16.mxu0 %v2273
    %2753 = vmatpush1.bf16.msra.mxu0 %v2272
    %2754 = vmatprep.subr.bf16.mxu0 %v2333
    %2755 = vmatpush2.bf16.msra.mxu0 %v2332
    %2756 = vmatprep.subr.bf16.mxu0 %v2329
    %2757 = vmatpush2.bf16.msra.mxu0 %v2328
    %2758 = vmatprep.subr.bf16.mxu0 %v2325
    %2759 = vmatpush2.bf16.msra.mxu0 %v2324
    %2760 = vmatprep.subr.bf16.mxu0 %v2321
    %2761 = vmatpush2.bf16.msra.mxu0 %v2320
    %2762 = vmatprep.subr.bf16.mxu0 %v2317
    %2763 = vmatpush2.bf16.msra.mxu0 %v2316
    %2764 = vmatprep.subr.bf16.mxu0 %v2313
    %2765 = vmatpush2.bf16.msra.mxu0 %v2312
    %2766 = vmatprep.subr.bf16.mxu0 %v2309
    %2767 = vmatpush2.bf16.msra.mxu0 %v2308
    %2768 = vmatprep.subr.bf16.mxu0 %v2305
    %2769 = vmatpush2.bf16.msra.mxu0 %v2304
    %2770 = vmatprep.mubr.bf16.mxu0 %v1095
    %2771 = vmatmul.mubr.bf16.gmra.mxu0 %v1094
    %v2772 = vpop.f32.mrf.mxu0
    %v2773 = vadd.f32 %v2732, %v2772
    %v2774 = vpop.f32.mrf.mxu0
    %v2775 = vadd.f32 %v2734, %v2774
    %v2776 = vpop.f32.mrf.mxu0
    %v2777 = vpop.f32.mrf.mxu0
    %2778 = vdwg.mxu0
    %2779 = vmatprep.subr.bf16.mxu0 %v2365
    %2780 = vmatpush1.bf16.msra.mxu0 %v2364
    %2781 = vmatprep.subr.bf16.mxu0 %v2361
    %2782 = vmatpush1.bf16.msra.mxu0 %v2360
    %2783 = vmatprep.subr.bf16.mxu0 %v2357
    %2784 = vmatpush1.bf16.msra.mxu0 %v2356
    %2785 = vmatprep.subr.bf16.mxu0 %v2353
    %2786 = vmatpush1.bf16.msra.mxu0 %v2352
    %2787 = vmatprep.subr.bf16.mxu0 %v2349
    %2788 = vmatpush1.bf16.msra.mxu0 %v2348
    %2789 = vmatprep.subr.bf16.mxu0 %v2345
    %2790 = vmatpush1.bf16.msra.mxu0 %v2344
    %2791 = vmatprep.subr.bf16.mxu0 %v2341
    %2792 = vmatpush1.bf16.msra.mxu0 %v2340
    %2793 = vmatprep.subr.bf16.mxu0 %v2337
    %2794 = vmatpush1.bf16.msra.mxu0 %v2336
    %2795 = vmatprep.subr.bf16.mxu0 %v2397
    %2796 = vmatpush2.bf16.msra.mxu0 %v2396
    %2797 = vmatprep.subr.bf16.mxu0 %v2393
    %2798 = vmatpush2.bf16.msra.mxu0 %v2392
    %2799 = vmatprep.subr.bf16.mxu0 %v2389
    %2800 = vmatpush2.bf16.msra.mxu0 %v2388
    %2801 = vmatprep.subr.bf16.mxu0 %v2385
    %2802 = vmatpush2.bf16.msra.mxu0 %v2384
    %2803 = vmatprep.subr.bf16.mxu0 %v2381
    %2804 = vmatpush2.bf16.msra.mxu0 %v2380
    %2805 = vmatprep.subr.bf16.mxu0 %v2377
    %2806 = vmatpush2.bf16.msra.mxu0 %v2376
    %2807 = vmatprep.subr.bf16.mxu0 %v2373
    %2808 = vmatpush2.bf16.msra.mxu0 %v2372
    %2809 = vmatprep.subr.bf16.mxu0 %v2369
    %2810 = vmatpush2.bf16.msra.mxu0 %v2368
    %2811 = vmatprep.mubr.bf16.mxu0 %v1097
    %2812 = vmatmul.mubr.bf16.gmra.mxu0 %v1096
    %v2813 = vpop.f32.mrf.mxu0
    %v2814 = vadd.f32 %v2773, %v2813
    %v2815 = vpop.f32.mrf.mxu0
    %v2816 = vadd.f32 %v2775, %v2815
    %v2817 = vpop.f32.mrf.mxu0
    %v2818 = vpop.f32.mrf.mxu0
    %2819 = vdwg.mxu0
    %2820 = vmatprep.subr.bf16.mxu0 %v2175
    %2821 = vmatpush1.bf16.msra.mxu0 %v2174
    %2822 = vmatprep.subr.bf16.mxu0 %v2171
    %2823 = vmatpush1.bf16.msra.mxu0 %v2170
    %2824 = vmatprep.subr.bf16.mxu0 %v2167
    %2825 = vmatpush1.bf16.msra.mxu0 %v2166
    %2826 = vmatprep.subr.bf16.mxu0 %v2163
    %2827 = vmatpush1.bf16.msra.mxu0 %v2162
    %2828 = vmatprep.subr.bf16.mxu0 %v2159
    %2829 = vmatpush1.bf16.msra.mxu0 %v2158
    %2830 = vmatprep.subr.bf16.mxu0 %v2155
    %2831 = vmatpush1.bf16.msra.mxu0 %v2154
    %2832 = vmatprep.subr.bf16.mxu0 %v2151
    %2833 = vmatpush1.bf16.msra.mxu0 %v2150
    %2834 = vmatprep.subr.bf16.mxu0 %v2147
    %2835 = vmatpush1.bf16.msra.mxu0 %v2146
    %2836 = vmatprep.subr.bf16.mxu0 %v2207
    %2837 = vmatpush2.bf16.msra.mxu0 %v2206
    %2838 = vmatprep.subr.bf16.mxu0 %v2203
    %2839 = vmatpush2.bf16.msra.mxu0 %v2202
    %2840 = vmatprep.subr.bf16.mxu0 %v2199
    %2841 = vmatpush2.bf16.msra.mxu0 %v2198
    %2842 = vmatprep.subr.bf16.mxu0 %v2195
    %2843 = vmatpush2.bf16.msra.mxu0 %v2194
    %2844 = vmatprep.subr.bf16.mxu0 %v2191
    %2845 = vmatpush2.bf16.msra.mxu0 %v2190
    %2846 = vmatprep.subr.bf16.mxu0 %v2187
    %2847 = vmatpush2.bf16.msra.mxu0 %v2186
    %2848 = vmatprep.subr.bf16.mxu0 %v2183
    %2849 = vmatpush2.bf16.msra.mxu0 %v2182
    %2850 = vmatprep.subr.bf16.mxu0 %v2179
    %2851 = vmatpush2.bf16.msra.mxu0 %v2178
    %2852 = vmatprep.mubr.bf16.mxu0 %v1091
    %2853 = vmatmul.mubr.bf16.gmra.mxu0 %v1090
    %v2854 = vpop.f32.mrf.mxu0
    %v2855 = vadd.f32 %v1367, %v2854
    %v2856 = vpop.f32.mrf.mxu0
    %v2857 = vadd.f32 %v1371, %v2856
    %v2858 = vpop.f32.mrf.mxu0
    %v2859 = vpop.f32.mrf.mxu0
    %2860 = vdwg.mxu0
    %2861 = vmatprep.subr.bf16.mxu0 %v2239
    %2862 = vmatpush1.bf16.msra.mxu0 %v2238
    %2863 = vmatprep.subr.bf16.mxu0 %v2235
    %2864 = vmatpush1.bf16.msra.mxu0 %v2234
    %2865 = vmatprep.subr.bf16.mxu0 %v2231
    %2866 = vmatpush1.bf16.msra.mxu0 %v2230
    %2867 = vmatprep.subr.bf16.mxu0 %v2227
    %2868 = vmatpush1.bf16.msra.mxu0 %v2226
    %2869 = vmatprep.subr.bf16.mxu0 %v2223
    %2870 = vmatpush1.bf16.msra.mxu0 %v2222
    %2871 = vmatprep.subr.bf16.mxu0 %v2219
    %2872 = vmatpush1.bf16.msra.mxu0 %v2218
    %2873 = vmatprep.subr.bf16.mxu0 %v2215
    %2874 = vmatpush1.bf16.msra.mxu0 %v2214
    %2875 = vmatprep.subr.bf16.mxu0 %v2211
    %2876 = vmatpush1.bf16.msra.mxu0 %v2210
    %2877 = vmatprep.subr.bf16.mxu0 %v2271
    %2878 = vmatpush2.bf16.msra.mxu0 %v2270
    %2879 = vmatprep.subr.bf16.mxu0 %v2267
    %2880 = vmatpush2.bf16.msra.mxu0 %v2266
    %2881 = vmatprep.subr.bf16.mxu0 %v2263
    %2882 = vmatpush2.bf16.msra.mxu0 %v2262
    %2883 = vmatprep.subr.bf16.mxu0 %v2259
    %2884 = vmatpush2.bf16.msra.mxu0 %v2258
    %2885 = vmatprep.subr.bf16.mxu0 %v2255
    %2886 = vmatpush2.bf16.msra.mxu0 %v2254
    %2887 = vmatprep.subr.bf16.mxu0 %v2251
    %2888 = vmatpush2.bf16.msra.mxu0 %v2250
    %2889 = vmatprep.subr.bf16.mxu0 %v2247
    %2890 = vmatpush2.bf16.msra.mxu0 %v2246
    %2891 = vmatprep.subr.bf16.mxu0 %v2243
    %2892 = vmatpush2.bf16.msra.mxu0 %v2242
    %2893 = vmatprep.mubr.bf16.mxu0 %v1093
    %2894 = vmatmul.mubr.bf16.gmra.mxu0 %v1092
    %v2895 = vpop.f32.mrf.mxu0
    %v2896 = vadd.f32 %v2855, %v2895
    %v2897 = vpop.f32.mrf.mxu0
    %v2898 = vadd.f32 %v2857, %v2897
    %v2899 = vpop.f32.mrf.mxu0
    %v2900 = vpop.f32.mrf.mxu0
    %2901 = vdwg.mxu0
    %2902 = vmatprep.subr.bf16.mxu0 %v2303
    %2903 = vmatpush1.bf16.msra.mxu0 %v2302
    %2904 = vmatprep.subr.bf16.mxu0 %v2299
    %2905 = vmatpush1.bf16.msra.mxu0 %v2298
    %2906 = vmatprep.subr.bf16.mxu0 %v2295
    %2907 = vmatpush1.bf16.msra.mxu0 %v2294
    %2908 = vmatprep.subr.bf16.mxu0 %v2291
    %2909 = vmatpush1.bf16.msra.mxu0 %v2290
    %2910 = vmatprep.subr.bf16.mxu0 %v2287
    %2911 = vmatpush1.bf16.msra.mxu0 %v2286
    %2912 = vmatprep.subr.bf16.mxu0 %v2283
    %2913 = vmatpush1.bf16.msra.mxu0 %v2282
    %2914 = vmatprep.subr.bf16.mxu0 %v2279
    %2915 = vmatpush1.bf16.msra.mxu0 %v2278
    %2916 = vmatprep.subr.bf16.mxu0 %v2275
    %2917 = vmatpush1.bf16.msra.mxu0 %v2274
    %2918 = vmatprep.subr.bf16.mxu0 %v2335
    %2919 = vmatpush2.bf16.msra.mxu0 %v2334
    %2920 = vmatprep.subr.bf16.mxu0 %v2331
    %2921 = vmatpush2.bf16.msra.mxu0 %v2330
    %2922 = vmatprep.subr.bf16.mxu0 %v2327
    %2923 = vmatpush2.bf16.msra.mxu0 %v2326
    %2924 = vmatprep.subr.bf16.mxu0 %v2323
    %2925 = vmatpush2.bf16.msra.mxu0 %v2322
    %2926 = vmatprep.subr.bf16.mxu0 %v2319
    %2927 = vmatpush2.bf16.msra.mxu0 %v2318
    %2928 = vmatprep.subr.bf16.mxu0 %v2315
    %2929 = vmatpush2.bf16.msra.mxu0 %v2314
    %2930 = vmatprep.subr.bf16.mxu0 %v2311
    %2931 = vmatpush2.bf16.msra.mxu0 %v2310
    %2932 = vmatprep.subr.bf16.mxu0 %v2307
    %2933 = vmatpush2.bf16.msra.mxu0 %v2306
    %2934 = vmatprep.mubr.bf16.mxu0 %v1095
    %2935 = vmatmul.mubr.bf16.gmra.mxu0 %v1094
    %v2936 = vpop.f32.mrf.mxu0
    %v2937 = vadd.f32 %v2896, %v2936
    %v2938 = vpop.f32.mrf.mxu0
    %v2939 = vadd.f32 %v2898, %v2938
    %v2940 = vpop.f32.mrf.mxu0
    %v2941 = vpop.f32.mrf.mxu0
    %2942 = vdwg.mxu0
    %2943 = vmatprep.subr.bf16.mxu0 %v2367
    %2944 = vmatpush1.bf16.msra.mxu0 %v2366
    %2945 = vmatprep.subr.bf16.mxu0 %v2363
    %2946 = vmatpush1.bf16.msra.mxu0 %v2362
    %2947 = vmatprep.subr.bf16.mxu0 %v2359
    %2948 = vmatpush1.bf16.msra.mxu0 %v2358
    %2949 = vmatprep.subr.bf16.mxu0 %v2355
    %2950 = vmatpush1.bf16.msra.mxu0 %v2354
    %2951 = vmatprep.subr.bf16.mxu0 %v2351
    %2952 = vmatpush1.bf16.msra.mxu0 %v2350
    %2953 = vmatprep.subr.bf16.mxu0 %v2347
    %2954 = vmatpush1.bf16.msra.mxu0 %v2346
    %2955 = vmatprep.subr.bf16.mxu0 %v2343
    %2956 = vmatpush1.bf16.msra.mxu0 %v2342
    %2957 = vmatprep.subr.bf16.mxu0 %v2339
    %2958 = vmatpush1.bf16.msra.mxu0 %v2338
    %2959 = vmatprep.subr.bf16.mxu0 %v2399
    %2960 = vmatpush2.bf16.msra.mxu0 %v2398
    %2961 = vmatprep.subr.bf16.mxu0 %v2395
    %2962 = vmatpush2.bf16.msra.mxu0 %v2394
    %2963 = vmatprep.subr.bf16.mxu0 %v2391
    %2964 = vmatpush2.bf16.msra.mxu0 %v2390
    %2965 = vmatprep.subr.bf16.mxu0 %v2387
    %2966 = vmatpush2.bf16.msra.mxu0 %v2386
    %2967 = vmatprep.subr.bf16.mxu0 %v2383
    %2968 = vmatpush2.bf16.msra.mxu0 %v2382
    %2969 = vmatprep.subr.bf16.mxu0 %v2379
    %2970 = vmatpush2.bf16.msra.mxu0 %v2378
    %2971 = vmatprep.subr.bf16.mxu0 %v2375
    %2972 = vmatpush2.bf16.msra.mxu0 %v2374
    %2973 = vmatprep.subr.bf16.mxu0 %v2371
    %2974 = vmatpush2.bf16.msra.mxu0 %v2370
    %2975 = vmatprep.mubr.bf16.mxu0 %v1097
    %2976 = vmatmul.mubr.bf16.gmra.mxu0 %v1096
    %v2977 = vpop.f32.mrf.mxu0
    %v2978 = vadd.f32 %v2937, %v2977
    %v2979 = vpop.f32.mrf.mxu0
    %v2980 = vadd.f32 %v2939, %v2979
    %v2981 = vpop.f32.mrf.mxu0
    %v2982 = vpop.f32.mrf.mxu0
    %2983 = vdwg.mxu0
    %v2984 = vmax.f32 %v2814, 0.0
    %v2985 = vmax.f32 %v2816, 0.0
    %v2986 = vmax.f32 %v2978, 0.0
    %v2987 = vmax.f32 %v2980, 0.0
    %v2988 = vpack.c.bf16 %v2984, %v2984
    %v2989 = vpack.c.bf16 %v2985, %v2985
    %v2990 = vpack.c.bf16 %v2986, %v2986
    %v2991 = vpack.c.bf16 %v2987, %v2987
    %v2992 = vld [vmem:[%s5] sm:$0xf]
    %v2993 = vld [vmem:[%s5 + $0x4] sm:$0xf]
    %v2994 = vld [vmem:[%s5 + $0x8] sm:$0xf]
    %v2995 = vld [vmem:[%s5 + $0xc] sm:$0xf]
    %v2996 = vld [vmem:[%s5 + $0x10] sm:$0xf]
    %v2997 = vld [vmem:[%s5 + $0x14] sm:$0xf]
    %v2998 = vld [vmem:[%s5 + $0x18] sm:$0xf]
    %v2999 = vld [vmem:[%s5 + $0x1c] sm:$0xf]
    %v3000 = vld [vmem:[%s5 + $0x20] sm:$0xf]
    %v3001 = vld [vmem:[%s5 + $0x24] sm:$0xf]
    %v3002 = vld [vmem:[%s5 + $0x28] sm:$0xf]
    %v3003 = vld [vmem:[%s5 + $0x2c] sm:$0xf]
    %v3004 = vld [vmem:[%s5 + $0x30] sm:$0xf]
    %v3005 = vld [vmem:[%s5 + $0x34] sm:$0xf]
    %v3006 = vld [vmem:[%s5 + $0x38] sm:$0xf]
    %v3007 = vld [vmem:[%s5 + $0x3c] sm:$0xf]
    %v3008 = vld [vmem:[%s5 + $0x40] sm:$0xf]
    %v3009 = vld [vmem:[%s5 + $0x44] sm:$0xf]
    %v3010 = vld [vmem:[%s5 + $0x48] sm:$0xf]
    %v3011 = vld [vmem:[%s5 + $0x4c] sm:$0xf]
    %v3012 = vld [vmem:[%s5 + $0x50] sm:$0xf]
    %v3013 = vld [vmem:[%s5 + $0x54] sm:$0xf]
    %v3014 = vld [vmem:[%s5 + $0x58] sm:$0xf]
    %v3015 = vld [vmem:[%s5 + $0x5c] sm:$0xf]
    %v3016 = vld [vmem:[%s5 + $0x60] sm:$0xf]
    %v3017 = vld [vmem:[%s5 + $0x64] sm:$0xf]
    %v3018 = vld [vmem:[%s5 + $0x68] sm:$0xf]
    %v3019 = vld [vmem:[%s5 + $0x6c] sm:$0xf]
    %v3020 = vld [vmem:[%s5 + $0x70] sm:$0xf]
    %v3021 = vld [vmem:[%s5 + $0x74] sm:$0xf]
    %v3022 = vld [vmem:[%s5 + $0x78] sm:$0xf]
    %v3023 = vld [vmem:[%s5 + $0x7c] sm:$0xf]
    %v3024 = vld [vmem:[%s5 + $0x80] sm:$0xf]
    %v3025 = vld [vmem:[%s5 + $0x84] sm:$0xf]
    %v3026 = vld [vmem:[%s5 + $0x88] sm:$0xf]
    %v3027 = vld [vmem:[%s5 + $0x8c] sm:$0xf]
    %v3028 = vld [vmem:[%s5 + $0x90] sm:$0xf]
    %v3029 = vld [vmem:[%s5 + $0x94] sm:$0xf]
    %v3030 = vld [vmem:[%s5 + $0x98] sm:$0xf]
    %v3031 = vld [vmem:[%s5 + $0x9c] sm:$0xf]
    %v3032 = vld [vmem:[%s5 + $0xa0] sm:$0xf]
    %v3033 = vld [vmem:[%s5 + $0xa4] sm:$0xf]
    %v3034 = vld [vmem:[%s5 + $0xa8] sm:$0xf]
    %v3035 = vld [vmem:[%s5 + $0xac] sm:$0xf]
    %v3036 = vld [vmem:[%s5 + $0xb0] sm:$0xf]
    %v3037 = vld [vmem:[%s5 + $0xb4] sm:$0xf]
    %v3038 = vld [vmem:[%s5 + $0xb8] sm:$0xf]
    %v3039 = vld [vmem:[%s5 + $0xbc] sm:$0xf]
    %v3040 = vld [vmem:[%s5 + $0xc0] sm:$0xf]
    %v3041 = vld [vmem:[%s5 + $0xc4] sm:$0xf]
    %v3042 = vld [vmem:[%s5 + $0xc8] sm:$0xf]
    %v3043 = vld [vmem:[%s5 + $0xcc] sm:$0xf]
    %v3044 = vld [vmem:[%s5 + $0xd0] sm:$0xf]
    %v3045 = vld [vmem:[%s5 + $0xd4] sm:$0xf]
    %v3046 = vld [vmem:[%s5 + $0xd8] sm:$0xf]
    %v3047 = vld [vmem:[%s5 + $0xdc] sm:$0xf]
    %v3048 = vld [vmem:[%s5 + $0xe0] sm:$0xf]
    %v3049 = vld [vmem:[%s5 + $0xe4] sm:$0xf]
    %v3050 = vld [vmem:[%s5 + $0xe8] sm:$0xf]
    %v3051 = vld [vmem:[%s5 + $0xec] sm:$0xf]
    %v3052 = vld [vmem:[%s5 + $0xf0] sm:$0xf]
    %v3053 = vld [vmem:[%s5 + $0xf4] sm:$0xf]
    %v3054 = vld [vmem:[%s5 + $0xf8] sm:$0xf]
    %v3055 = vld [vmem:[%s5 + $0xfc] sm:$0xf]
    %v3056 = vld [vmem:[%s6] sm:$0x1]
    %v3058 = vlaneseq
    %v3059 = vshrl.u32 %v3058, 7
    %v3060 = vsub.s32 0, %v3059
    %v3061 = vrot.slane %v3056, %v3060
    %v3127 = vunpack.c.l.b16 %v2992
    %v3128 = vunpack.c.l.b16 %v2993
    %v3129 = vunpack.c.l.b16 %v2994
    %v3130 = vunpack.c.l.b16 %v2995
    %v3131 = vunpack.c.l.b16 %v2996
    %v3132 = vunpack.c.l.b16 %v2997
    %v3133 = vunpack.c.l.b16 %v2998
    %v3134 = vunpack.c.l.b16 %v2999
    %v3135 = vunpack.c.l.b16 %v3000
    %v3136 = vunpack.c.l.b16 %v3001
    %v3137 = vunpack.c.l.b16 %v3002
    %v3138 = vunpack.c.l.b16 %v3003
    %v3139 = vunpack.c.l.b16 %v3004
    %v3140 = vunpack.c.l.b16 %v3005
    %v3141 = vunpack.c.l.b16 %v3006
    %v3142 = vunpack.c.l.b16 %v3007
    %v3143 = vunpack.c.l.b16 %v3008
    %v3144 = vunpack.c.l.b16 %v3009
    %v3145 = vunpack.c.l.b16 %v3010
    %v3146 = vunpack.c.l.b16 %v3011
    %v3147 = vunpack.c.l.b16 %v3012
    %v3148 = vunpack.c.l.b16 %v3013
    %v3149 = vunpack.c.l.b16 %v3014
    %v3150 = vunpack.c.l.b16 %v3015
    %v3151 = vunpack.c.l.b16 %v3016
    %v3152 = vunpack.c.l.b16 %v3017
    %v3153 = vunpack.c.l.b16 %v3018
    %v3154 = vunpack.c.l.b16 %v3019
    %v3155 = vunpack.c.l.b16 %v3020
    %v3156 = vunpack.c.l.b16 %v3021
    %v3157 = vunpack.c.l.b16 %v3022
    %v3158 = vunpack.c.l.b16 %v3023
    %v3159 = vunpack.c.l.b16 %v3024
    %v3160 = vunpack.c.l.b16 %v3025
    %v3161 = vunpack.c.l.b16 %v3026
    %v3162 = vunpack.c.l.b16 %v3027
    %v3163 = vunpack.c.l.b16 %v3028
    %v3164 = vunpack.c.l.b16 %v3029
    %v3165 = vunpack.c.l.b16 %v3030
    %v3166 = vunpack.c.l.b16 %v3031
    %v3167 = vunpack.c.l.b16 %v3032
    %v3168 = vunpack.c.l.b16 %v3033
    %v3169 = vunpack.c.l.b16 %v3034
    %v3170 = vunpack.c.l.b16 %v3035
    %v3171 = vunpack.c.l.b16 %v3036
    %v3172 = vunpack.c.l.b16 %v3037
    %v3173 = vunpack.c.l.b16 %v3038
    %v3174 = vunpack.c.l.b16 %v3039
    %v3175 = vunpack.c.l.b16 %v3040
    %v3176 = vunpack.c.l.b16 %v3041
    %v3177 = vunpack.c.l.b16 %v3042
    %v3178 = vunpack.c.l.b16 %v3043
    %v3179 = vunpack.c.l.b16 %v3044
    %v3180 = vunpack.c.l.b16 %v3045
    %v3181 = vunpack.c.l.b16 %v3046
    %v3182 = vunpack.c.l.b16 %v3047
    %v3183 = vunpack.c.l.b16 %v3048
    %v3184 = vunpack.c.l.b16 %v3049
    %v3185 = vunpack.c.l.b16 %v3050
    %v3186 = vunpack.c.l.b16 %v3051
    %v3187 = vunpack.c.l.b16 %v3052
    %v3188 = vunpack.c.l.b16 %v3053
    %v3189 = vunpack.c.l.b16 %v3054
    %v3190 = vunpack.c.l.b16 %v3055
    %v3191 = vpack.c.b16 %v3128, %v3127
    %v3192 = vpack.c.b16 %v3130, %v3129
    %v3193 = vpack.c.b16 %v3132, %v3131
    %v3194 = vpack.c.b16 %v3134, %v3133
    %v3195 = vpack.c.b16 %v3136, %v3135
    %v3196 = vpack.c.b16 %v3138, %v3137
    %v3197 = vpack.c.b16 %v3140, %v3139
    %v3198 = vpack.c.b16 %v3142, %v3141
    %v3199 = vpack.c.b16 %v3144, %v3143
    %v3200 = vpack.c.b16 %v3146, %v3145
    %v3201 = vpack.c.b16 %v3148, %v3147
    %v3202 = vpack.c.b16 %v3150, %v3149
    %v3203 = vpack.c.b16 %v3152, %v3151
    %v3204 = vpack.c.b16 %v3154, %v3153
    %v3205 = vpack.c.b16 %v3156, %v3155
    %v3206 = vpack.c.b16 %v3158, %v3157
    %v3207 = vpack.c.b16 %v3160, %v3159
    %v3208 = vpack.c.b16 %v3162, %v3161
    %v3209 = vpack.c.b16 %v3164, %v3163
    %v3210 = vpack.c.b16 %v3166, %v3165
    %v3211 = vpack.c.b16 %v3168, %v3167
    %v3212 = vpack.c.b16 %v3170, %v3169
    %v3213 = vpack.c.b16 %v3172, %v3171
    %v3214 = vpack.c.b16 %v3174, %v3173
    %v3215 = vpack.c.b16 %v3176, %v3175
    %v3216 = vpack.c.b16 %v3178, %v3177
    %v3217 = vpack.c.b16 %v3180, %v3179
    %v3218 = vpack.c.b16 %v3182, %v3181
    %v3219 = vpack.c.b16 %v3184, %v3183
    %v3220 = vpack.c.b16 %v3186, %v3185
    %v3221 = vpack.c.b16 %v3188, %v3187
    %v3222 = vpack.c.b16 %v3190, %v3189
    %3255 = vmatprep.subr.bf16.mxu0 0
    %3256 = vmatpush1.bf16.msra.mxu0 %v3198
    %3257 = vmatprep.subr.bf16.mxu0 0
    %3258 = vmatpush1.bf16.msra.mxu0 %v3197
    %3259 = vmatprep.subr.bf16.mxu0 0
    %3260 = vmatpush1.bf16.msra.mxu0 %v3196
    %3261 = vmatprep.subr.bf16.mxu0 0
    %3262 = vmatpush1.bf16.msra.mxu0 %v3195
    %3263 = vmatprep.subr.bf16.mxu0 0
    %3264 = vmatpush1.bf16.msra.mxu0 %v3194
    %3265 = vmatprep.subr.bf16.mxu0 0
    %3266 = vmatpush1.bf16.msra.mxu0 %v3193
    %3267 = vmatprep.subr.bf16.mxu0 0
    %3268 = vmatpush1.bf16.msra.mxu0 %v3192
    %3269 = vmatprep.subr.bf16.mxu0 0
    %3270 = vmatpush1.bf16.msra.mxu0 %v3191
    %3271 = vmatprep.subr.bf16.mxu0 0
    %3272 = vmatpush2.bf16.msra.mxu0 %v3206
    %3273 = vmatprep.subr.bf16.mxu0 0
    %3274 = vmatpush2.bf16.msra.mxu0 %v3205
    %3275 = vmatprep.subr.bf16.mxu0 0
    %3276 = vmatpush2.bf16.msra.mxu0 %v3204
    %3277 = vmatprep.subr.bf16.mxu0 0
    %3278 = vmatpush2.bf16.msra.mxu0 %v3203
    %3279 = vmatprep.subr.bf16.mxu0 0
    %3280 = vmatpush2.bf16.msra.mxu0 %v3202
    %3281 = vmatprep.subr.bf16.mxu0 0
    %3282 = vmatpush2.bf16.msra.mxu0 %v3201
    %3283 = vmatprep.subr.bf16.mxu0 0
    %3284 = vmatpush2.bf16.msra.mxu0 %v3200
    %3285 = vmatprep.subr.bf16.mxu0 0
    %3286 = vmatpush2.bf16.msra.mxu0 %v3199
    %3287 = vmatprep.mubr.bf16.mxu0 %v2989
    %3288 = vmatmul.mubr.bf16.gmra.mxu0 %v2988
    %v3289 = vpop.f32.mrf.mxu0
    %v3290 = vadd.f32 %v3061, %v3289
    %v3291 = vpop.f32.mrf.mxu0
    %v3292 = vpop.f32.mrf.mxu0
    %v3293 = vpop.f32.mrf.mxu0
    %3294 = vdwg.mxu0
    %3295 = vmatprep.subr.bf16.mxu0 0
    %3296 = vmatpush1.bf16.msra.mxu0 %v3214
    %3297 = vmatprep.subr.bf16.mxu0 0
    %3298 = vmatpush1.bf16.msra.mxu0 %v3213
    %3299 = vmatprep.subr.bf16.mxu0 0
    %3300 = vmatpush1.bf16.msra.mxu0 %v3212
    %3301 = vmatprep.subr.bf16.mxu0 0
    %3302 = vmatpush1.bf16.msra.mxu0 %v3211
    %3303 = vmatprep.subr.bf16.mxu0 0
    %3304 = vmatpush1.bf16.msra.mxu0 %v3210
    %3305 = vmatprep.subr.bf16.mxu0 0
    %3306 = vmatpush1.bf16.msra.mxu0 %v3209
    %3307 = vmatprep.subr.bf16.mxu0 0
    %3308 = vmatpush1.bf16.msra.mxu0 %v3208
    %3309 = vmatprep.subr.bf16.mxu0 0
    %3310 = vmatpush1.bf16.msra.mxu0 %v3207
    %3311 = vmatprep.subr.bf16.mxu0 0
    %3312 = vmatpush2.bf16.msra.mxu0 %v3222
    %3313 = vmatprep.subr.bf16.mxu0 0
    %3314 = vmatpush2.bf16.msra.mxu0 %v3221
    %3315 = vmatprep.subr.bf16.mxu0 0
    %3316 = vmatpush2.bf16.msra.mxu0 %v3220
    %3317 = vmatprep.subr.bf16.mxu0 0
    %3318 = vmatpush2.bf16.msra.mxu0 %v3219
    %3319 = vmatprep.subr.bf16.mxu0 0
    %3320 = vmatpush2.bf16.msra.mxu0 %v3218
    %3321 = vmatprep.subr.bf16.mxu0 0
    %3322 = vmatpush2.bf16.msra.mxu0 %v3217
    %3323 = vmatprep.subr.bf16.mxu0 0
    %3324 = vmatpush2.bf16.msra.mxu0 %v3216
    %3325 = vmatprep.subr.bf16.mxu0 0
    %3326 = vmatpush2.bf16.msra.mxu0 %v3215
    %3327 = vmatprep.mubr.bf16.mxu0 %v2991
    %3328 = vmatmul.mubr.bf16.gmra.mxu0 %v2990
    %v3329 = vpop.f32.mrf.mxu0
    %v3330 = vadd.f32 %v3290, %v3329
    %v3331 = vpop.f32.mrf.mxu0
    %v3332 = vpop.f32.mrf.mxu0
    %v3333 = vpop.f32.mrf.mxu0
    %3334 = vdwg.mxu0
    %vm3335 = vcmask 261120
    %3336 = vst.msk [vmem:[#allocation10] sm:$0xff] %vm3335, %v3330
    %v3337 = vpack.c.bf16 %v3330, %v3330
    %v3338 = vld [vmem:[%s7] sm:$0xff]
    %v3339 = vld [vmem:[%s7 + $0x8] sm:$0xff]
    %v3340 = vld [vmem:[%s7 + $0x10] sm:$0xff]
    %v3341 = vld [vmem:[%s7 + $0x18] sm:$0xff]
    %v3342 = vld [vmem:[%s7 + $0x20] sm:$0xff]
    %v3343 = vld [vmem:[%s7 + $0x28] sm:$0xff]
    %v3344 = vld [vmem:[%s7 + $0x30] sm:$0xff]
    %v3345 = vld [vmem:[%s7 + $0x38] sm:$0xff]
    %v3346 = vld [vmem:[%s8] sm:$0xf]
    %v3348 = vlaneseq
    %v3349 = vshrl.u32 %v3348, 7
    %v3350 = vsub.s32 0, %v3349
    %v3351 = vrot.slane %v3346, %v3350
    %v3352 = vlaneseq
    %v3353 = vshrl.u32 %v3352, 7
    %v3354 = vsub.s32 1, %v3353
    %v3355 = vrot.slane %v3346, %v3354
    %v3356 = vlaneseq
    %v3357 = vshrl.u32 %v3356, 7
    %v3358 = vsub.s32 2, %v3357
    %v3359 = vrot.slane %v3346, %v3358
    %v3360 = vlaneseq
    %v3361 = vshrl.u32 %v3360, 7
    %v3362 = vsub.s32 3, %v3361
    %v3363 = vrot.slane %v3346, %v3362
    %v3376 = vunpack.c.l.b16 %v3338
    %v3377 = vunpack.c.h.b16 %v3338
    %v3378 = vunpack.c.l.b16 %v3339
    %v3379 = vunpack.c.h.b16 %v3339
    %v3380 = vunpack.c.l.b16 %v3340
    %v3381 = vunpack.c.h.b16 %v3340
    %v3382 = vunpack.c.l.b16 %v3341
    %v3383 = vunpack.c.h.b16 %v3341
    %v3384 = vunpack.c.l.b16 %v3342
    %v3385 = vunpack.c.h.b16 %v3342
    %v3386 = vunpack.c.l.b16 %v3343
    %v3387 = vunpack.c.h.b16 %v3343
    %v3388 = vunpack.c.l.b16 %v3344
    %v3389 = vunpack.c.h.b16 %v3344
    %v3390 = vunpack.c.l.b16 %v3345
    %v3391 = vunpack.c.h.b16 %v3345
    %v3392 = vpack.c.b16 %v3380, %v3376
    %v3393 = vpack.c.b16 %v3381, %v3377
    %v3394 = vpack.c.b16 %v3382, %v3378
    %v3395 = vpack.c.b16 %v3383, %v3379
    %v3396 = vpack.c.b16 %v3388, %v3384
    %v3397 = vpack.c.b16 %v3389, %v3385
    %v3398 = vpack.c.b16 %v3390, %v3386
    %v3399 = vpack.c.b16 %v3391, %v3387
    %v3409 = vsel %vm3335, %v3337, 0
    %3411 = vmatprep.subr.bf16.mxu0 0
    %3412 = vmatpush1.bf16.msra.mxu0 0
    %3413 = vmatprep.subr.bf16.mxu0 0
    %3414 = vmatpush1.bf16.msra.mxu0 0
    %3415 = vmatprep.subr.bf16.mxu0 0
    %3416 = vmatpush1.bf16.msra.mxu0 0
    %3417 = vmatprep.subr.bf16.mxu0 0
    %3418 = vmatpush1.bf16.msra.mxu0 0
    %3419 = vmatprep.subr.bf16.mxu0 0
    %3420 = vmatpush1.bf16.msra.mxu0 0
    %3421 = vmatprep.subr.bf16.mxu0 0
    %3422 = vmatpush1.bf16.msra.mxu0 0
    %3423 = vmatprep.subr.bf16.mxu0 %v3397
    %3424 = vmatpush1.bf16.msra.mxu0 %v3396
    %3425 = vmatprep.subr.bf16.mxu0 %v3393
    %3426 = vmatpush1.bf16.msra.mxu0 %v3392
    %3427 = vmatprep.subr.bf16.mxu0 0
    %3428 = vmatpush2.bf16.msra.mxu0 0
    %3429 = vmatprep.subr.bf16.mxu0 0
    %3430 = vmatpush2.bf16.msra.mxu0 0
    %3431 = vmatprep.subr.bf16.mxu0 0
    %3432 = vmatpush2.bf16.msra.mxu0 0
    %3433 = vmatprep.subr.bf16.mxu0 0
    %3434 = vmatpush2.bf16.msra.mxu0 0
    %3435 = vmatprep.subr.bf16.mxu0 0
    %3436 = vmatpush2.bf16.msra.mxu0 0
    %3437 = vmatprep.subr.bf16.mxu0 0
    %3438 = vmatpush2.bf16.msra.mxu0 0
    %3439 = vmatprep.subr.bf16.mxu0 0
    %3440 = vmatpush2.bf16.msra.mxu0 0
    %3441 = vmatprep.subr.bf16.mxu0 0
    %3442 = vmatpush2.bf16.msra.mxu0 0
    %3443 = vmatprep.mubr.bf16.mxu0 0
    %3444 = vmatmul.mubr.bf16.gmra.mxu0 %v3409
    %v3445 = vpop.f32.mrf.mxu0
    %v3446 = vadd.f32 %v3351, %v3445
    %v3447 = vpop.f32.mrf.mxu0
    %v3448 = vadd.f32 %v3355, %v3447
    %v3449 = vpop.f32.mrf.mxu0
    %v3450 = vpop.f32.mrf.mxu0
    %3451 = vdwg.mxu0
    %3452 = vmatprep.subr.bf16.mxu0 0
    %3453 = vmatpush1.bf16.msra.mxu0 0
    %3454 = vmatprep.subr.bf16.mxu0 0
    %3455 = vmatpush1.bf16.msra.mxu0 0
    %3456 = vmatprep.subr.bf16.mxu0 0
    %3457 = vmatpush1.bf16.msra.mxu0 0
    %3458 = vmatprep.subr.bf16.mxu0 0
    %3459 = vmatpush1.bf16.msra.mxu0 0
    %3460 = vmatprep.subr.bf16.mxu0 0
    %3461 = vmatpush1.bf16.msra.mxu0 0
    %3462 = vmatprep.subr.bf16.mxu0 0
    %3463 = vmatpush1.bf16.msra.mxu0 0
    %3464 = vmatprep.subr.bf16.mxu0 %v3399
    %3465 = vmatpush1.bf16.msra.mxu0 %v3398
    %3466 = vmatprep.subr.bf16.mxu0 %v3395
    %3467 = vmatpush1.bf16.msra.mxu0 %v3394
    %3468 = vmatprep.subr.bf16.mxu0 0
    %3469 = vmatpush2.bf16.msra.mxu0 0
    %3470 = vmatprep.subr.bf16.mxu0 0
    %3471 = vmatpush2.bf16.msra.mxu0 0
    %3472 = vmatprep.subr.bf16.mxu0 0
    %3473 = vmatpush2.bf16.msra.mxu0 0
    %3474 = vmatprep.subr.bf16.mxu0 0
    %3475 = vmatpush2.bf16.msra.mxu0 0
    %3476 = vmatprep.subr.bf16.mxu0 0
    %3477 = vmatpush2.bf16.msra.mxu0 0
    %3478 = vmatprep.subr.bf16.mxu0 0
    %3479 = vmatpush2.bf16.msra.mxu0 0
    %3480 = vmatprep.subr.bf16.mxu0 0
    %3481 = vmatpush2.bf16.msra.mxu0 0
    %3482 = vmatprep.subr.bf16.mxu0 0
    %3483 = vmatpush2.bf16.msra.mxu0 0
    %3484 = vmatprep.mubr.bf16.mxu0 0
    %3485 = vmatmul.mubr.bf16.gmra.mxu0 %v3409
    %v3486 = vpop.f32.mrf.mxu0
    %v3487 = vadd.f32 %v3359, %v3486
    %v3488 = vpop.f32.mrf.mxu0
    %v3489 = vadd.f32 %v3363, %v3488
    %v3490 = vpop.f32.mrf.mxu0
    %v3491 = vpop.f32.mrf.mxu0
    %3492 = vdwg.mxu0
    %v3493 = vmax.f32 %v3446, 0.0
    %v3494 = vmax.f32 %v3448, 0.0
    %v3495 = vmax.f32 %v3487, 0.0
    %v3496 = vmax.f32 %v3489, 0.0
    %v3497 = vpack.c.bf16 %v3493, %v3493
    %v3498 = vpack.c.bf16 %v3494, %v3494
    %v3499 = vpack.c.bf16 %v3495, %v3495
    %v3500 = vpack.c.bf16 %v3496, %v3496
    %v3501 = vld [vmem:[#allocation7] sm:$0xff]
    %v3502 = vld [vmem:[#allocation7 + $0x8] sm:$0xff]
    %v3503 = vld [vmem:[#allocation7 + $0x10] sm:$0xff]
    %v3504 = vld [vmem:[#allocation7 + $0x18] sm:$0xff]
    %v3505 = vld [vmem:[#allocation7 + $0x20] sm:$0xff]
    %v3506 = vld [vmem:[#allocation7 + $0x28] sm:$0xff]
    %v3507 = vld [vmem:[#allocation7 + $0x30] sm:$0xff]
    %v3508 = vld [vmem:[#allocation7 + $0x38] sm:$0xff]
    %v3509 = vld [vmem:[#allocation7 + $0x40] sm:$0xff]
    %v3510 = vld [vmem:[#allocation7 + $0x48] sm:$0xff]
    %v3511 = vld [vmem:[#allocation7 + $0x50] sm:$0xff]
    %v3512 = vld [vmem:[#allocation7 + $0x58] sm:$0xff]
    %v3513 = vld [vmem:[#allocation7 + $0x60] sm:$0xff]
    %v3514 = vld [vmem:[#allocation7 + $0x68] sm:$0xff]
    %v3515 = vld [vmem:[#allocation7 + $0x70] sm:$0xff]
    %v3516 = vld [vmem:[#allocation7 + $0x78] sm:$0xff]
    %v3517 = vld [vmem:[#allocation7 + $0x80] sm:$0xff]
    %v3518 = vld [vmem:[#allocation7 + $0x88] sm:$0xff]
    %v3519 = vld [vmem:[#allocation7 + $0x90] sm:$0xff]
    %v3520 = vld [vmem:[#allocation7 + $0x98] sm:$0xff]
    %v3521 = vld [vmem:[#allocation7 + $0xa0] sm:$0xff]
    %v3522 = vld [vmem:[#allocation7 + $0xa8] sm:$0xff]
    %v3523 = vld [vmem:[#allocation7 + $0xb0] sm:$0xff]
    %v3524 = vld [vmem:[#allocation7 + $0xb8] sm:$0xff]
    %v3525 = vld [vmem:[#allocation7 + $0xc0] sm:$0xff]
    %v3526 = vld [vmem:[#allocation7 + $0xc8] sm:$0xff]
    %v3527 = vld [vmem:[#allocation7 + $0xd0] sm:$0xff]
    %v3528 = vld [vmem:[#allocation7 + $0xd8] sm:$0xff]
    %v3529 = vld [vmem:[#allocation7 + $0xe0] sm:$0xff]
    %v3530 = vld [vmem:[#allocation7 + $0xe8] sm:$0xff]
    %v3531 = vld [vmem:[#allocation7 + $0xf0] sm:$0xff]
    %v3532 = vld [vmem:[#allocation7 + $0xf8] sm:$0xff]
    %v3533 = vld [vmem:[#allocation7 + $0x100] sm:$0xff]
    %v3534 = vld [vmem:[#allocation7 + $0x108] sm:$0xff]
    %v3535 = vld [vmem:[#allocation7 + $0x110] sm:$0xff]
    %v3536 = vld [vmem:[#allocation7 + $0x118] sm:$0xff]
    %v3537 = vld [vmem:[#allocation7 + $0x120] sm:$0xff]
    %v3538 = vld [vmem:[#allocation7 + $0x128] sm:$0xff]
    %v3539 = vld [vmem:[#allocation7 + $0x130] sm:$0xff]
    %v3540 = vld [vmem:[#allocation7 + $0x138] sm:$0xff]
    %v3541 = vld [vmem:[#allocation7 + $0x140] sm:$0xff]
    %v3542 = vld [vmem:[#allocation7 + $0x148] sm:$0xff]
    %v3543 = vld [vmem:[#allocation7 + $0x150] sm:$0xff]
    %v3544 = vld [vmem:[#allocation7 + $0x158] sm:$0xff]
    %v3545 = vld [vmem:[#allocation7 + $0x160] sm:$0xff]
    %v3546 = vld [vmem:[#allocation7 + $0x168] sm:$0xff]
    %v3547 = vld [vmem:[#allocation7 + $0x170] sm:$0xff]
    %v3548 = vld [vmem:[#allocation7 + $0x178] sm:$0xff]
    %v3549 = vld [vmem:[#allocation7 + $0x180] sm:$0xff]
    %v3550 = vld [vmem:[#allocation7 + $0x188] sm:$0xff]
    %v3551 = vld [vmem:[#allocation7 + $0x190] sm:$0xff]
    %v3552 = vld [vmem:[#allocation7 + $0x198] sm:$0xff]
    %v3553 = vld [vmem:[#allocation7 + $0x1a0] sm:$0xff]
    %v3554 = vld [vmem:[#allocation7 + $0x1a8] sm:$0xff]
    %v3555 = vld [vmem:[#allocation7 + $0x1b0] sm:$0xff]
    %v3556 = vld [vmem:[#allocation7 + $0x1b8] sm:$0xff]
    %v3557 = vld [vmem:[#allocation7 + $0x1c0] sm:$0xff]
    %v3558 = vld [vmem:[#allocation7 + $0x1c8] sm:$0xff]
    %v3559 = vld [vmem:[#allocation7 + $0x1d0] sm:$0xff]
    %v3560 = vld [vmem:[#allocation7 + $0x1d8] sm:$0xff]
    %v3561 = vld [vmem:[#allocation7 + $0x1e0] sm:$0xff]
    %v3562 = vld [vmem:[#allocation7 + $0x1e8] sm:$0xff]
    %v3563 = vld [vmem:[#allocation7 + $0x1f0] sm:$0xff]
    %v3564 = vld [vmem:[#allocation7 + $0x1f8] sm:$0xff]
    %v3565 = vld [vmem:[#allocation7 + $0x200] sm:$0xff]
    %v3566 = vld [vmem:[#allocation7 + $0x208] sm:$0xff]
    %v3567 = vld [vmem:[#allocation7 + $0x210] sm:$0xff]
    %v3568 = vld [vmem:[#allocation7 + $0x218] sm:$0xff]
    %v3569 = vld [vmem:[#allocation7 + $0x220] sm:$0xff]
    %v3570 = vld [vmem:[#allocation7 + $0x228] sm:$0xff]
    %v3571 = vld [vmem:[#allocation7 + $0x230] sm:$0xff]
    %v3572 = vld [vmem:[#allocation7 + $0x238] sm:$0xff]
    %v3573 = vld [vmem:[#allocation7 + $0x240] sm:$0xff]
    %v3574 = vld [vmem:[#allocation7 + $0x248] sm:$0xff]
    %v3575 = vld [vmem:[#allocation7 + $0x250] sm:$0xff]
    %v3576 = vld [vmem:[#allocation7 + $0x258] sm:$0xff]
    %v3577 = vld [vmem:[#allocation7 + $0x260] sm:$0xff]
    %v3578 = vld [vmem:[#allocation7 + $0x268] sm:$0xff]
    %v3579 = vld [vmem:[#allocation7 + $0x270] sm:$0xff]
    %v3580 = vld [vmem:[#allocation7 + $0x278] sm:$0xff]
    %v3581 = vld [vmem:[#allocation7 + $0x280] sm:$0xff]
    %v3582 = vld [vmem:[#allocation7 + $0x288] sm:$0xff]
    %v3583 = vld [vmem:[#allocation7 + $0x290] sm:$0xff]
    %v3584 = vld [vmem:[#allocation7 + $0x298] sm:$0xff]
    %v3585 = vld [vmem:[#allocation7 + $0x2a0] sm:$0xff]
    %v3586 = vld [vmem:[#allocation7 + $0x2a8] sm:$0xff]
    %v3587 = vld [vmem:[#allocation7 + $0x2b0] sm:$0xff]
    %v3588 = vld [vmem:[#allocation7 + $0x2b8] sm:$0xff]
    %v3589 = vld [vmem:[#allocation7 + $0x2c0] sm:$0xff]
    %v3590 = vld [vmem:[#allocation7 + $0x2c8] sm:$0xff]
    %v3591 = vld [vmem:[#allocation7 + $0x2d0] sm:$0xff]
    %v3592 = vld [vmem:[#allocation7 + $0x2d8] sm:$0xff]
    %v3593 = vld [vmem:[#allocation7 + $0x2e0] sm:$0xff]
    %v3594 = vld [vmem:[#allocation7 + $0x2e8] sm:$0xff]
    %v3595 = vld [vmem:[#allocation7 + $0x2f0] sm:$0xff]
    %v3596 = vld [vmem:[#allocation7 + $0x2f8] sm:$0xff]
    %v3597 = vld [vmem:[#allocation7 + $0x300] sm:$0xff]
    %v3598 = vld [vmem:[#allocation7 + $0x308] sm:$0xff]
    %v3599 = vld [vmem:[#allocation7 + $0x310] sm:$0xff]
    %v3600 = vld [vmem:[#allocation7 + $0x318] sm:$0xff]
    %v3601 = vld [vmem:[#allocation7 + $0x320] sm:$0xff]
    %v3602 = vld [vmem:[#allocation7 + $0x328] sm:$0xff]
    %v3603 = vld [vmem:[#allocation7 + $0x330] sm:$0xff]
    %v3604 = vld [vmem:[#allocation7 + $0x338] sm:$0xff]
    %v3605 = vld [vmem:[#allocation7 + $0x340] sm:$0xff]
    %v3606 = vld [vmem:[#allocation7 + $0x348] sm:$0xff]
    %v3607 = vld [vmem:[#allocation7 + $0x350] sm:$0xff]
    %v3608 = vld [vmem:[#allocation7 + $0x358] sm:$0xff]
    %v3609 = vld [vmem:[#allocation7 + $0x360] sm:$0xff]
    %v3610 = vld [vmem:[#allocation7 + $0x368] sm:$0xff]
    %v3611 = vld [vmem:[#allocation7 + $0x370] sm:$0xff]
    %v3612 = vld [vmem:[#allocation7 + $0x378] sm:$0xff]
    %v3613 = vld [vmem:[#allocation7 + $0x380] sm:$0xff]
    %v3614 = vld [vmem:[#allocation7 + $0x388] sm:$0xff]
    %v3615 = vld [vmem:[#allocation7 + $0x390] sm:$0xff]
    %v3616 = vld [vmem:[#allocation7 + $0x398] sm:$0xff]
    %v3617 = vld [vmem:[#allocation7 + $0x3a0] sm:$0xff]
    %v3618 = vld [vmem:[#allocation7 + $0x3a8] sm:$0xff]
    %v3619 = vld [vmem:[#allocation7 + $0x3b0] sm:$0xff]
    %v3620 = vld [vmem:[#allocation7 + $0x3b8] sm:$0xff]
    %v3621 = vld [vmem:[#allocation7 + $0x3c0] sm:$0xff]
    %v3622 = vld [vmem:[#allocation7 + $0x3c8] sm:$0xff]
    %v3623 = vld [vmem:[#allocation7 + $0x3d0] sm:$0xff]
    %v3624 = vld [vmem:[#allocation7 + $0x3d8] sm:$0xff]
    %v3625 = vld [vmem:[#allocation7 + $0x3e0] sm:$0xff]
    %v3626 = vld [vmem:[#allocation7 + $0x3e8] sm:$0xff]
    %v3627 = vld [vmem:[#allocation7 + $0x3f0] sm:$0xff]
    %v3628 = vld [vmem:[#allocation7 + $0x3f8] sm:$0xff]
    %v3629 = vld [vmem:[#allocation7 + $0x400] sm:$0xff]
    %v3630 = vld [vmem:[#allocation7 + $0x408] sm:$0xff]
    %v3631 = vld [vmem:[#allocation7 + $0x410] sm:$0xff]
    %v3632 = vld [vmem:[#allocation7 + $0x418] sm:$0xff]
    %v3633 = vld [vmem:[#allocation7 + $0x420] sm:$0xff]
    %v3634 = vld [vmem:[#allocation7 + $0x428] sm:$0xff]
    %v3635 = vld [vmem:[#allocation7 + $0x430] sm:$0xff]
    %v3636 = vld [vmem:[#allocation7 + $0x438] sm:$0xff]
    %v3637 = vld [vmem:[#allocation7 + $0x440] sm:$0xff]
    %v3638 = vld [vmem:[#allocation7 + $0x448] sm:$0xff]
    %v3639 = vld [vmem:[#allocation7 + $0x450] sm:$0xff]
    %v3640 = vld [vmem:[#allocation7 + $0x458] sm:$0xff]
    %v3641 = vld [vmem:[#allocation7 + $0x460] sm:$0xff]
    %v3642 = vld [vmem:[#allocation7 + $0x468] sm:$0xff]
    %v3643 = vld [vmem:[#allocation7 + $0x470] sm:$0xff]
    %v3644 = vld [vmem:[#allocation7 + $0x478] sm:$0xff]
    %v3645 = vld [vmem:[#allocation7 + $0x480] sm:$0xff]
    %v3646 = vld [vmem:[#allocation7 + $0x488] sm:$0xff]
    %v3647 = vld [vmem:[#allocation7 + $0x490] sm:$0xff]
    %v3648 = vld [vmem:[#allocation7 + $0x498] sm:$0xff]
    %v3649 = vld [vmem:[#allocation7 + $0x4a0] sm:$0xff]
    %v3650 = vld [vmem:[#allocation7 + $0x4a8] sm:$0xff]
    %v3651 = vld [vmem:[#allocation7 + $0x4b0] sm:$0xff]
    %v3652 = vld [vmem:[#allocation7 + $0x4b8] sm:$0xff]
    %v3653 = vld [vmem:[#allocation7 + $0x4c0] sm:$0xff]
    %v3654 = vld [vmem:[#allocation7 + $0x4c8] sm:$0xff]
    %v3655 = vld [vmem:[#allocation7 + $0x4d0] sm:$0xff]
    %v3656 = vld [vmem:[#allocation7 + $0x4d8] sm:$0xff]
    %v3657 = vld [vmem:[#allocation7 + $0x4e0] sm:$0xff]
    %v3658 = vld [vmem:[#allocation7 + $0x4e8] sm:$0xff]
    %v3659 = vld [vmem:[#allocation7 + $0x4f0] sm:$0xff]
    %v3660 = vld [vmem:[#allocation7 + $0x4f8] sm:$0xff]
    %v3661 = vld [vmem:[#allocation7 + $0x500] sm:$0xff]
    %v3662 = vld [vmem:[#allocation7 + $0x508] sm:$0xff]
    %v3663 = vld [vmem:[#allocation7 + $0x510] sm:$0xff]
    %v3664 = vld [vmem:[#allocation7 + $0x518] sm:$0xff]
    %v3665 = vld [vmem:[#allocation7 + $0x520] sm:$0xff]
    %v3666 = vld [vmem:[#allocation7 + $0x528] sm:$0xff]
    %v3667 = vld [vmem:[#allocation7 + $0x530] sm:$0xff]
    %v3668 = vld [vmem:[#allocation7 + $0x538] sm:$0xff]
    %v3669 = vld [vmem:[#allocation7 + $0x540] sm:$0xff]
    %v3670 = vld [vmem:[#allocation7 + $0x548] sm:$0xff]
    %v3671 = vld [vmem:[#allocation7 + $0x550] sm:$0xff]
    %v3672 = vld [vmem:[#allocation7 + $0x558] sm:$0xff]
    %v3673 = vld [vmem:[#allocation7 + $0x560] sm:$0xff]
    %v3674 = vld [vmem:[#allocation7 + $0x568] sm:$0xff]
    %v3675 = vld [vmem:[#allocation7 + $0x570] sm:$0xff]
    %v3676 = vld [vmem:[#allocation7 + $0x578] sm:$0xff]
    %v3677 = vld [vmem:[#allocation7 + $0x580] sm:$0xff]
    %v3678 = vld [vmem:[#allocation7 + $0x588] sm:$0xff]
    %v3679 = vld [vmem:[#allocation7 + $0x590] sm:$0xff]
    %v3680 = vld [vmem:[#allocation7 + $0x598] sm:$0xff]
    %v3681 = vld [vmem:[#allocation7 + $0x5a0] sm:$0xff]
    %v3682 = vld [vmem:[#allocation7 + $0x5a8] sm:$0xff]
    %v3683 = vld [vmem:[#allocation7 + $0x5b0] sm:$0xff]
    %v3684 = vld [vmem:[#allocation7 + $0x5b8] sm:$0xff]
    %v3685 = vld [vmem:[#allocation7 + $0x5c0] sm:$0xff]
    %v3686 = vld [vmem:[#allocation7 + $0x5c8] sm:$0xff]
    %v3687 = vld [vmem:[#allocation7 + $0x5d0] sm:$0xff]
    %v3688 = vld [vmem:[#allocation7 + $0x5d8] sm:$0xff]
    %v3689 = vld [vmem:[#allocation7 + $0x5e0] sm:$0xff]
    %v3690 = vld [vmem:[#allocation7 + $0x5e8] sm:$0xff]
    %v3691 = vld [vmem:[#allocation7 + $0x5f0] sm:$0xff]
    %v3692 = vld [vmem:[#allocation7 + $0x5f8] sm:$0xff]
    %v3693 = vld [vmem:[#allocation7 + $0x600] sm:$0xff]
    %v3694 = vld [vmem:[#allocation7 + $0x608] sm:$0xff]
    %v3695 = vld [vmem:[#allocation7 + $0x610] sm:$0xff]
    %v3696 = vld [vmem:[#allocation7 + $0x618] sm:$0xff]
    %v3697 = vld [vmem:[#allocation7 + $0x620] sm:$0xff]
    %v3698 = vld [vmem:[#allocation7 + $0x628] sm:$0xff]
    %v3699 = vld [vmem:[#allocation7 + $0x630] sm:$0xff]
    %v3700 = vld [vmem:[#allocation7 + $0x638] sm:$0xff]
    %v3701 = vld [vmem:[#allocation7 + $0x640] sm:$0xff]
    %v3702 = vld [vmem:[#allocation7 + $0x648] sm:$0xff]
    %v3703 = vld [vmem:[#allocation7 + $0x650] sm:$0xff]
    %v3704 = vld [vmem:[#allocation7 + $0x658] sm:$0xff]
    %v3705 = vld [vmem:[#allocation7 + $0x660] sm:$0xff]
    %v3706 = vld [vmem:[#allocation7 + $0x668] sm:$0xff]
    %v3707 = vld [vmem:[#allocation7 + $0x670] sm:$0xff]
    %v3708 = vld [vmem:[#allocation7 + $0x678] sm:$0xff]
    %v3709 = vld [vmem:[#allocation7 + $0x680] sm:$0xff]
    %v3710 = vld [vmem:[#allocation7 + $0x688] sm:$0xff]
    %v3711 = vld [vmem:[#allocation7 + $0x690] sm:$0xff]
    %v3712 = vld [vmem:[#allocation7 + $0x698] sm:$0xff]
    %v3713 = vld [vmem:[#allocation7 + $0x6a0] sm:$0xff]
    %v3714 = vld [vmem:[#allocation7 + $0x6a8] sm:$0xff]
    %v3715 = vld [vmem:[#allocation7 + $0x6b0] sm:$0xff]
    %v3716 = vld [vmem:[#allocation7 + $0x6b8] sm:$0xff]
    %v3717 = vld [vmem:[#allocation7 + $0x6c0] sm:$0xff]
    %v3718 = vld [vmem:[#allocation7 + $0x6c8] sm:$0xff]
    %v3719 = vld [vmem:[#allocation7 + $0x6d0] sm:$0xff]
    %v3720 = vld [vmem:[#allocation7 + $0x6d8] sm:$0xff]
    %v3721 = vld [vmem:[#allocation7 + $0x6e0] sm:$0xff]
    %v3722 = vld [vmem:[#allocation7 + $0x6e8] sm:$0xff]
    %v3723 = vld [vmem:[#allocation7 + $0x6f0] sm:$0xff]
    %v3724 = vld [vmem:[#allocation7 + $0x6f8] sm:$0xff]
    %v3725 = vld [vmem:[#allocation7 + $0x700] sm:$0xff]
    %v3726 = vld [vmem:[#allocation7 + $0x708] sm:$0xff]
    %v3727 = vld [vmem:[#allocation7 + $0x710] sm:$0xff]
    %v3728 = vld [vmem:[#allocation7 + $0x718] sm:$0xff]
    %v3729 = vld [vmem:[#allocation7 + $0x720] sm:$0xff]
    %v3730 = vld [vmem:[#allocation7 + $0x728] sm:$0xff]
    %v3731 = vld [vmem:[#allocation7 + $0x730] sm:$0xff]
    %v3732 = vld [vmem:[#allocation7 + $0x738] sm:$0xff]
    %v3733 = vld [vmem:[#allocation7 + $0x740] sm:$0xff]
    %v3734 = vld [vmem:[#allocation7 + $0x748] sm:$0xff]
    %v3735 = vld [vmem:[#allocation7 + $0x750] sm:$0xff]
    %v3736 = vld [vmem:[#allocation7 + $0x758] sm:$0xff]
    %v3737 = vld [vmem:[#allocation7 + $0x760] sm:$0xff]
    %v3738 = vld [vmem:[#allocation7 + $0x768] sm:$0xff]
    %v3739 = vld [vmem:[#allocation7 + $0x770] sm:$0xff]
    %v3740 = vld [vmem:[#allocation7 + $0x778] sm:$0xff]
    %v3741 = vld [vmem:[#allocation7 + $0x780] sm:$0xff]
    %v3742 = vld [vmem:[#allocation7 + $0x788] sm:$0xff]
    %v3743 = vld [vmem:[#allocation7 + $0x790] sm:$0xff]
    %v3744 = vld [vmem:[#allocation7 + $0x798] sm:$0xff]
    %v3745 = vld [vmem:[#allocation7 + $0x7a0] sm:$0xff]
    %v3746 = vld [vmem:[#allocation7 + $0x7a8] sm:$0xff]
    %v3747 = vld [vmem:[#allocation7 + $0x7b0] sm:$0xff]
    %v3748 = vld [vmem:[#allocation7 + $0x7b8] sm:$0xff]
    %v3749 = vld [vmem:[#allocation7 + $0x7c0] sm:$0xff]
    %v3750 = vld [vmem:[#allocation7 + $0x7c8] sm:$0xff]
    %v3751 = vld [vmem:[#allocation7 + $0x7d0] sm:$0xff]
    %v3752 = vld [vmem:[#allocation7 + $0x7d8] sm:$0xff]
    %v3753 = vld [vmem:[#allocation7 + $0x7e0] sm:$0xff]
    %v3754 = vld [vmem:[#allocation7 + $0x7e8] sm:$0xff]
    %v3755 = vld [vmem:[#allocation7 + $0x7f0] sm:$0xff]
    %v3756 = vld [vmem:[#allocation7 + $0x7f8] sm:$0xff]
    %v3757 = vld [vmem:[%s10] sm:$0xff]
    %v3759 = vlaneseq
    %v3760 = vshrl.u32 %v3759, 7
    %v3761 = vsub.s32 0, %v3760
    %v3762 = vrot.slane %v3757, %v3761
    %v3763 = vlaneseq
    %v3764 = vshrl.u32 %v3763, 7
    %v3765 = vsub.s32 1, %v3764
    %v3766 = vrot.slane %v3757, %v3765
    %v3767 = vlaneseq
    %v3768 = vshrl.u32 %v3767, 7
    %v3769 = vsub.s32 2, %v3768
    %v3770 = vrot.slane %v3757, %v3769
    %v3771 = vlaneseq
    %v3772 = vshrl.u32 %v3771, 7
    %v3773 = vsub.s32 3, %v3772
    %v3774 = vrot.slane %v3757, %v3773
    %v3775 = vlaneseq
    %v3776 = vshrl.u32 %v3775, 7
    %v3777 = vsub.s32 4, %v3776
    %v3778 = vrot.slane %v3757, %v3777
    %v3779 = vlaneseq
    %v3780 = vshrl.u32 %v3779, 7
    %v3781 = vsub.s32 5, %v3780
    %v3782 = vrot.slane %v3757, %v3781
    %v3783 = vlaneseq
    %v3784 = vshrl.u32 %v3783, 7
    %v3785 = vsub.s32 6, %v3784
    %v3786 = vrot.slane %v3757, %v3785
    %v3787 = vlaneseq
    %v3788 = vshrl.u32 %v3787, 7
    %v3789 = vsub.s32 7, %v3788
    %v3790 = vrot.slane %v3757, %v3789
    %v4055 = vunpack.c.l.b16 %v3501
    %v4056 = vunpack.c.h.b16 %v3501
    %v4057 = vunpack.c.l.b16 %v3502
    %v4058 = vunpack.c.h.b16 %v3502
    %v4059 = vunpack.c.l.b16 %v3503
    %v4060 = vunpack.c.h.b16 %v3503
    %v4061 = vunpack.c.l.b16 %v3504
    %v4062 = vunpack.c.h.b16 %v3504
    %v4063 = vunpack.c.l.b16 %v3505
    %v4064 = vunpack.c.h.b16 %v3505
    %v4065 = vunpack.c.l.b16 %v3506
    %v4066 = vunpack.c.h.b16 %v3506
    %v4067 = vunpack.c.l.b16 %v3507
    %v4068 = vunpack.c.h.b16 %v3507
    %v4069 = vunpack.c.l.b16 %v3508
    %v4070 = vunpack.c.h.b16 %v3508
    %v4071 = vunpack.c.l.b16 %v3509
    %v4072 = vunpack.c.h.b16 %v3509
    %v4073 = vunpack.c.l.b16 %v3510
    %v4074 = vunpack.c.h.b16 %v3510
    %v4075 = vunpack.c.l.b16 %v3511
    %v4076 = vunpack.c.h.b16 %v3511
    %v4077 = vunpack.c.l.b16 %v3512
    %v4078 = vunpack.c.h.b16 %v3512
    %v4079 = vunpack.c.l.b16 %v3513
    %v4080 = vunpack.c.h.b16 %v3513
    %v4081 = vunpack.c.l.b16 %v3514
    %v4082 = vunpack.c.h.b16 %v3514
    %v4083 = vunpack.c.l.b16 %v3515
    %v4084 = vunpack.c.h.b16 %v3515
    %v4085 = vunpack.c.l.b16 %v3516
    %v4086 = vunpack.c.h.b16 %v3516
    %v4087 = vunpack.c.l.b16 %v3517
    %v4088 = vunpack.c.h.b16 %v3517
    %v4089 = vunpack.c.l.b16 %v3518
    %v4090 = vunpack.c.h.b16 %v3518
    %v4091 = vunpack.c.l.b16 %v3519
    %v4092 = vunpack.c.h.b16 %v3519
    %v4093 = vunpack.c.l.b16 %v3520
    %v4094 = vunpack.c.h.b16 %v3520
    %v4095 = vunpack.c.l.b16 %v3521
    %v4096 = vunpack.c.h.b16 %v3521
    %v4097 = vunpack.c.l.b16 %v3522
    %v4098 = vunpack.c.h.b16 %v3522
    %v4099 = vunpack.c.l.b16 %v3523
    %v4100 = vunpack.c.h.b16 %v3523
    %v4101 = vunpack.c.l.b16 %v3524
    %v4102 = vunpack.c.h.b16 %v3524
    %v4103 = vunpack.c.l.b16 %v3525
    %v4104 = vunpack.c.h.b16 %v3525
    %v4105 = vunpack.c.l.b16 %v3526
    %v4106 = vunpack.c.h.b16 %v3526
    %v4107 = vunpack.c.l.b16 %v3527
    %v4108 = vunpack.c.h.b16 %v3527
    %v4109 = vunpack.c.l.b16 %v3528
    %v4110 = vunpack.c.h.b16 %v3528
    %v4111 = vunpack.c.l.b16 %v3529
    %v4112 = vunpack.c.h.b16 %v3529
    %v4113 = vunpack.c.l.b16 %v3530
    %v4114 = vunpack.c.h.b16 %v3530
    %v4115 = vunpack.c.l.b16 %v3531
    %v4116 = vunpack.c.h.b16 %v3531
    %v4117 = vunpack.c.l.b16 %v3532
    %v4118 = vunpack.c.h.b16 %v3532
    %v4119 = vunpack.c.l.b16 %v3533
    %v4120 = vunpack.c.h.b16 %v3533
    %v4121 = vunpack.c.l.b16 %v3534
    %v4122 = vunpack.c.h.b16 %v3534
    %v4123 = vunpack.c.l.b16 %v3535
    %v4124 = vunpack.c.h.b16 %v3535
    %v4125 = vunpack.c.l.b16 %v3536
    %v4126 = vunpack.c.h.b16 %v3536
    %v4127 = vunpack.c.l.b16 %v3537
    %v4128 = vunpack.c.h.b16 %v3537
    %v4129 = vunpack.c.l.b16 %v3538
    %v4130 = vunpack.c.h.b16 %v3538
    %v4131 = vunpack.c.l.b16 %v3539
    %v4132 = vunpack.c.h.b16 %v3539
    %v4133 = vunpack.c.l.b16 %v3540
    %v4134 = vunpack.c.h.b16 %v3540
    %v4135 = vunpack.c.l.b16 %v3541
    %v4136 = vunpack.c.h.b16 %v3541
    %v4137 = vunpack.c.l.b16 %v3542
    %v4138 = vunpack.c.h.b16 %v3542
    %v4139 = vunpack.c.l.b16 %v3543
    %v4140 = vunpack.c.h.b16 %v3543
    %v4141 = vunpack.c.l.b16 %v3544
    %v4142 = vunpack.c.h.b16 %v3544
    %v4143 = vunpack.c.l.b16 %v3545
    %v4144 = vunpack.c.h.b16 %v3545
    %v4145 = vunpack.c.l.b16 %v3546
    %v4146 = vunpack.c.h.b16 %v3546
    %v4147 = vunpack.c.l.b16 %v3547
    %v4148 = vunpack.c.h.b16 %v3547
    %v4149 = vunpack.c.l.b16 %v3548
    %v4150 = vunpack.c.h.b16 %v3548
    %v4151 = vunpack.c.l.b16 %v3549
    %v4152 = vunpack.c.h.b16 %v3549
    %v4153 = vunpack.c.l.b16 %v3550
    %v4154 = vunpack.c.h.b16 %v3550
    %v4155 = vunpack.c.l.b16 %v3551
    %v4156 = vunpack.c.h.b16 %v3551
    %v4157 = vunpack.c.l.b16 %v3552
    %v4158 = vunpack.c.h.b16 %v3552
    %v4159 = vunpack.c.l.b16 %v3553
    %v4160 = vunpack.c.h.b16 %v3553
    %v4161 = vunpack.c.l.b16 %v3554
    %v4162 = vunpack.c.h.b16 %v3554
    %v4163 = vunpack.c.l.b16 %v3555
    %v4164 = vunpack.c.h.b16 %v3555
    %v4165 = vunpack.c.l.b16 %v3556
    %v4166 = vunpack.c.h.b16 %v3556
    %v4167 = vunpack.c.l.b16 %v3557
    %v4168 = vunpack.c.h.b16 %v3557
    %v4169 = vunpack.c.l.b16 %v3558
    %v4170 = vunpack.c.h.b16 %v3558
    %v4171 = vunpack.c.l.b16 %v3559
    %v4172 = vunpack.c.h.b16 %v3559
    %v4173 = vunpack.c.l.b16 %v3560
    %v4174 = vunpack.c.h.b16 %v3560
    %v4175 = vunpack.c.l.b16 %v3561
    %v4176 = vunpack.c.h.b16 %v3561
    %v4177 = vunpack.c.l.b16 %v3562
    %v4178 = vunpack.c.h.b16 %v3562
    %v4179 = vunpack.c.l.b16 %v3563
    %v4180 = vunpack.c.h.b16 %v3563
    %v4181 = vunpack.c.l.b16 %v3564
    %v4182 = vunpack.c.h.b16 %v3564
    %v4183 = vunpack.c.l.b16 %v3565
    %v4184 = vunpack.c.h.b16 %v3565
    %v4185 = vunpack.c.l.b16 %v3566
    %v4186 = vunpack.c.h.b16 %v3566
    %v4187 = vunpack.c.l.b16 %v3567
    %v4188 = vunpack.c.h.b16 %v3567
    %v4189 = vunpack.c.l.b16 %v3568
    %v4190 = vunpack.c.h.b16 %v3568
    %v4191 = vunpack.c.l.b16 %v3569
    %v4192 = vunpack.c.h.b16 %v3569
    %v4193 = vunpack.c.l.b16 %v3570
    %v4194 = vunpack.c.h.b16 %v3570
    %v4195 = vunpack.c.l.b16 %v3571
    %v4196 = vunpack.c.h.b16 %v3571
    %v4197 = vunpack.c.l.b16 %v3572
    %v4198 = vunpack.c.h.b16 %v3572
    %v4199 = vunpack.c.l.b16 %v3573
    %v4200 = vunpack.c.h.b16 %v3573
    %v4201 = vunpack.c.l.b16 %v3574
    %v4202 = vunpack.c.h.b16 %v3574
    %v4203 = vunpack.c.l.b16 %v3575
    %v4204 = vunpack.c.h.b16 %v3575
    %v4205 = vunpack.c.l.b16 %v3576
    %v4206 = vunpack.c.h.b16 %v3576
    %v4207 = vunpack.c.l.b16 %v3577
    %v4208 = vunpack.c.h.b16 %v3577
    %v4209 = vunpack.c.l.b16 %v3578
    %v4210 = vunpack.c.h.b16 %v3578
    %v4211 = vunpack.c.l.b16 %v3579
    %v4212 = vunpack.c.h.b16 %v3579
    %v4213 = vunpack.c.l.b16 %v3580
    %v4214 = vunpack.c.h.b16 %v3580
    %v4215 = vunpack.c.l.b16 %v3581
    %v4216 = vunpack.c.h.b16 %v3581
    %v4217 = vunpack.c.l.b16 %v3582
    %v4218 = vunpack.c.h.b16 %v3582
    %v4219 = vunpack.c.l.b16 %v3583
    %v4220 = vunpack.c.h.b16 %v3583
    %v4221 = vunpack.c.l.b16 %v3584
    %v4222 = vunpack.c.h.b16 %v3584
    %v4223 = vunpack.c.l.b16 %v3585
    %v4224 = vunpack.c.h.b16 %v3585
    %v4225 = vunpack.c.l.b16 %v3586
    %v4226 = vunpack.c.h.b16 %v3586
    %v4227 = vunpack.c.l.b16 %v3587
    %v4228 = vunpack.c.h.b16 %v3587
    %v4229 = vunpack.c.l.b16 %v3588
    %v4230 = vunpack.c.h.b16 %v3588
    %v4231 = vunpack.c.l.b16 %v3589
    %v4232 = vunpack.c.h.b16 %v3589
    %v4233 = vunpack.c.l.b16 %v3590
    %v4234 = vunpack.c.h.b16 %v3590
    %v4235 = vunpack.c.l.b16 %v3591
    %v4236 = vunpack.c.h.b16 %v3591
    %v4237 = vunpack.c.l.b16 %v3592
    %v4238 = vunpack.c.h.b16 %v3592
    %v4239 = vunpack.c.l.b16 %v3593
    %v4240 = vunpack.c.h.b16 %v3593
    %v4241 = vunpack.c.l.b16 %v3594
    %v4242 = vunpack.c.h.b16 %v3594
    %v4243 = vunpack.c.l.b16 %v3595
    %v4244 = vunpack.c.h.b16 %v3595
    %v4245 = vunpack.c.l.b16 %v3596
    %v4246 = vunpack.c.h.b16 %v3596
    %v4247 = vunpack.c.l.b16 %v3597
    %v4248 = vunpack.c.h.b16 %v3597
    %v4249 = vunpack.c.l.b16 %v3598
    %v4250 = vunpack.c.h.b16 %v3598
    %v4251 = vunpack.c.l.b16 %v3599
    %v4252 = vunpack.c.h.b16 %v3599
    %v4253 = vunpack.c.l.b16 %v3600
    %v4254 = vunpack.c.h.b16 %v3600
    %v4255 = vunpack.c.l.b16 %v3601
    %v4256 = vunpack.c.h.b16 %v3601
    %v4257 = vunpack.c.l.b16 %v3602
    %v4258 = vunpack.c.h.b16 %v3602
    %v4259 = vunpack.c.l.b16 %v3603
    %v4260 = vunpack.c.h.b16 %v3603
    %v4261 = vunpack.c.l.b16 %v3604
    %v4262 = vunpack.c.h.b16 %v3604
    %v4263 = vunpack.c.l.b16 %v3605
    %v4264 = vunpack.c.h.b16 %v3605
    %v4265 = vunpack.c.l.b16 %v3606
    %v4266 = vunpack.c.h.b16 %v3606
    %v4267 = vunpack.c.l.b16 %v3607
    %v4268 = vunpack.c.h.b16 %v3607
    %v4269 = vunpack.c.l.b16 %v3608
    %v4270 = vunpack.c.h.b16 %v3608
    %v4271 = vunpack.c.l.b16 %v3609
    %v4272 = vunpack.c.h.b16 %v3609
    %v4273 = vunpack.c.l.b16 %v3610
    %v4274 = vunpack.c.h.b16 %v3610
    %v4275 = vunpack.c.l.b16 %v3611
    %v4276 = vunpack.c.h.b16 %v3611
    %v4277 = vunpack.c.l.b16 %v3612
    %v4278 = vunpack.c.h.b16 %v3612
    %v4279 = vunpack.c.l.b16 %v3613
    %v4280 = vunpack.c.h.b16 %v3613
    %v4281 = vunpack.c.l.b16 %v3614
    %v4282 = vunpack.c.h.b16 %v3614
    %v4283 = vunpack.c.l.b16 %v3615
    %v4284 = vunpack.c.h.b16 %v3615
    %v4285 = vunpack.c.l.b16 %v3616
    %v4286 = vunpack.c.h.b16 %v3616
    %v4287 = vunpack.c.l.b16 %v3617
    %v4288 = vunpack.c.h.b16 %v3617
    %v4289 = vunpack.c.l.b16 %v3618
    %v4290 = vunpack.c.h.b16 %v3618
    %v4291 = vunpack.c.l.b16 %v3619
    %v4292 = vunpack.c.h.b16 %v3619
    %v4293 = vunpack.c.l.b16 %v3620
    %v4294 = vunpack.c.h.b16 %v3620
    %v4295 = vunpack.c.l.b16 %v3621
    %v4296 = vunpack.c.h.b16 %v3621
    %v4297 = vunpack.c.l.b16 %v3622
    %v4298 = vunpack.c.h.b16 %v3622
    %v4299 = vunpack.c.l.b16 %v3623
    %v4300 = vunpack.c.h.b16 %v3623
    %v4301 = vunpack.c.l.b16 %v3624
    %v4302 = vunpack.c.h.b16 %v3624
    %v4303 = vunpack.c.l.b16 %v3625
    %v4304 = vunpack.c.h.b16 %v3625
    %v4305 = vunpack.c.l.b16 %v3626
    %v4306 = vunpack.c.h.b16 %v3626
    %v4307 = vunpack.c.l.b16 %v3627
    %v4308 = vunpack.c.h.b16 %v3627
    %v4309 = vunpack.c.l.b16 %v3628
    %v4310 = vunpack.c.h.b16 %v3628
    %v4311 = vunpack.c.l.b16 %v3629
    %v4312 = vunpack.c.h.b16 %v3629
    %v4313 = vunpack.c.l.b16 %v3630
    %v4314 = vunpack.c.h.b16 %v3630
    %v4315 = vunpack.c.l.b16 %v3631
    %v4316 = vunpack.c.h.b16 %v3631
    %v4317 = vunpack.c.l.b16 %v3632
    %v4318 = vunpack.c.h.b16 %v3632
    %v4319 = vunpack.c.l.b16 %v3633
    %v4320 = vunpack.c.h.b16 %v3633
    %v4321 = vunpack.c.l.b16 %v3634
    %v4322 = vunpack.c.h.b16 %v3634
    %v4323 = vunpack.c.l.b16 %v3635
    %v4324 = vunpack.c.h.b16 %v3635
    %v4325 = vunpack.c.l.b16 %v3636
    %v4326 = vunpack.c.h.b16 %v3636
    %v4327 = vunpack.c.l.b16 %v3637
    %v4328 = vunpack.c.h.b16 %v3637
    %v4329 = vunpack.c.l.b16 %v3638
    %v4330 = vunpack.c.h.b16 %v3638
    %v4331 = vunpack.c.l.b16 %v3639
    %v4332 = vunpack.c.h.b16 %v3639
    %v4333 = vunpack.c.l.b16 %v3640
    %v4334 = vunpack.c.h.b16 %v3640
    %v4335 = vunpack.c.l.b16 %v3641
    %v4336 = vunpack.c.h.b16 %v3641
    %v4337 = vunpack.c.l.b16 %v3642
    %v4338 = vunpack.c.h.b16 %v3642
    %v4339 = vunpack.c.l.b16 %v3643
    %v4340 = vunpack.c.h.b16 %v3643
    %v4341 = vunpack.c.l.b16 %v3644
    %v4342 = vunpack.c.h.b16 %v3644
    %v4343 = vunpack.c.l.b16 %v3645
    %v4344 = vunpack.c.h.b16 %v3645
    %v4345 = vunpack.c.l.b16 %v3646
    %v4346 = vunpack.c.h.b16 %v3646
    %v4347 = vunpack.c.l.b16 %v3647
    %v4348 = vunpack.c.h.b16 %v3647
    %v4349 = vunpack.c.l.b16 %v3648
    %v4350 = vunpack.c.h.b16 %v3648
    %v4351 = vunpack.c.l.b16 %v3649
    %v4352 = vunpack.c.h.b16 %v3649
    %v4353 = vunpack.c.l.b16 %v3650
    %v4354 = vunpack.c.h.b16 %v3650
    %v4355 = vunpack.c.l.b16 %v3651
    %v4356 = vunpack.c.h.b16 %v3651
    %v4357 = vunpack.c.l.b16 %v3652
    %v4358 = vunpack.c.h.b16 %v3652
    %v4359 = vunpack.c.l.b16 %v3653
    %v4360 = vunpack.c.h.b16 %v3653
    %v4361 = vunpack.c.l.b16 %v3654
    %v4362 = vunpack.c.h.b16 %v3654
    %v4363 = vunpack.c.l.b16 %v3655
    %v4364 = vunpack.c.h.b16 %v3655
    %v4365 = vunpack.c.l.b16 %v3656
    %v4366 = vunpack.c.h.b16 %v3656
    %v4367 = vunpack.c.l.b16 %v3657
    %v4368 = vunpack.c.h.b16 %v3657
    %v4369 = vunpack.c.l.b16 %v3658
    %v4370 = vunpack.c.h.b16 %v3658
    %v4371 = vunpack.c.l.b16 %v3659
    %v4372 = vunpack.c.h.b16 %v3659
    %v4373 = vunpack.c.l.b16 %v3660
    %v4374 = vunpack.c.h.b16 %v3660
    %v4375 = vunpack.c.l.b16 %v3661
    %v4376 = vunpack.c.h.b16 %v3661
    %v4377 = vunpack.c.l.b16 %v3662
    %v4378 = vunpack.c.h.b16 %v3662
    %v4379 = vunpack.c.l.b16 %v3663
    %v4380 = vunpack.c.h.b16 %v3663
    %v4381 = vunpack.c.l.b16 %v3664
    %v4382 = vunpack.c.h.b16 %v3664
    %v4383 = vunpack.c.l.b16 %v3665
    %v4384 = vunpack.c.h.b16 %v3665
    %v4385 = vunpack.c.l.b16 %v3666
    %v4386 = vunpack.c.h.b16 %v3666
    %v4387 = vunpack.c.l.b16 %v3667
    %v4388 = vunpack.c.h.b16 %v3667
    %v4389 = vunpack.c.l.b16 %v3668
    %v4390 = vunpack.c.h.b16 %v3668
    %v4391 = vunpack.c.l.b16 %v3669
    %v4392 = vunpack.c.h.b16 %v3669
    %v4393 = vunpack.c.l.b16 %v3670
    %v4394 = vunpack.c.h.b16 %v3670
    %v4395 = vunpack.c.l.b16 %v3671
    %v4396 = vunpack.c.h.b16 %v3671
    %v4397 = vunpack.c.l.b16 %v3672
    %v4398 = vunpack.c.h.b16 %v3672
    %v4399 = vunpack.c.l.b16 %v3673
    %v4400 = vunpack.c.h.b16 %v3673
    %v4401 = vunpack.c.l.b16 %v3674
    %v4402 = vunpack.c.h.b16 %v3674
    %v4403 = vunpack.c.l.b16 %v3675
    %v4404 = vunpack.c.h.b16 %v3675
    %v4405 = vunpack.c.l.b16 %v3676
    %v4406 = vunpack.c.h.b16 %v3676
    %v4407 = vunpack.c.l.b16 %v3677
    %v4408 = vunpack.c.h.b16 %v3677
    %v4409 = vunpack.c.l.b16 %v3678
    %v4410 = vunpack.c.h.b16 %v3678
    %v4411 = vunpack.c.l.b16 %v3679
    %v4412 = vunpack.c.h.b16 %v3679
    %v4413 = vunpack.c.l.b16 %v3680
    %v4414 = vunpack.c.h.b16 %v3680
    %v4415 = vunpack.c.l.b16 %v3681
    %v4416 = vunpack.c.h.b16 %v3681
    %v4417 = vunpack.c.l.b16 %v3682
    %v4418 = vunpack.c.h.b16 %v3682
    %v4419 = vunpack.c.l.b16 %v3683
    %v4420 = vunpack.c.h.b16 %v3683
    %v4421 = vunpack.c.l.b16 %v3684
    %v4422 = vunpack.c.h.b16 %v3684
    %v4423 = vunpack.c.l.b16 %v3685
    %v4424 = vunpack.c.h.b16 %v3685
    %v4425 = vunpack.c.l.b16 %v3686
    %v4426 = vunpack.c.h.b16 %v3686
    %v4427 = vunpack.c.l.b16 %v3687
    %v4428 = vunpack.c.h.b16 %v3687
    %v4429 = vunpack.c.l.b16 %v3688
    %v4430 = vunpack.c.h.b16 %v3688
    %v4431 = vunpack.c.l.b16 %v3689
    %v4432 = vunpack.c.h.b16 %v3689
    %v4433 = vunpack.c.l.b16 %v3690
    %v4434 = vunpack.c.h.b16 %v3690
    %v4435 = vunpack.c.l.b16 %v3691
    %v4436 = vunpack.c.h.b16 %v3691
    %v4437 = vunpack.c.l.b16 %v3692
    %v4438 = vunpack.c.h.b16 %v3692
    %v4439 = vunpack.c.l.b16 %v3693
    %v4440 = vunpack.c.h.b16 %v3693
    %v4441 = vunpack.c.l.b16 %v3694
    %v4442 = vunpack.c.h.b16 %v3694
    %v4443 = vunpack.c.l.b16 %v3695
    %v4444 = vunpack.c.h.b16 %v3695
    %v4445 = vunpack.c.l.b16 %v3696
    %v4446 = vunpack.c.h.b16 %v3696
    %v4447 = vunpack.c.l.b16 %v3697
    %v4448 = vunpack.c.h.b16 %v3697
    %v4449 = vunpack.c.l.b16 %v3698
    %v4450 = vunpack.c.h.b16 %v3698
    %v4451 = vunpack.c.l.b16 %v3699
    %v4452 = vunpack.c.h.b16 %v3699
    %v4453 = vunpack.c.l.b16 %v3700
    %v4454 = vunpack.c.h.b16 %v3700
    %v4455 = vunpack.c.l.b16 %v3701
    %v4456 = vunpack.c.h.b16 %v3701
    %v4457 = vunpack.c.l.b16 %v3702
    %v4458 = vunpack.c.h.b16 %v3702
    %v4459 = vunpack.c.l.b16 %v3703
    %v4460 = vunpack.c.h.b16 %v3703
    %v4461 = vunpack.c.l.b16 %v3704
    %v4462 = vunpack.c.h.b16 %v3704
    %v4463 = vunpack.c.l.b16 %v3705
    %v4464 = vunpack.c.h.b16 %v3705
    %v4465 = vunpack.c.l.b16 %v3706
    %v4466 = vunpack.c.h.b16 %v3706
    %v4467 = vunpack.c.l.b16 %v3707
    %v4468 = vunpack.c.h.b16 %v3707
    %v4469 = vunpack.c.l.b16 %v3708
    %v4470 = vunpack.c.h.b16 %v3708
    %v4471 = vunpack.c.l.b16 %v3709
    %v4472 = vunpack.c.h.b16 %v3709
    %v4473 = vunpack.c.l.b16 %v3710
    %v4474 = vunpack.c.h.b16 %v3710
    %v4475 = vunpack.c.l.b16 %v3711
    %v4476 = vunpack.c.h.b16 %v3711
    %v4477 = vunpack.c.l.b16 %v3712
    %v4478 = vunpack.c.h.b16 %v3712
    %v4479 = vunpack.c.l.b16 %v3713
    %v4480 = vunpack.c.h.b16 %v3713
    %v4481 = vunpack.c.l.b16 %v3714
    %v4482 = vunpack.c.h.b16 %v3714
    %v4483 = vunpack.c.l.b16 %v3715
    %v4484 = vunpack.c.h.b16 %v3715
    %v4485 = vunpack.c.l.b16 %v3716
    %v4486 = vunpack.c.h.b16 %v3716
    %v4487 = vunpack.c.l.b16 %v3717
    %v4488 = vunpack.c.h.b16 %v3717
    %v4489 = vunpack.c.l.b16 %v3718
    %v4490 = vunpack.c.h.b16 %v3718
    %v4491 = vunpack.c.l.b16 %v3719
    %v4492 = vunpack.c.h.b16 %v3719
    %v4493 = vunpack.c.l.b16 %v3720
    %v4494 = vunpack.c.h.b16 %v3720
    %v4495 = vunpack.c.l.b16 %v3721
    %v4496 = vunpack.c.h.b16 %v3721
    %v4497 = vunpack.c.l.b16 %v3722
    %v4498 = vunpack.c.h.b16 %v3722
    %v4499 = vunpack.c.l.b16 %v3723
    %v4500 = vunpack.c.h.b16 %v3723
    %v4501 = vunpack.c.l.b16 %v3724
    %v4502 = vunpack.c.h.b16 %v3724
    %v4503 = vunpack.c.l.b16 %v3725
    %v4504 = vunpack.c.h.b16 %v3725
    %v4505 = vunpack.c.l.b16 %v3726
    %v4506 = vunpack.c.h.b16 %v3726
    %v4507 = vunpack.c.l.b16 %v3727
    %v4508 = vunpack.c.h.b16 %v3727
    %v4509 = vunpack.c.l.b16 %v3728
    %v4510 = vunpack.c.h.b16 %v3728
    %v4511 = vunpack.c.l.b16 %v3729
    %v4512 = vunpack.c.h.b16 %v3729
    %v4513 = vunpack.c.l.b16 %v3730
    %v4514 = vunpack.c.h.b16 %v3730
    %v4515 = vunpack.c.l.b16 %v3731
    %v4516 = vunpack.c.h.b16 %v3731
    %v4517 = vunpack.c.l.b16 %v3732
    %v4518 = vunpack.c.h.b16 %v3732
    %v4519 = vunpack.c.l.b16 %v3733
    %v4520 = vunpack.c.h.b16 %v3733
    %v4521 = vunpack.c.l.b16 %v3734
    %v4522 = vunpack.c.h.b16 %v3734
    %v4523 = vunpack.c.l.b16 %v3735
    %v4524 = vunpack.c.h.b16 %v3735
    %v4525 = vunpack.c.l.b16 %v3736
    %v4526 = vunpack.c.h.b16 %v3736
    %v4527 = vunpack.c.l.b16 %v3737
    %v4528 = vunpack.c.h.b16 %v3737
    %v4529 = vunpack.c.l.b16 %v3738
    %v4530 = vunpack.c.h.b16 %v3738
    %v4531 = vunpack.c.l.b16 %v3739
    %v4532 = vunpack.c.h.b16 %v3739
    %v4533 = vunpack.c.l.b16 %v3740
    %v4534 = vunpack.c.h.b16 %v3740
    %v4535 = vunpack.c.l.b16 %v3741
    %v4536 = vunpack.c.h.b16 %v3741
    %v4537 = vunpack.c.l.b16 %v3742
    %v4538 = vunpack.c.h.b16 %v3742
    %v4539 = vunpack.c.l.b16 %v3743
    %v4540 = vunpack.c.h.b16 %v3743
    %v4541 = vunpack.c.l.b16 %v3744
    %v4542 = vunpack.c.h.b16 %v3744
    %v4543 = vunpack.c.l.b16 %v3745
    %v4544 = vunpack.c.h.b16 %v3745
    %v4545 = vunpack.c.l.b16 %v3746
    %v4546 = vunpack.c.h.b16 %v3746
    %v4547 = vunpack.c.l.b16 %v3747
    %v4548 = vunpack.c.h.b16 %v3747
    %v4549 = vunpack.c.l.b16 %v3748
    %v4550 = vunpack.c.h.b16 %v3748
    %v4551 = vunpack.c.l.b16 %v3749
    %v4552 = vunpack.c.h.b16 %v3749
    %v4553 = vunpack.c.l.b16 %v3750
    %v4554 = vunpack.c.h.b16 %v3750
    %v4555 = vunpack.c.l.b16 %v3751
    %v4556 = vunpack.c.h.b16 %v3751
    %v4557 = vunpack.c.l.b16 %v3752
    %v4558 = vunpack.c.h.b16 %v3752
    %v4559 = vunpack.c.l.b16 %v3753
    %v4560 = vunpack.c.h.b16 %v3753
    %v4561 = vunpack.c.l.b16 %v3754
    %v4562 = vunpack.c.h.b16 %v3754
    %v4563 = vunpack.c.l.b16 %v3755
    %v4564 = vunpack.c.h.b16 %v3755
    %v4565 = vunpack.c.l.b16 %v3756
    %v4566 = vunpack.c.h.b16 %v3756
    %v4567 = vpack.c.b16 %v4063, %v4055
    %v4568 = vpack.c.b16 %v4064, %v4056
    %v4569 = vpack.c.b16 %v4065, %v4057
    %v4570 = vpack.c.b16 %v4066, %v4058
    %v4571 = vpack.c.b16 %v4067, %v4059
    %v4572 = vpack.c.b16 %v4068, %v4060
    %v4573 = vpack.c.b16 %v4069, %v4061
    %v4574 = vpack.c.b16 %v4070, %v4062
    %v4575 = vpack.c.b16 %v4079, %v4071
    %v4576 = vpack.c.b16 %v4080, %v4072
    %v4577 = vpack.c.b16 %v4081, %v4073
    %v4578 = vpack.c.b16 %v4082, %v4074
    %v4579 = vpack.c.b16 %v4083, %v4075
    %v4580 = vpack.c.b16 %v4084, %v4076
    %v4581 = vpack.c.b16 %v4085, %v4077
    %v4582 = vpack.c.b16 %v4086, %v4078
    %v4583 = vpack.c.b16 %v4095, %v4087
    %v4584 = vpack.c.b16 %v4096, %v4088
    %v4585 = vpack.c.b16 %v4097, %v4089
    %v4586 = vpack.c.b16 %v4098, %v4090
    %v4587 = vpack.c.b16 %v4099, %v4091
    %v4588 = vpack.c.b16 %v4100, %v4092
    %v4589 = vpack.c.b16 %v4101, %v4093
    %v4590 = vpack.c.b16 %v4102, %v4094
    %v4591 = vpack.c.b16 %v4111, %v4103
    %v4592 = vpack.c.b16 %v4112, %v4104
    %v4593 = vpack.c.b16 %v4113, %v4105
    %v4594 = vpack.c.b16 %v4114, %v4106
    %v4595 = vpack.c.b16 %v4115, %v4107
    %v4596 = vpack.c.b16 %v4116, %v4108
    %v4597 = vpack.c.b16 %v4117, %v4109
    %v4598 = vpack.c.b16 %v4118, %v4110
    %v4599 = vpack.c.b16 %v4127, %v4119
    %v4600 = vpack.c.b16 %v4128, %v4120
    %v4601 = vpack.c.b16 %v4129, %v4121
    %v4602 = vpack.c.b16 %v4130, %v4122
    %v4603 = vpack.c.b16 %v4131, %v4123
    %v4604 = vpack.c.b16 %v4132, %v4124
    %v4605 = vpack.c.b16 %v4133, %v4125
    %v4606 = vpack.c.b16 %v4134, %v4126
    %v4607 = vpack.c.b16 %v4143, %v4135
    %v4608 = vpack.c.b16 %v4144, %v4136
    %v4609 = vpack.c.b16 %v4145, %v4137
    %v4610 = vpack.c.b16 %v4146, %v4138
    %v4611 = vpack.c.b16 %v4147, %v4139
    %v4612 = vpack.c.b16 %v4148, %v4140
    %v4613 = vpack.c.b16 %v4149, %v4141
    %v4614 = vpack.c.b16 %v4150, %v4142
    %v4615 = vpack.c.b16 %v4159, %v4151
    %v4616 = vpack.c.b16 %v4160, %v4152
    %v4617 = vpack.c.b16 %v4161, %v4153
    %v4618 = vpack.c.b16 %v4162, %v4154
    %v4619 = vpack.c.b16 %v4163, %v4155
    %v4620 = vpack.c.b16 %v4164, %v4156
    %v4621 = vpack.c.b16 %v4165, %v4157
    %v4622 = vpack.c.b16 %v4166, %v4158
    %v4623 = vpack.c.b16 %v4175, %v4167
    %v4624 = vpack.c.b16 %v4176, %v4168
    %v4625 = vpack.c.b16 %v4177, %v4169
    %v4626 = vpack.c.b16 %v4178, %v4170
    %v4627 = vpack.c.b16 %v4179, %v4171
    %v4628 = vpack.c.b16 %v4180, %v4172
    %v4629 = vpack.c.b16 %v4181, %v4173
    %v4630 = vpack.c.b16 %v4182, %v4174
    %v4631 = vpack.c.b16 %v4191, %v4183
    %v4632 = vpack.c.b16 %v4192, %v4184
    %v4633 = vpack.c.b16 %v4193, %v4185
    %v4634 = vpack.c.b16 %v4194, %v4186
    %v4635 = vpack.c.b16 %v4195, %v4187
    %v4636 = vpack.c.b16 %v4196, %v4188
    %v4637 = vpack.c.b16 %v4197, %v4189
    %v4638 = vpack.c.b16 %v4198, %v4190
    %v4639 = vpack.c.b16 %v4207, %v4199
    %v4640 = vpack.c.b16 %v4208, %v4200
    %v4641 = vpack.c.b16 %v4209, %v4201
    %v4642 = vpack.c.b16 %v4210, %v4202
    %v4643 = vpack.c.b16 %v4211, %v4203
    %v4644 = vpack.c.b16 %v4212, %v4204
    %v4645 = vpack.c.b16 %v4213, %v4205
    %v4646 = vpack.c.b16 %v4214, %v4206
    %v4647 = vpack.c.b16 %v4223, %v4215
    %v4648 = vpack.c.b16 %v4224, %v4216
    %v4649 = vpack.c.b16 %v4225, %v4217
    %v4650 = vpack.c.b16 %v4226, %v4218
    %v4651 = vpack.c.b16 %v4227, %v4219
    %v4652 = vpack.c.b16 %v4228, %v4220
    %v4653 = vpack.c.b16 %v4229, %v4221
    %v4654 = vpack.c.b16 %v4230, %v4222
    %v4655 = vpack.c.b16 %v4239, %v4231
    %v4656 = vpack.c.b16 %v4240, %v4232
    %v4657 = vpack.c.b16 %v4241, %v4233
    %v4658 = vpack.c.b16 %v4242, %v4234
    %v4659 = vpack.c.b16 %v4243, %v4235
    %v4660 = vpack.c.b16 %v4244, %v4236
    %v4661 = vpack.c.b16 %v4245, %v4237
    %v4662 = vpack.c.b16 %v4246, %v4238
    %v4663 = vpack.c.b16 %v4255, %v4247
    %v4664 = vpack.c.b16 %v4256, %v4248
    %v4665 = vpack.c.b16 %v4257, %v4249
    %v4666 = vpack.c.b16 %v4258, %v4250
    %v4667 = vpack.c.b16 %v4259, %v4251
    %v4668 = vpack.c.b16 %v4260, %v4252
    %v4669 = vpack.c.b16 %v4261, %v4253
    %v4670 = vpack.c.b16 %v4262, %v4254
    %v4671 = vpack.c.b16 %v4271, %v4263
    %v4672 = vpack.c.b16 %v4272, %v4264
    %v4673 = vpack.c.b16 %v4273, %v4265
    %v4674 = vpack.c.b16 %v4274, %v4266
    %v4675 = vpack.c.b16 %v4275, %v4267
    %v4676 = vpack.c.b16 %v4276, %v4268
    %v4677 = vpack.c.b16 %v4277, %v4269
    %v4678 = vpack.c.b16 %v4278, %v4270
    %v4679 = vpack.c.b16 %v4287, %v4279
    %v4680 = vpack.c.b16 %v4288, %v4280
    %v4681 = vpack.c.b16 %v4289, %v4281
    %v4682 = vpack.c.b16 %v4290, %v4282
    %v4683 = vpack.c.b16 %v4291, %v4283
    %v4684 = vpack.c.b16 %v4292, %v4284
    %v4685 = vpack.c.b16 %v4293, %v4285
    %v4686 = vpack.c.b16 %v4294, %v4286
    %v4687 = vpack.c.b16 %v4303, %v4295
    %v4688 = vpack.c.b16 %v4304, %v4296
    %v4689 = vpack.c.b16 %v4305, %v4297
    %v4690 = vpack.c.b16 %v4306, %v4298
    %v4691 = vpack.c.b16 %v4307, %v4299
    %v4692 = vpack.c.b16 %v4308, %v4300
    %v4693 = vpack.c.b16 %v4309, %v4301
    %v4694 = vpack.c.b16 %v4310, %v4302
    %v4695 = vpack.c.b16 %v4319, %v4311
    %v4696 = vpack.c.b16 %v4320, %v4312
    %v4697 = vpack.c.b16 %v4321, %v4313
    %v4698 = vpack.c.b16 %v4322, %v4314
    %v4699 = vpack.c.b16 %v4323, %v4315
    %v4700 = vpack.c.b16 %v4324, %v4316
    %v4701 = vpack.c.b16 %v4325, %v4317
    %v4702 = vpack.c.b16 %v4326, %v4318
    %v4703 = vpack.c.b16 %v4335, %v4327
    %v4704 = vpack.c.b16 %v4336, %v4328
    %v4705 = vpack.c.b16 %v4337, %v4329
    %v4706 = vpack.c.b16 %v4338, %v4330
    %v4707 = vpack.c.b16 %v4339, %v4331
    %v4708 = vpack.c.b16 %v4340, %v4332
    %v4709 = vpack.c.b16 %v4341, %v4333
    %v4710 = vpack.c.b16 %v4342, %v4334
    %v4711 = vpack.c.b16 %v4351, %v4343
    %v4712 = vpack.c.b16 %v4352, %v4344
    %v4713 = vpack.c.b16 %v4353, %v4345
    %v4714 = vpack.c.b16 %v4354, %v4346
    %v4715 = vpack.c.b16 %v4355, %v4347
    %v4716 = vpack.c.b16 %v4356, %v4348
    %v4717 = vpack.c.b16 %v4357, %v4349
    %v4718 = vpack.c.b16 %v4358, %v4350
    %v4719 = vpack.c.b16 %v4367, %v4359
    %v4720 = vpack.c.b16 %v4368, %v4360
    %v4721 = vpack.c.b16 %v4369, %v4361
    %v4722 = vpack.c.b16 %v4370, %v4362
    %v4723 = vpack.c.b16 %v4371, %v4363
    %v4724 = vpack.c.b16 %v4372, %v4364
    %v4725 = vpack.c.b16 %v4373, %v4365
    %v4726 = vpack.c.b16 %v4374, %v4366
    %v4727 = vpack.c.b16 %v4383, %v4375
    %v4728 = vpack.c.b16 %v4384, %v4376
    %v4729 = vpack.c.b16 %v4385, %v4377
    %v4730 = vpack.c.b16 %v4386, %v4378
    %v4731 = vpack.c.b16 %v4387, %v4379
    %v4732 = vpack.c.b16 %v4388, %v4380
    %v4733 = vpack.c.b16 %v4389, %v4381
    %v4734 = vpack.c.b16 %v4390, %v4382
    %v4735 = vpack.c.b16 %v4399, %v4391
    %v4736 = vpack.c.b16 %v4400, %v4392
    %v4737 = vpack.c.b16 %v4401, %v4393
    %v4738 = vpack.c.b16 %v4402, %v4394
    %v4739 = vpack.c.b16 %v4403, %v4395
    %v4740 = vpack.c.b16 %v4404, %v4396
    %v4741 = vpack.c.b16 %v4405, %v4397
    %v4742 = vpack.c.b16 %v4406, %v4398
    %v4743 = vpack.c.b16 %v4415, %v4407
    %v4744 = vpack.c.b16 %v4416, %v4408
    %v4745 = vpack.c.b16 %v4417, %v4409
    %v4746 = vpack.c.b16 %v4418, %v4410
    %v4747 = vpack.c.b16 %v4419, %v4411
    %v4748 = vpack.c.b16 %v4420, %v4412
    %v4749 = vpack.c.b16 %v4421, %v4413
    %v4750 = vpack.c.b16 %v4422, %v4414
    %v4751 = vpack.c.b16 %v4431, %v4423
    %v4752 = vpack.c.b16 %v4432, %v4424
    %v4753 = vpack.c.b16 %v4433, %v4425
    %v4754 = vpack.c.b16 %v4434, %v4426
    %v4755 = vpack.c.b16 %v4435, %v4427
    %v4756 = vpack.c.b16 %v4436, %v4428
    %v4757 = vpack.c.b16 %v4437, %v4429
    %v4758 = vpack.c.b16 %v4438, %v4430
    %v4759 = vpack.c.b16 %v4447, %v4439
    %v4760 = vpack.c.b16 %v4448, %v4440
    %v4761 = vpack.c.b16 %v4449, %v4441
    %v4762 = vpack.c.b16 %v4450, %v4442
    %v4763 = vpack.c.b16 %v4451, %v4443
    %v4764 = vpack.c.b16 %v4452, %v4444
    %v4765 = vpack.c.b16 %v4453, %v4445
    %v4766 = vpack.c.b16 %v4454, %v4446
    %v4767 = vpack.c.b16 %v4463, %v4455
    %v4768 = vpack.c.b16 %v4464, %v4456
    %v4769 = vpack.c.b16 %v4465, %v4457
    %v4770 = vpack.c.b16 %v4466, %v4458
    %v4771 = vpack.c.b16 %v4467, %v4459
    %v4772 = vpack.c.b16 %v4468, %v4460
    %v4773 = vpack.c.b16 %v4469, %v4461
    %v4774 = vpack.c.b16 %v4470, %v4462
    %v4775 = vpack.c.b16 %v4479, %v4471
    %v4776 = vpack.c.b16 %v4480, %v4472
    %v4777 = vpack.c.b16 %v4481, %v4473
    %v4778 = vpack.c.b16 %v4482, %v4474
    %v4779 = vpack.c.b16 %v4483, %v4475
    %v4780 = vpack.c.b16 %v4484, %v4476
    %v4781 = vpack.c.b16 %v4485, %v4477
    %v4782 = vpack.c.b16 %v4486, %v4478
    %v4783 = vpack.c.b16 %v4495, %v4487
    %v4784 = vpack.c.b16 %v4496, %v4488
    %v4785 = vpack.c.b16 %v4497, %v4489
    %v4786 = vpack.c.b16 %v4498, %v4490
    %v4787 = vpack.c.b16 %v4499, %v4491
    %v4788 = vpack.c.b16 %v4500, %v4492
    %v4789 = vpack.c.b16 %v4501, %v4493
    %v4790 = vpack.c.b16 %v4502, %v4494
    %v4791 = vpack.c.b16 %v4511, %v4503
    %v4792 = vpack.c.b16 %v4512, %v4504
    %v4793 = vpack.c.b16 %v4513, %v4505
    %v4794 = vpack.c.b16 %v4514, %v4506
    %v4795 = vpack.c.b16 %v4515, %v4507
    %v4796 = vpack.c.b16 %v4516, %v4508
    %v4797 = vpack.c.b16 %v4517, %v4509
    %v4798 = vpack.c.b16 %v4518, %v4510
    %v4799 = vpack.c.b16 %v4527, %v4519
    %v4800 = vpack.c.b16 %v4528, %v4520
    %v4801 = vpack.c.b16 %v4529, %v4521
    %v4802 = vpack.c.b16 %v4530, %v4522
    %v4803 = vpack.c.b16 %v4531, %v4523
    %v4804 = vpack.c.b16 %v4532, %v4524
    %v4805 = vpack.c.b16 %v4533, %v4525
    %v4806 = vpack.c.b16 %v4534, %v4526
    %v4807 = vpack.c.b16 %v4543, %v4535
    %v4808 = vpack.c.b16 %v4544, %v4536
    %v4809 = vpack.c.b16 %v4545, %v4537
    %v4810 = vpack.c.b16 %v4546, %v4538
    %v4811 = vpack.c.b16 %v4547, %v4539
    %v4812 = vpack.c.b16 %v4548, %v4540
    %v4813 = vpack.c.b16 %v4549, %v4541
    %v4814 = vpack.c.b16 %v4550, %v4542
    %v4815 = vpack.c.b16 %v4559, %v4551
    %v4816 = vpack.c.b16 %v4560, %v4552
    %v4817 = vpack.c.b16 %v4561, %v4553
    %v4818 = vpack.c.b16 %v4562, %v4554
    %v4819 = vpack.c.b16 %v4563, %v4555
    %v4820 = vpack.c.b16 %v4564, %v4556
    %v4821 = vpack.c.b16 %v4565, %v4557
    %v4822 = vpack.c.b16 %v4566, %v4558
    %5079 = vmatprep.subr.bf16.mxu0 %v4624
    %5080 = vmatpush1.bf16.msra.mxu0 %v4623
    %5081 = vmatprep.subr.bf16.mxu0 %v4616
    %5082 = vmatpush1.bf16.msra.mxu0 %v4615
    %5083 = vmatprep.subr.bf16.mxu0 %v4608
    %5084 = vmatpush1.bf16.msra.mxu0 %v4607
    %5085 = vmatprep.subr.bf16.mxu0 %v4600
    %5086 = vmatpush1.bf16.msra.mxu0 %v4599
    %5087 = vmatprep.subr.bf16.mxu0 %v4592
    %5088 = vmatpush1.bf16.msra.mxu0 %v4591
    %5089 = vmatprep.subr.bf16.mxu0 %v4584
    %5090 = vmatpush1.bf16.msra.mxu0 %v4583
    %5091 = vmatprep.subr.bf16.mxu0 %v4576
    %5092 = vmatpush1.bf16.msra.mxu0 %v4575
    %5093 = vmatprep.subr.bf16.mxu0 %v4568
    %5094 = vmatpush1.bf16.msra.mxu0 %v4567
    %5095 = vmatprep.subr.bf16.mxu0 %v4688
    %5096 = vmatpush2.bf16.msra.mxu0 %v4687
    %5097 = vmatprep.subr.bf16.mxu0 %v4680
    %5098 = vmatpush2.bf16.msra.mxu0 %v4679
    %5099 = vmatprep.subr.bf16.mxu0 %v4672
    %5100 = vmatpush2.bf16.msra.mxu0 %v4671
    %5101 = vmatprep.subr.bf16.mxu0 %v4664
    %5102 = vmatpush2.bf16.msra.mxu0 %v4663
    %5103 = vmatprep.subr.bf16.mxu0 %v4656
    %5104 = vmatpush2.bf16.msra.mxu0 %v4655
    %5105 = vmatprep.subr.bf16.mxu0 %v4648
    %5106 = vmatpush2.bf16.msra.mxu0 %v4647
    %5107 = vmatprep.subr.bf16.mxu0 %v4640
    %5108 = vmatpush2.bf16.msra.mxu0 %v4639
    %5109 = vmatprep.subr.bf16.mxu0 %v4632
    %5110 = vmatpush2.bf16.msra.mxu0 %v4631
    %5111 = vmatprep.mubr.bf16.mxu0 %v3498
    %5112 = vmatmul.mubr.bf16.gmra.mxu0 %v3497
    %v5113 = vpop.f32.mrf.mxu0
    %v5114 = vadd.f32 %v3762, %v5113
    %v5115 = vpop.f32.mrf.mxu0
    %v5116 = vadd.f32 %v3766, %v5115
    %v5117 = vpop.f32.mrf.mxu0
    %v5118 = vpop.f32.mrf.mxu0
    %5119 = vdwg.mxu0
    %5120 = vmatprep.subr.bf16.mxu0 %v4752
    %5121 = vmatpush1.bf16.msra.mxu0 %v4751
    %5122 = vmatprep.subr.bf16.mxu0 %v4744
    %5123 = vmatpush1.bf16.msra.mxu0 %v4743
    %5124 = vmatprep.subr.bf16.mxu0 %v4736
    %5125 = vmatpush1.bf16.msra.mxu0 %v4735
    %5126 = vmatprep.subr.bf16.mxu0 %v4728
    %5127 = vmatpush1.bf16.msra.mxu0 %v4727
    %5128 = vmatprep.subr.bf16.mxu0 %v4720
    %5129 = vmatpush1.bf16.msra.mxu0 %v4719
    %5130 = vmatprep.subr.bf16.mxu0 %v4712
    %5131 = vmatpush1.bf16.msra.mxu0 %v4711
    %5132 = vmatprep.subr.bf16.mxu0 %v4704
    %5133 = vmatpush1.bf16.msra.mxu0 %v4703
    %5134 = vmatprep.subr.bf16.mxu0 %v4696
    %5135 = vmatpush1.bf16.msra.mxu0 %v4695
    %5136 = vmatprep.subr.bf16.mxu0 %v4816
    %5137 = vmatpush2.bf16.msra.mxu0 %v4815
    %5138 = vmatprep.subr.bf16.mxu0 %v4808
    %5139 = vmatpush2.bf16.msra.mxu0 %v4807
    %5140 = vmatprep.subr.bf16.mxu0 %v4800
    %5141 = vmatpush2.bf16.msra.mxu0 %v4799
    %5142 = vmatprep.subr.bf16.mxu0 %v4792
    %5143 = vmatpush2.bf16.msra.mxu0 %v4791
    %5144 = vmatprep.subr.bf16.mxu0 %v4784
    %5145 = vmatpush2.bf16.msra.mxu0 %v4783
    %5146 = vmatprep.subr.bf16.mxu0 %v4776
    %5147 = vmatpush2.bf16.msra.mxu0 %v4775
    %5148 = vmatprep.subr.bf16.mxu0 %v4768
    %5149 = vmatpush2.bf16.msra.mxu0 %v4767
    %5150 = vmatprep.subr.bf16.mxu0 %v4760
    %5151 = vmatpush2.bf16.msra.mxu0 %v4759
    %5152 = vmatprep.mubr.bf16.mxu0 %v3500
    %5153 = vmatmul.mubr.bf16.gmra.mxu0 %v3499
    %v5154 = vpop.f32.mrf.mxu0
    %v5155 = vadd.f32 %v5114, %v5154
    %v5156 = vpop.f32.mrf.mxu0
    %v5157 = vadd.f32 %v5116, %v5156
    %v5158 = vpop.f32.mrf.mxu0
    %v5159 = vpop.f32.mrf.mxu0
    %5160 = vdwg.mxu0
    %5161 = vmatprep.subr.bf16.mxu0 %v4626
    %5162 = vmatpush1.bf16.msra.mxu0 %v4625
    %5163 = vmatprep.subr.bf16.mxu0 %v4618
    %5164 = vmatpush1.bf16.msra.mxu0 %v4617
    %5165 = vmatprep.subr.bf16.mxu0 %v4610
    %5166 = vmatpush1.bf16.msra.mxu0 %v4609
    %5167 = vmatprep.subr.bf16.mxu0 %v4602
    %5168 = vmatpush1.bf16.msra.mxu0 %v4601
    %5169 = vmatprep.subr.bf16.mxu0 %v4594
    %5170 = vmatpush1.bf16.msra.mxu0 %v4593
    %5171 = vmatprep.subr.bf16.mxu0 %v4586
    %5172 = vmatpush1.bf16.msra.mxu0 %v4585
    %5173 = vmatprep.subr.bf16.mxu0 %v4578
    %5174 = vmatpush1.bf16.msra.mxu0 %v4577
    %5175 = vmatprep.subr.bf16.mxu0 %v4570
    %5176 = vmatpush1.bf16.msra.mxu0 %v4569
    %5177 = vmatprep.subr.bf16.mxu0 %v4690
    %5178 = vmatpush2.bf16.msra.mxu0 %v4689
    %5179 = vmatprep.subr.bf16.mxu0 %v4682
    %5180 = vmatpush2.bf16.msra.mxu0 %v4681
    %5181 = vmatprep.subr.bf16.mxu0 %v4674
    %5182 = vmatpush2.bf16.msra.mxu0 %v4673
    %5183 = vmatprep.subr.bf16.mxu0 %v4666
    %5184 = vmatpush2.bf16.msra.mxu0 %v4665
    %5185 = vmatprep.subr.bf16.mxu0 %v4658
    %5186 = vmatpush2.bf16.msra.mxu0 %v4657
    %5187 = vmatprep.subr.bf16.mxu0 %v4650
    %5188 = vmatpush2.bf16.msra.mxu0 %v4649
    %5189 = vmatprep.subr.bf16.mxu0 %v4642
    %5190 = vmatpush2.bf16.msra.mxu0 %v4641
    %5191 = vmatprep.subr.bf16.mxu0 %v4634
    %5192 = vmatpush2.bf16.msra.mxu0 %v4633
    %5193 = vmatprep.mubr.bf16.mxu0 %v3498
    %5194 = vmatmul.mubr.bf16.gmra.mxu0 %v3497
    %v5195 = vpop.f32.mrf.mxu0
    %v5196 = vadd.f32 %v3770, %v5195
    %v5197 = vpop.f32.mrf.mxu0
    %v5198 = vadd.f32 %v3774, %v5197
    %v5199 = vpop.f32.mrf.mxu0
    %v5200 = vpop.f32.mrf.mxu0
    %5201 = vdwg.mxu0
    %5202 = vmatprep.subr.bf16.mxu0 %v4754
    %5203 = vmatpush1.bf16.msra.mxu0 %v4753
    %5204 = vmatprep.subr.bf16.mxu0 %v4746
    %5205 = vmatpush1.bf16.msra.mxu0 %v4745
    %5206 = vmatprep.subr.bf16.mxu0 %v4738
    %5207 = vmatpush1.bf16.msra.mxu0 %v4737
    %5208 = vmatprep.subr.bf16.mxu0 %v4730
    %5209 = vmatpush1.bf16.msra.mxu0 %v4729
    %5210 = vmatprep.subr.bf16.mxu0 %v4722
    %5211 = vmatpush1.bf16.msra.mxu0 %v4721
    %5212 = vmatprep.subr.bf16.mxu0 %v4714
    %5213 = vmatpush1.bf16.msra.mxu0 %v4713
    %5214 = vmatprep.subr.bf16.mxu0 %v4706
    %5215 = vmatpush1.bf16.msra.mxu0 %v4705
    %5216 = vmatprep.subr.bf16.mxu0 %v4698
    %5217 = vmatpush1.bf16.msra.mxu0 %v4697
    %5218 = vmatprep.subr.bf16.mxu0 %v4818
    %5219 = vmatpush2.bf16.msra.mxu0 %v4817
    %5220 = vmatprep.subr.bf16.mxu0 %v4810
    %5221 = vmatpush2.bf16.msra.mxu0 %v4809
    %5222 = vmatprep.subr.bf16.mxu0 %v4802
    %5223 = vmatpush2.bf16.msra.mxu0 %v4801
    %5224 = vmatprep.subr.bf16.mxu0 %v4794
    %5225 = vmatpush2.bf16.msra.mxu0 %v4793
    %5226 = vmatprep.subr.bf16.mxu0 %v4786
    %5227 = vmatpush2.bf16.msra.mxu0 %v4785
    %5228 = vmatprep.subr.bf16.mxu0 %v4778
    %5229 = vmatpush2.bf16.msra.mxu0 %v4777
    %5230 = vmatprep.subr.bf16.mxu0 %v4770
    %5231 = vmatpush2.bf16.msra.mxu0 %v4769
    %5232 = vmatprep.subr.bf16.mxu0 %v4762
    %5233 = vmatpush2.bf16.msra.mxu0 %v4761
    %5234 = vmatprep.mubr.bf16.mxu0 %v3500
    %5235 = vmatmul.mubr.bf16.gmra.mxu0 %v3499
    %v5236 = vpop.f32.mrf.mxu0
    %v5237 = vadd.f32 %v5196, %v5236
    %v5238 = vpop.f32.mrf.mxu0
    %v5239 = vadd.f32 %v5198, %v5238
    %v5240 = vpop.f32.mrf.mxu0
    %v5241 = vpop.f32.mrf.mxu0
    %5242 = vdwg.mxu0
    %5243 = vmatprep.subr.bf16.mxu0 %v4628
    %5244 = vmatpush1.bf16.msra.mxu0 %v4627
    %5245 = vmatprep.subr.bf16.mxu0 %v4620
    %5246 = vmatpush1.bf16.msra.mxu0 %v4619
    %5247 = vmatprep.subr.bf16.mxu0 %v4612
    %5248 = vmatpush1.bf16.msra.mxu0 %v4611
    %5249 = vmatprep.subr.bf16.mxu0 %v4604
    %5250 = vmatpush1.bf16.msra.mxu0 %v4603
    %5251 = vmatprep.subr.bf16.mxu0 %v4596
    %5252 = vmatpush1.bf16.msra.mxu0 %v4595
    %5253 = vmatprep.subr.bf16.mxu0 %v4588
    %5254 = vmatpush1.bf16.msra.mxu0 %v4587
    %5255 = vmatprep.subr.bf16.mxu0 %v4580
    %5256 = vmatpush1.bf16.msra.mxu0 %v4579
    %5257 = vmatprep.subr.bf16.mxu0 %v4572
    %5258 = vmatpush1.bf16.msra.mxu0 %v4571
    %5259 = vmatprep.subr.bf16.mxu0 %v4692
    %5260 = vmatpush2.bf16.msra.mxu0 %v4691
    %5261 = vmatprep.subr.bf16.mxu0 %v4684
    %5262 = vmatpush2.bf16.msra.mxu0 %v4683
    %5263 = vmatprep.subr.bf16.mxu0 %v4676
    %5264 = vmatpush2.bf16.msra.mxu0 %v4675
    %5265 = vmatprep.subr.bf16.mxu0 %v4668
    %5266 = vmatpush2.bf16.msra.mxu0 %v4667
    %5267 = vmatprep.subr.bf16.mxu0 %v4660
    %5268 = vmatpush2.bf16.msra.mxu0 %v4659
    %5269 = vmatprep.subr.bf16.mxu0 %v4652
    %5270 = vmatpush2.bf16.msra.mxu0 %v4651
    %5271 = vmatprep.subr.bf16.mxu0 %v4644
    %5272 = vmatpush2.bf16.msra.mxu0 %v4643
    %5273 = vmatprep.subr.bf16.mxu0 %v4636
    %5274 = vmatpush2.bf16.msra.mxu0 %v4635
    %5275 = vmatprep.mubr.bf16.mxu0 %v3498
    %5276 = vmatmul.mubr.bf16.gmra.mxu0 %v3497
    %v5277 = vpop.f32.mrf.mxu0
    %v5278 = vadd.f32 %v3778, %v5277
    %v5279 = vpop.f32.mrf.mxu0
    %v5280 = vadd.f32 %v3782, %v5279
    %v5281 = vpop.f32.mrf.mxu0
    %v5282 = vpop.f32.mrf.mxu0
    %5283 = vdwg.mxu0
    %5284 = vmatprep.subr.bf16.mxu0 %v4756
    %5285 = vmatpush1.bf16.msra.mxu0 %v4755
    %5286 = vmatprep.subr.bf16.mxu0 %v4748
    %5287 = vmatpush1.bf16.msra.mxu0 %v4747
    %5288 = vmatprep.subr.bf16.mxu0 %v4740
    %5289 = vmatpush1.bf16.msra.mxu0 %v4739
    %5290 = vmatprep.subr.bf16.mxu0 %v4732
    %5291 = vmatpush1.bf16.msra.mxu0 %v4731
    %5292 = vmatprep.subr.bf16.mxu0 %v4724
    %5293 = vmatpush1.bf16.msra.mxu0 %v4723
    %5294 = vmatprep.subr.bf16.mxu0 %v4716
    %5295 = vmatpush1.bf16.msra.mxu0 %v4715
    %5296 = vmatprep.subr.bf16.mxu0 %v4708
    %5297 = vmatpush1.bf16.msra.mxu0 %v4707
    %5298 = vmatprep.subr.bf16.mxu0 %v4700
    %5299 = vmatpush1.bf16.msra.mxu0 %v4699
    %5300 = vmatprep.subr.bf16.mxu0 %v4820
    %5301 = vmatpush2.bf16.msra.mxu0 %v4819
    %5302 = vmatprep.subr.bf16.mxu0 %v4812
    %5303 = vmatpush2.bf16.msra.mxu0 %v4811
    %5304 = vmatprep.subr.bf16.mxu0 %v4804
    %5305 = vmatpush2.bf16.msra.mxu0 %v4803
    %5306 = vmatprep.subr.bf16.mxu0 %v4796
    %5307 = vmatpush2.bf16.msra.mxu0 %v4795
    %5308 = vmatprep.subr.bf16.mxu0 %v4788
    %5309 = vmatpush2.bf16.msra.mxu0 %v4787
    %5310 = vmatprep.subr.bf16.mxu0 %v4780
    %5311 = vmatpush2.bf16.msra.mxu0 %v4779
    %5312 = vmatprep.subr.bf16.mxu0 %v4772
    %5313 = vmatpush2.bf16.msra.mxu0 %v4771
    %5314 = vmatprep.subr.bf16.mxu0 %v4764
    %5315 = vmatpush2.bf16.msra.mxu0 %v4763
    %5316 = vmatprep.mubr.bf16.mxu0 %v3500
    %5317 = vmatmul.mubr.bf16.gmra.mxu0 %v3499
    %v5318 = vpop.f32.mrf.mxu0
    %v5319 = vadd.f32 %v5278, %v5318
    %v5320 = vpop.f32.mrf.mxu0
    %v5321 = vadd.f32 %v5280, %v5320
    %v5322 = vpop.f32.mrf.mxu0
    %v5323 = vpop.f32.mrf.mxu0
    %5324 = vdwg.mxu0
    %5325 = vmatprep.subr.bf16.mxu0 %v4630
    %5326 = vmatpush1.bf16.msra.mxu0 %v4629
    %5327 = vmatprep.subr.bf16.mxu0 %v4622
    %5328 = vmatpush1.bf16.msra.mxu0 %v4621
    %5329 = vmatprep.subr.bf16.mxu0 %v4614
    %5330 = vmatpush1.bf16.msra.mxu0 %v4613
    %5331 = vmatprep.subr.bf16.mxu0 %v4606
    %5332 = vmatpush1.bf16.msra.mxu0 %v4605
    %5333 = vmatprep.subr.bf16.mxu0 %v4598
    %5334 = vmatpush1.bf16.msra.mxu0 %v4597
    %5335 = vmatprep.subr.bf16.mxu0 %v4590
    %5336 = vmatpush1.bf16.msra.mxu0 %v4589
    %5337 = vmatprep.subr.bf16.mxu0 %v4582
    %5338 = vmatpush1.bf16.msra.mxu0 %v4581
    %5339 = vmatprep.subr.bf16.mxu0 %v4574
    %5340 = vmatpush1.bf16.msra.mxu0 %v4573
    %5341 = vmatprep.subr.bf16.mxu0 %v4694
    %5342 = vmatpush2.bf16.msra.mxu0 %v4693
    %5343 = vmatprep.subr.bf16.mxu0 %v4686
    %5344 = vmatpush2.bf16.msra.mxu0 %v4685
    %5345 = vmatprep.subr.bf16.mxu0 %v4678
    %5346 = vmatpush2.bf16.msra.mxu0 %v4677
    %5347 = vmatprep.subr.bf16.mxu0 %v4670
    %5348 = vmatpush2.bf16.msra.mxu0 %v4669
    %5349 = vmatprep.subr.bf16.mxu0 %v4662
    %5350 = vmatpush2.bf16.msra.mxu0 %v4661
    %5351 = vmatprep.subr.bf16.mxu0 %v4654
    %5352 = vmatpush2.bf16.msra.mxu0 %v4653
    %5353 = vmatprep.subr.bf16.mxu0 %v4646
    %5354 = vmatpush2.bf16.msra.mxu0 %v4645
    %5355 = vmatprep.subr.bf16.mxu0 %v4638
    %5356 = vmatpush2.bf16.msra.mxu0 %v4637
    %5357 = vmatprep.mubr.bf16.mxu0 %v3498
    %5358 = vmatmul.mubr.bf16.gmra.mxu0 %v3497
    %v5359 = vpop.f32.mrf.mxu0
    %v5360 = vadd.f32 %v3786, %v5359
    %v5361 = vpop.f32.mrf.mxu0
    %v5362 = vadd.f32 %v3790, %v5361
    %v5363 = vpop.f32.mrf.mxu0
    %v5364 = vpop.f32.mrf.mxu0
    %5365 = vdwg.mxu0
    %5366 = vmatprep.subr.bf16.mxu0 %v4758
    %5367 = vmatpush1.bf16.msra.mxu0 %v4757
    %5368 = vmatprep.subr.bf16.mxu0 %v4750
    %5369 = vmatpush1.bf16.msra.mxu0 %v4749
    %5370 = vmatprep.subr.bf16.mxu0 %v4742
    %5371 = vmatpush1.bf16.msra.mxu0 %v4741
    %5372 = vmatprep.subr.bf16.mxu0 %v4734
    %5373 = vmatpush1.bf16.msra.mxu0 %v4733
    %5374 = vmatprep.subr.bf16.mxu0 %v4726
    %5375 = vmatpush1.bf16.msra.mxu0 %v4725
    %5376 = vmatprep.subr.bf16.mxu0 %v4718
    %5377 = vmatpush1.bf16.msra.mxu0 %v4717
    %5378 = vmatprep.subr.bf16.mxu0 %v4710
    %5379 = vmatpush1.bf16.msra.mxu0 %v4709
    %5380 = vmatprep.subr.bf16.mxu0 %v4702
    %5381 = vmatpush1.bf16.msra.mxu0 %v4701
    %5382 = vmatprep.subr.bf16.mxu0 %v4822
    %5383 = vmatpush2.bf16.msra.mxu0 %v4821
    %5384 = vmatprep.subr.bf16.mxu0 %v4814
    %5385 = vmatpush2.bf16.msra.mxu0 %v4813
    %5386 = vmatprep.subr.bf16.mxu0 %v4806
    %5387 = vmatpush2.bf16.msra.mxu0 %v4805
    %5388 = vmatprep.subr.bf16.mxu0 %v4798
    %5389 = vmatpush2.bf16.msra.mxu0 %v4797
    %5390 = vmatprep.subr.bf16.mxu0 %v4790
    %5391 = vmatpush2.bf16.msra.mxu0 %v4789
    %5392 = vmatprep.subr.bf16.mxu0 %v4782
    %5393 = vmatpush2.bf16.msra.mxu0 %v4781
    %5394 = vmatprep.subr.bf16.mxu0 %v4774
    %5395 = vmatpush2.bf16.msra.mxu0 %v4773
    %5396 = vmatprep.subr.bf16.mxu0 %v4766
    %5397 = vmatpush2.bf16.msra.mxu0 %v4765
    %5398 = vmatprep.mubr.bf16.mxu0 %v3500
    %5399 = vmatmul.mubr.bf16.gmra.mxu0 %v3499
    %v5400 = vpop.f32.mrf.mxu0
    %v5401 = vadd.f32 %v5360, %v5400
    %v5402 = vpop.f32.mrf.mxu0
    %v5403 = vadd.f32 %v5362, %v5402
    %v5404 = vpop.f32.mrf.mxu0
    %v5405 = vpop.f32.mrf.mxu0
    %5406 = vdwg.mxu0
    %v5407 = vmax.f32 %v5155, 0.0
    %v5408 = vmax.f32 %v5157, 0.0
    %v5409 = vmax.f32 %v5237, 0.0
    %v5410 = vmax.f32 %v5239, 0.0
    %v5411 = vmax.f32 %v5319, 0.0
    %v5412 = vmax.f32 %v5321, 0.0
    %v5413 = vmax.f32 %v5401, 0.0
    %v5414 = vmax.f32 %v5403, 0.0
    %v5415 = vpack.c.bf16 %v5407, %v5407
    %v5416 = vpack.c.bf16 %v5408, %v5408
    %v5417 = vpack.c.bf16 %v5409, %v5409
    %v5418 = vpack.c.bf16 %v5410, %v5410
    %v5419 = vpack.c.bf16 %v5411, %v5411
    %v5420 = vpack.c.bf16 %v5412, %v5412
    %v5421 = vpack.c.bf16 %v5413, %v5413
    %v5422 = vpack.c.bf16 %v5414, %v5414
    %v5423 = vld [vmem:[#allocation8] sm:$0xff]
    %v5424 = vld [vmem:[#allocation8 + $0x8] sm:$0xff]
    %v5425 = vld [vmem:[#allocation8 + $0x10] sm:$0xff]
    %v5426 = vld [vmem:[#allocation8 + $0x18] sm:$0xff]
    %v5427 = vld [vmem:[#allocation8 + $0x20] sm:$0xff]
    %v5428 = vld [vmem:[#allocation8 + $0x28] sm:$0xff]
    %v5429 = vld [vmem:[#allocation8 + $0x30] sm:$0xff]
    %v5430 = vld [vmem:[#allocation8 + $0x38] sm:$0xff]
    %v5431 = vld [vmem:[#allocation8 + $0x40] sm:$0xff]
    %v5432 = vld [vmem:[#allocation8 + $0x48] sm:$0xff]
    %v5433 = vld [vmem:[#allocation8 + $0x50] sm:$0xff]
    %v5434 = vld [vmem:[#allocation8 + $0x58] sm:$0xff]
    %v5435 = vld [vmem:[#allocation8 + $0x60] sm:$0xff]
    %v5436 = vld [vmem:[#allocation8 + $0x68] sm:$0xff]
    %v5437 = vld [vmem:[#allocation8 + $0x70] sm:$0xff]
    %v5438 = vld [vmem:[#allocation8 + $0x78] sm:$0xff]
    %v5439 = vld [vmem:[#allocation8 + $0x80] sm:$0xff]
    %v5440 = vld [vmem:[#allocation8 + $0x88] sm:$0xff]
    %v5441 = vld [vmem:[#allocation8 + $0x90] sm:$0xff]
    %v5442 = vld [vmem:[#allocation8 + $0x98] sm:$0xff]
    %v5443 = vld [vmem:[#allocation8 + $0xa0] sm:$0xff]
    %v5444 = vld [vmem:[#allocation8 + $0xa8] sm:$0xff]
    %v5445 = vld [vmem:[#allocation8 + $0xb0] sm:$0xff]
    %v5446 = vld [vmem:[#allocation8 + $0xb8] sm:$0xff]
    %v5447 = vld [vmem:[#allocation8 + $0xc0] sm:$0xff]
    %v5448 = vld [vmem:[#allocation8 + $0xc8] sm:$0xff]
    %v5449 = vld [vmem:[#allocation8 + $0xd0] sm:$0xff]
    %v5450 = vld [vmem:[#allocation8 + $0xd8] sm:$0xff]
    %v5451 = vld [vmem:[#allocation8 + $0xe0] sm:$0xff]
    %v5452 = vld [vmem:[#allocation8 + $0xe8] sm:$0xff]
    %v5453 = vld [vmem:[#allocation8 + $0xf0] sm:$0xff]
    %v5454 = vld [vmem:[#allocation8 + $0xf8] sm:$0xff]
    %v5455 = vld [vmem:[#allocation8 + $0x100] sm:$0xff]
    %v5456 = vld [vmem:[#allocation8 + $0x108] sm:$0xff]
    %v5457 = vld [vmem:[#allocation8 + $0x110] sm:$0xff]
    %v5458 = vld [vmem:[#allocation8 + $0x118] sm:$0xff]
    %v5459 = vld [vmem:[#allocation8 + $0x120] sm:$0xff]
    %v5460 = vld [vmem:[#allocation8 + $0x128] sm:$0xff]
    %v5461 = vld [vmem:[#allocation8 + $0x130] sm:$0xff]
    %v5462 = vld [vmem:[#allocation8 + $0x138] sm:$0xff]
    %v5463 = vld [vmem:[#allocation8 + $0x140] sm:$0xff]
    %v5464 = vld [vmem:[#allocation8 + $0x148] sm:$0xff]
    %v5465 = vld [vmem:[#allocation8 + $0x150] sm:$0xff]
    %v5466 = vld [vmem:[#allocation8 + $0x158] sm:$0xff]
    %v5467 = vld [vmem:[#allocation8 + $0x160] sm:$0xff]
    %v5468 = vld [vmem:[#allocation8 + $0x168] sm:$0xff]
    %v5469 = vld [vmem:[#allocation8 + $0x170] sm:$0xff]
    %v5470 = vld [vmem:[#allocation8 + $0x178] sm:$0xff]
    %v5471 = vld [vmem:[#allocation8 + $0x180] sm:$0xff]
    %v5472 = vld [vmem:[#allocation8 + $0x188] sm:$0xff]
    %v5473 = vld [vmem:[#allocation8 + $0x190] sm:$0xff]
    %v5474 = vld [vmem:[#allocation8 + $0x198] sm:$0xff]
    %v5475 = vld [vmem:[#allocation8 + $0x1a0] sm:$0xff]
    %v5476 = vld [vmem:[#allocation8 + $0x1a8] sm:$0xff]
    %v5477 = vld [vmem:[#allocation8 + $0x1b0] sm:$0xff]
    %v5478 = vld [vmem:[#allocation8 + $0x1b8] sm:$0xff]
    %v5479 = vld [vmem:[#allocation8 + $0x1c0] sm:$0xff]
    %v5480 = vld [vmem:[#allocation8 + $0x1c8] sm:$0xff]
    %v5481 = vld [vmem:[#allocation8 + $0x1d0] sm:$0xff]
    %v5482 = vld [vmem:[#allocation8 + $0x1d8] sm:$0xff]
    %v5483 = vld [vmem:[#allocation8 + $0x1e0] sm:$0xff]
    %v5484 = vld [vmem:[#allocation8 + $0x1e8] sm:$0xff]
    %v5485 = vld [vmem:[#allocation8 + $0x1f0] sm:$0xff]
    %v5486 = vld [vmem:[#allocation8 + $0x1f8] sm:$0xff]
    %v5487 = vld [vmem:[#allocation8 + $0x200] sm:$0xff]
    %v5488 = vld [vmem:[#allocation8 + $0x208] sm:$0xff]
    %v5489 = vld [vmem:[#allocation8 + $0x210] sm:$0xff]
    %v5490 = vld [vmem:[#allocation8 + $0x218] sm:$0xff]
    %v5491 = vld [vmem:[#allocation8 + $0x220] sm:$0xff]
    %v5492 = vld [vmem:[#allocation8 + $0x228] sm:$0xff]
    %v5493 = vld [vmem:[#allocation8 + $0x230] sm:$0xff]
    %v5494 = vld [vmem:[#allocation8 + $0x238] sm:$0xff]
    %v5495 = vld [vmem:[#allocation8 + $0x240] sm:$0xff]
    %v5496 = vld [vmem:[#allocation8 + $0x248] sm:$0xff]
    %v5497 = vld [vmem:[#allocation8 + $0x250] sm:$0xff]
    %v5498 = vld [vmem:[#allocation8 + $0x258] sm:$0xff]
    %v5499 = vld [vmem:[#allocation8 + $0x260] sm:$0xff]
    %v5500 = vld [vmem:[#allocation8 + $0x268] sm:$0xff]
    %v5501 = vld [vmem:[#allocation8 + $0x270] sm:$0xff]
    %v5502 = vld [vmem:[#allocation8 + $0x278] sm:$0xff]
    %v5503 = vld [vmem:[#allocation8 + $0x280] sm:$0xff]
    %v5504 = vld [vmem:[#allocation8 + $0x288] sm:$0xff]
    %v5505 = vld [vmem:[#allocation8 + $0x290] sm:$0xff]
    %v5506 = vld [vmem:[#allocation8 + $0x298] sm:$0xff]
    %v5507 = vld [vmem:[#allocation8 + $0x2a0] sm:$0xff]
    %v5508 = vld [vmem:[#allocation8 + $0x2a8] sm:$0xff]
    %v5509 = vld [vmem:[#allocation8 + $0x2b0] sm:$0xff]
    %v5510 = vld [vmem:[#allocation8 + $0x2b8] sm:$0xff]
    %v5511 = vld [vmem:[#allocation8 + $0x2c0] sm:$0xff]
    %v5512 = vld [vmem:[#allocation8 + $0x2c8] sm:$0xff]
    %v5513 = vld [vmem:[#allocation8 + $0x2d0] sm:$0xff]
    %v5514 = vld [vmem:[#allocation8 + $0x2d8] sm:$0xff]
    %v5515 = vld [vmem:[#allocation8 + $0x2e0] sm:$0xff]
    %v5516 = vld [vmem:[#allocation8 + $0x2e8] sm:$0xff]
    %v5517 = vld [vmem:[#allocation8 + $0x2f0] sm:$0xff]
    %v5518 = vld [vmem:[#allocation8 + $0x2f8] sm:$0xff]
    %v5519 = vld [vmem:[#allocation8 + $0x300] sm:$0xff]
    %v5520 = vld [vmem:[#allocation8 + $0x308] sm:$0xff]
    %v5521 = vld [vmem:[#allocation8 + $0x310] sm:$0xff]
    %v5522 = vld [vmem:[#allocation8 + $0x318] sm:$0xff]
    %v5523 = vld [vmem:[#allocation8 + $0x320] sm:$0xff]
    %v5524 = vld [vmem:[#allocation8 + $0x328] sm:$0xff]
    %v5525 = vld [vmem:[#allocation8 + $0x330] sm:$0xff]
    %v5526 = vld [vmem:[#allocation8 + $0x338] sm:$0xff]
    %v5527 = vld [vmem:[#allocation8 + $0x340] sm:$0xff]
    %v5528 = vld [vmem:[#allocation8 + $0x348] sm:$0xff]
    %v5529 = vld [vmem:[#allocation8 + $0x350] sm:$0xff]
    %v5530 = vld [vmem:[#allocation8 + $0x358] sm:$0xff]
    %v5531 = vld [vmem:[#allocation8 + $0x360] sm:$0xff]
    %v5532 = vld [vmem:[#allocation8 + $0x368] sm:$0xff]
    %v5533 = vld [vmem:[#allocation8 + $0x370] sm:$0xff]
    %v5534 = vld [vmem:[#allocation8 + $0x378] sm:$0xff]
    %v5535 = vld [vmem:[#allocation8 + $0x380] sm:$0xff]
    %v5536 = vld [vmem:[#allocation8 + $0x388] sm:$0xff]
    %v5537 = vld [vmem:[#allocation8 + $0x390] sm:$0xff]
    %v5538 = vld [vmem:[#allocation8 + $0x398] sm:$0xff]
    %v5539 = vld [vmem:[#allocation8 + $0x3a0] sm:$0xff]
    %v5540 = vld [vmem:[#allocation8 + $0x3a8] sm:$0xff]
    %v5541 = vld [vmem:[#allocation8 + $0x3b0] sm:$0xff]
    %v5542 = vld [vmem:[#allocation8 + $0x3b8] sm:$0xff]
    %v5543 = vld [vmem:[#allocation8 + $0x3c0] sm:$0xff]
    %v5544 = vld [vmem:[#allocation8 + $0x3c8] sm:$0xff]
    %v5545 = vld [vmem:[#allocation8 + $0x3d0] sm:$0xff]
    %v5546 = vld [vmem:[#allocation8 + $0x3d8] sm:$0xff]
    %v5547 = vld [vmem:[#allocation8 + $0x3e0] sm:$0xff]
    %v5548 = vld [vmem:[#allocation8 + $0x3e8] sm:$0xff]
    %v5549 = vld [vmem:[#allocation8 + $0x3f0] sm:$0xff]
    %v5550 = vld [vmem:[#allocation8 + $0x3f8] sm:$0xff]
    %v5551 = vld [vmem:[%s12] sm:$0x3]
    %v5553 = vlaneseq
    %v5554 = vshrl.u32 %v5553, 7
    %v5555 = vsub.s32 0, %v5554
    %v5556 = vrot.slane %v5551, %v5555
    %v5557 = vlaneseq
    %v5558 = vshrl.u32 %v5557, 7
    %v5559 = vsub.s32 1, %v5558
    %v5560 = vrot.slane %v5551, %v5559
    %v5691 = vunpack.c.l.b16 %v5423
    %v5692 = vunpack.c.h.b16 %v5423
    %v5693 = vunpack.c.l.b16 %v5424
    %v5694 = vunpack.c.h.b16 %v5424
    %v5695 = vunpack.c.l.b16 %v5425
    %v5696 = vunpack.c.h.b16 %v5425
    %v5697 = vunpack.c.l.b16 %v5426
    %v5698 = vunpack.c.h.b16 %v5426
    %v5699 = vunpack.c.l.b16 %v5427
    %v5700 = vunpack.c.h.b16 %v5427
    %v5701 = vunpack.c.l.b16 %v5428
    %v5702 = vunpack.c.h.b16 %v5428
    %v5703 = vunpack.c.l.b16 %v5429
    %v5704 = vunpack.c.h.b16 %v5429
    %v5705 = vunpack.c.l.b16 %v5430
    %v5706 = vunpack.c.h.b16 %v5430
    %v5707 = vunpack.c.l.b16 %v5431
    %v5708 = vunpack.c.h.b16 %v5431
    %v5709 = vunpack.c.l.b16 %v5432
    %v5710 = vunpack.c.h.b16 %v5432
    %v5711 = vunpack.c.l.b16 %v5433
    %v5712 = vunpack.c.h.b16 %v5433
    %v5713 = vunpack.c.l.b16 %v5434
    %v5714 = vunpack.c.h.b16 %v5434
    %v5715 = vunpack.c.l.b16 %v5435
    %v5716 = vunpack.c.h.b16 %v5435
    %v5717 = vunpack.c.l.b16 %v5436
    %v5718 = vunpack.c.h.b16 %v5436
    %v5719 = vunpack.c.l.b16 %v5437
    %v5720 = vunpack.c.h.b16 %v5437
    %v5721 = vunpack.c.l.b16 %v5438
    %v5722 = vunpack.c.h.b16 %v5438
    %v5723 = vunpack.c.l.b16 %v5439
    %v5724 = vunpack.c.h.b16 %v5439
    %v5725 = vunpack.c.l.b16 %v5440
    %v5726 = vunpack.c.h.b16 %v5440
    %v5727 = vunpack.c.l.b16 %v5441
    %v5728 = vunpack.c.h.b16 %v5441
    %v5729 = vunpack.c.l.b16 %v5442
    %v5730 = vunpack.c.h.b16 %v5442
    %v5731 = vunpack.c.l.b16 %v5443
    %v5732 = vunpack.c.h.b16 %v5443
    %v5733 = vunpack.c.l.b16 %v5444
    %v5734 = vunpack.c.h.b16 %v5444
    %v5735 = vunpack.c.l.b16 %v5445
    %v5736 = vunpack.c.h.b16 %v5445
    %v5737 = vunpack.c.l.b16 %v5446
    %v5738 = vunpack.c.h.b16 %v5446
    %v5739 = vunpack.c.l.b16 %v5447
    %v5740 = vunpack.c.h.b16 %v5447
    %v5741 = vunpack.c.l.b16 %v5448
    %v5742 = vunpack.c.h.b16 %v5448
    %v5743 = vunpack.c.l.b16 %v5449
    %v5744 = vunpack.c.h.b16 %v5449
    %v5745 = vunpack.c.l.b16 %v5450
    %v5746 = vunpack.c.h.b16 %v5450
    %v5747 = vunpack.c.l.b16 %v5451
    %v5748 = vunpack.c.h.b16 %v5451
    %v5749 = vunpack.c.l.b16 %v5452
    %v5750 = vunpack.c.h.b16 %v5452
    %v5751 = vunpack.c.l.b16 %v5453
    %v5752 = vunpack.c.h.b16 %v5453
    %v5753 = vunpack.c.l.b16 %v5454
    %v5754 = vunpack.c.h.b16 %v5454
    %v5755 = vunpack.c.l.b16 %v5455
    %v5756 = vunpack.c.h.b16 %v5455
    %v5757 = vunpack.c.l.b16 %v5456
    %v5758 = vunpack.c.h.b16 %v5456
    %v5759 = vunpack.c.l.b16 %v5457
    %v5760 = vunpack.c.h.b16 %v5457
    %v5761 = vunpack.c.l.b16 %v5458
    %v5762 = vunpack.c.h.b16 %v5458
    %v5763 = vunpack.c.l.b16 %v5459
    %v5764 = vunpack.c.h.b16 %v5459
    %v5765 = vunpack.c.l.b16 %v5460
    %v5766 = vunpack.c.h.b16 %v5460
    %v5767 = vunpack.c.l.b16 %v5461
    %v5768 = vunpack.c.h.b16 %v5461
    %v5769 = vunpack.c.l.b16 %v5462
    %v5770 = vunpack.c.h.b16 %v5462
    %v5771 = vunpack.c.l.b16 %v5463
    %v5772 = vunpack.c.h.b16 %v5463
    %v5773 = vunpack.c.l.b16 %v5464
    %v5774 = vunpack.c.h.b16 %v5464
    %v5775 = vunpack.c.l.b16 %v5465
    %v5776 = vunpack.c.h.b16 %v5465
    %v5777 = vunpack.c.l.b16 %v5466
    %v5778 = vunpack.c.h.b16 %v5466
    %v5779 = vunpack.c.l.b16 %v5467
    %v5780 = vunpack.c.h.b16 %v5467
    %v5781 = vunpack.c.l.b16 %v5468
    %v5782 = vunpack.c.h.b16 %v5468
    %v5783 = vunpack.c.l.b16 %v5469
    %v5784 = vunpack.c.h.b16 %v5469
    %v5785 = vunpack.c.l.b16 %v5470
    %v5786 = vunpack.c.h.b16 %v5470
    %v5787 = vunpack.c.l.b16 %v5471
    %v5788 = vunpack.c.h.b16 %v5471
    %v5789 = vunpack.c.l.b16 %v5472
    %v5790 = vunpack.c.h.b16 %v5472
    %v5791 = vunpack.c.l.b16 %v5473
    %v5792 = vunpack.c.h.b16 %v5473
    %v5793 = vunpack.c.l.b16 %v5474
    %v5794 = vunpack.c.h.b16 %v5474
    %v5795 = vunpack.c.l.b16 %v5475
    %v5796 = vunpack.c.h.b16 %v5475
    %v5797 = vunpack.c.l.b16 %v5476
    %v5798 = vunpack.c.h.b16 %v5476
    %v5799 = vunpack.c.l.b16 %v5477
    %v5800 = vunpack.c.h.b16 %v5477
    %v5801 = vunpack.c.l.b16 %v5478
    %v5802 = vunpack.c.h.b16 %v5478
    %v5803 = vunpack.c.l.b16 %v5479
    %v5804 = vunpack.c.h.b16 %v5479
    %v5805 = vunpack.c.l.b16 %v5480
    %v5806 = vunpack.c.h.b16 %v5480
    %v5807 = vunpack.c.l.b16 %v5481
    %v5808 = vunpack.c.h.b16 %v5481
    %v5809 = vunpack.c.l.b16 %v5482
    %v5810 = vunpack.c.h.b16 %v5482
    %v5811 = vunpack.c.l.b16 %v5483
    %v5812 = vunpack.c.h.b16 %v5483
    %v5813 = vunpack.c.l.b16 %v5484
    %v5814 = vunpack.c.h.b16 %v5484
    %v5815 = vunpack.c.l.b16 %v5485
    %v5816 = vunpack.c.h.b16 %v5485
    %v5817 = vunpack.c.l.b16 %v5486
    %v5818 = vunpack.c.h.b16 %v5486
    %v5819 = vunpack.c.l.b16 %v5487
    %v5820 = vunpack.c.h.b16 %v5487
    %v5821 = vunpack.c.l.b16 %v5488
    %v5822 = vunpack.c.h.b16 %v5488
    %v5823 = vunpack.c.l.b16 %v5489
    %v5824 = vunpack.c.h.b16 %v5489
    %v5825 = vunpack.c.l.b16 %v5490
    %v5826 = vunpack.c.h.b16 %v5490
    %v5827 = vunpack.c.l.b16 %v5491
    %v5828 = vunpack.c.h.b16 %v5491
    %v5829 = vunpack.c.l.b16 %v5492
    %v5830 = vunpack.c.h.b16 %v5492
    %v5831 = vunpack.c.l.b16 %v5493
    %v5832 = vunpack.c.h.b16 %v5493
    %v5833 = vunpack.c.l.b16 %v5494
    %v5834 = vunpack.c.h.b16 %v5494
    %v5835 = vunpack.c.l.b16 %v5495
    %v5836 = vunpack.c.h.b16 %v5495
    %v5837 = vunpack.c.l.b16 %v5496
    %v5838 = vunpack.c.h.b16 %v5496
    %v5839 = vunpack.c.l.b16 %v5497
    %v5840 = vunpack.c.h.b16 %v5497
    %v5841 = vunpack.c.l.b16 %v5498
    %v5842 = vunpack.c.h.b16 %v5498
    %v5843 = vunpack.c.l.b16 %v5499
    %v5844 = vunpack.c.h.b16 %v5499
    %v5845 = vunpack.c.l.b16 %v5500
    %v5846 = vunpack.c.h.b16 %v5500
    %v5847 = vunpack.c.l.b16 %v5501
    %v5848 = vunpack.c.h.b16 %v5501
    %v5849 = vunpack.c.l.b16 %v5502
    %v5850 = vunpack.c.h.b16 %v5502
    %v5851 = vunpack.c.l.b16 %v5503
    %v5852 = vunpack.c.h.b16 %v5503
    %v5853 = vunpack.c.l.b16 %v5504
    %v5854 = vunpack.c.h.b16 %v5504
    %v5855 = vunpack.c.l.b16 %v5505
    %v5856 = vunpack.c.h.b16 %v5505
    %v5857 = vunpack.c.l.b16 %v5506
    %v5858 = vunpack.c.h.b16 %v5506
    %v5859 = vunpack.c.l.b16 %v5507
    %v5860 = vunpack.c.h.b16 %v5507
    %v5861 = vunpack.c.l.b16 %v5508
    %v5862 = vunpack.c.h.b16 %v5508
    %v5863 = vunpack.c.l.b16 %v5509
    %v5864 = vunpack.c.h.b16 %v5509
    %v5865 = vunpack.c.l.b16 %v5510
    %v5866 = vunpack.c.h.b16 %v5510
    %v5867 = vunpack.c.l.b16 %v5511
    %v5868 = vunpack.c.h.b16 %v5511
    %v5869 = vunpack.c.l.b16 %v5512
    %v5870 = vunpack.c.h.b16 %v5512
    %v5871 = vunpack.c.l.b16 %v5513
    %v5872 = vunpack.c.h.b16 %v5513
    %v5873 = vunpack.c.l.b16 %v5514
    %v5874 = vunpack.c.h.b16 %v5514
    %v5875 = vunpack.c.l.b16 %v5515
    %v5876 = vunpack.c.h.b16 %v5515
    %v5877 = vunpack.c.l.b16 %v5516
    %v5878 = vunpack.c.h.b16 %v5516
    %v5879 = vunpack.c.l.b16 %v5517
    %v5880 = vunpack.c.h.b16 %v5517
    %v5881 = vunpack.c.l.b16 %v5518
    %v5882 = vunpack.c.h.b16 %v5518
    %v5883 = vunpack.c.l.b16 %v5519
    %v5884 = vunpack.c.h.b16 %v5519
    %v5885 = vunpack.c.l.b16 %v5520
    %v5886 = vunpack.c.h.b16 %v5520
    %v5887 = vunpack.c.l.b16 %v5521
    %v5888 = vunpack.c.h.b16 %v5521
    %v5889 = vunpack.c.l.b16 %v5522
    %v5890 = vunpack.c.h.b16 %v5522
    %v5891 = vunpack.c.l.b16 %v5523
    %v5892 = vunpack.c.h.b16 %v5523
    %v5893 = vunpack.c.l.b16 %v5524
    %v5894 = vunpack.c.h.b16 %v5524
    %v5895 = vunpack.c.l.b16 %v5525
    %v5896 = vunpack.c.h.b16 %v5525
    %v5897 = vunpack.c.l.b16 %v5526
    %v5898 = vunpack.c.h.b16 %v5526
    %v5899 = vunpack.c.l.b16 %v5527
    %v5900 = vunpack.c.h.b16 %v5527
    %v5901 = vunpack.c.l.b16 %v5528
    %v5902 = vunpack.c.h.b16 %v5528
    %v5903 = vunpack.c.l.b16 %v5529
    %v5904 = vunpack.c.h.b16 %v5529
    %v5905 = vunpack.c.l.b16 %v5530
    %v5906 = vunpack.c.h.b16 %v5530
    %v5907 = vunpack.c.l.b16 %v5531
    %v5908 = vunpack.c.h.b16 %v5531
    %v5909 = vunpack.c.l.b16 %v5532
    %v5910 = vunpack.c.h.b16 %v5532
    %v5911 = vunpack.c.l.b16 %v5533
    %v5912 = vunpack.c.h.b16 %v5533
    %v5913 = vunpack.c.l.b16 %v5534
    %v5914 = vunpack.c.h.b16 %v5534
    %v5915 = vunpack.c.l.b16 %v5535
    %v5916 = vunpack.c.h.b16 %v5535
    %v5917 = vunpack.c.l.b16 %v5536
    %v5918 = vunpack.c.h.b16 %v5536
    %v5919 = vunpack.c.l.b16 %v5537
    %v5920 = vunpack.c.h.b16 %v5537
    %v5921 = vunpack.c.l.b16 %v5538
    %v5922 = vunpack.c.h.b16 %v5538
    %v5923 = vunpack.c.l.b16 %v5539
    %v5924 = vunpack.c.h.b16 %v5539
    %v5925 = vunpack.c.l.b16 %v5540
    %v5926 = vunpack.c.h.b16 %v5540
    %v5927 = vunpack.c.l.b16 %v5541
    %v5928 = vunpack.c.h.b16 %v5541
    %v5929 = vunpack.c.l.b16 %v5542
    %v5930 = vunpack.c.h.b16 %v5542
    %v5931 = vunpack.c.l.b16 %v5543
    %v5932 = vunpack.c.h.b16 %v5543
    %v5933 = vunpack.c.l.b16 %v5544
    %v5934 = vunpack.c.h.b16 %v5544
    %v5935 = vunpack.c.l.b16 %v5545
    %v5936 = vunpack.c.h.b16 %v5545
    %v5937 = vunpack.c.l.b16 %v5546
    %v5938 = vunpack.c.h.b16 %v5546
    %v5939 = vunpack.c.l.b16 %v5547
    %v5940 = vunpack.c.h.b16 %v5547
    %v5941 = vunpack.c.l.b16 %v5548
    %v5942 = vunpack.c.h.b16 %v5548
    %v5943 = vunpack.c.l.b16 %v5549
    %v5944 = vunpack.c.h.b16 %v5549
    %v5945 = vunpack.c.l.b16 %v5550
    %v5946 = vunpack.c.h.b16 %v5550
    %v5947 = vpack.c.b16 %v5693, %v5691
    %v5948 = vpack.c.b16 %v5694, %v5692
    %v5949 = vpack.c.b16 %v5697, %v5695
    %v5950 = vpack.c.b16 %v5698, %v5696
    %v5951 = vpack.c.b16 %v5701, %v5699
    %v5952 = vpack.c.b16 %v5702, %v5700
    %v5953 = vpack.c.b16 %v5705, %v5703
    %v5954 = vpack.c.b16 %v5706, %v5704
    %v5955 = vpack.c.b16 %v5709, %v5707
    %v5956 = vpack.c.b16 %v5710, %v5708
    %v5957 = vpack.c.b16 %v5713, %v5711
    %v5958 = vpack.c.b16 %v5714, %v5712
    %v5959 = vpack.c.b16 %v5717, %v5715
    %v5960 = vpack.c.b16 %v5718, %v5716
    %v5961 = vpack.c.b16 %v5721, %v5719
    %v5962 = vpack.c.b16 %v5722, %v5720
    %v5963 = vpack.c.b16 %v5725, %v5723
    %v5964 = vpack.c.b16 %v5726, %v5724
    %v5965 = vpack.c.b16 %v5729, %v5727
    %v5966 = vpack.c.b16 %v5730, %v5728
    %v5967 = vpack.c.b16 %v5733, %v5731
    %v5968 = vpack.c.b16 %v5734, %v5732
    %v5969 = vpack.c.b16 %v5737, %v5735
    %v5970 = vpack.c.b16 %v5738, %v5736
    %v5971 = vpack.c.b16 %v5741, %v5739
    %v5972 = vpack.c.b16 %v5742, %v5740
    %v5973 = vpack.c.b16 %v5745, %v5743
    %v5974 = vpack.c.b16 %v5746, %v5744
    %v5975 = vpack.c.b16 %v5749, %v5747
    %v5976 = vpack.c.b16 %v5750, %v5748
    %v5977 = vpack.c.b16 %v5753, %v5751
    %v5978 = vpack.c.b16 %v5754, %v5752
    %v5979 = vpack.c.b16 %v5757, %v5755
    %v5980 = vpack.c.b16 %v5758, %v5756
    %v5981 = vpack.c.b16 %v5761, %v5759
    %v5982 = vpack.c.b16 %v5762, %v5760
    %v5983 = vpack.c.b16 %v5765, %v5763
    %v5984 = vpack.c.b16 %v5766, %v5764
    %v5985 = vpack.c.b16 %v5769, %v5767
    %v5986 = vpack.c.b16 %v5770, %v5768
    %v5987 = vpack.c.b16 %v5773, %v5771
    %v5988 = vpack.c.b16 %v5774, %v5772
    %v5989 = vpack.c.b16 %v5777, %v5775
    %v5990 = vpack.c.b16 %v5778, %v5776
    %v5991 = vpack.c.b16 %v5781, %v5779
    %v5992 = vpack.c.b16 %v5782, %v5780
    %v5993 = vpack.c.b16 %v5785, %v5783
    %v5994 = vpack.c.b16 %v5786, %v5784
    %v5995 = vpack.c.b16 %v5789, %v5787
    %v5996 = vpack.c.b16 %v5790, %v5788
    %v5997 = vpack.c.b16 %v5793, %v5791
    %v5998 = vpack.c.b16 %v5794, %v5792
    %v5999 = vpack.c.b16 %v5797, %v5795
    %v6000 = vpack.c.b16 %v5798, %v5796
    %v6001 = vpack.c.b16 %v5801, %v5799
    %v6002 = vpack.c.b16 %v5802, %v5800
    %v6003 = vpack.c.b16 %v5805, %v5803
    %v6004 = vpack.c.b16 %v5806, %v5804
    %v6005 = vpack.c.b16 %v5809, %v5807
    %v6006 = vpack.c.b16 %v5810, %v5808
    %v6007 = vpack.c.b16 %v5813, %v5811
    %v6008 = vpack.c.b16 %v5814, %v5812
    %v6009 = vpack.c.b16 %v5817, %v5815
    %v6010 = vpack.c.b16 %v5818, %v5816
    %v6011 = vpack.c.b16 %v5821, %v5819
    %v6012 = vpack.c.b16 %v5822, %v5820
    %v6013 = vpack.c.b16 %v5825, %v5823
    %v6014 = vpack.c.b16 %v5826, %v5824
    %v6015 = vpack.c.b16 %v5829, %v5827
    %v6016 = vpack.c.b16 %v5830, %v5828
    %v6017 = vpack.c.b16 %v5833, %v5831
    %v6018 = vpack.c.b16 %v5834, %v5832
    %v6019 = vpack.c.b16 %v5837, %v5835
    %v6020 = vpack.c.b16 %v5838, %v5836
    %v6021 = vpack.c.b16 %v5841, %v5839
    %v6022 = vpack.c.b16 %v5842, %v5840
    %v6023 = vpack.c.b16 %v5845, %v5843
    %v6024 = vpack.c.b16 %v5846, %v5844
    %v6025 = vpack.c.b16 %v5849, %v5847
    %v6026 = vpack.c.b16 %v5850, %v5848
    %v6027 = vpack.c.b16 %v5853, %v5851
    %v6028 = vpack.c.b16 %v5854, %v5852
    %v6029 = vpack.c.b16 %v5857, %v5855
    %v6030 = vpack.c.b16 %v5858, %v5856
    %v6031 = vpack.c.b16 %v5861, %v5859
    %v6032 = vpack.c.b16 %v5862, %v5860
    %v6033 = vpack.c.b16 %v5865, %v5863
    %v6034 = vpack.c.b16 %v5866, %v5864
    %v6035 = vpack.c.b16 %v5869, %v5867
    %v6036 = vpack.c.b16 %v5870, %v5868
    %v6037 = vpack.c.b16 %v5873, %v5871
    %v6038 = vpack.c.b16 %v5874, %v5872
    %v6039 = vpack.c.b16 %v5877, %v5875
    %v6040 = vpack.c.b16 %v5878, %v5876
    %v6041 = vpack.c.b16 %v5881, %v5879
    %v6042 = vpack.c.b16 %v5882, %v5880
    %v6043 = vpack.c.b16 %v5885, %v5883
    %v6044 = vpack.c.b16 %v5886, %v5884
    %v6045 = vpack.c.b16 %v5889, %v5887
    %v6046 = vpack.c.b16 %v5890, %v5888
    %v6047 = vpack.c.b16 %v5893, %v5891
    %v6048 = vpack.c.b16 %v5894, %v5892
    %v6049 = vpack.c.b16 %v5897, %v5895
    %v6050 = vpack.c.b16 %v5898, %v5896
    %v6051 = vpack.c.b16 %v5901, %v5899
    %v6052 = vpack.c.b16 %v5902, %v5900
    %v6053 = vpack.c.b16 %v5905, %v5903
    %v6054 = vpack.c.b16 %v5906, %v5904
    %v6055 = vpack.c.b16 %v5909, %v5907
    %v6056 = vpack.c.b16 %v5910, %v5908
    %v6057 = vpack.c.b16 %v5913, %v5911
    %v6058 = vpack.c.b16 %v5914, %v5912
    %v6059 = vpack.c.b16 %v5917, %v5915
    %v6060 = vpack.c.b16 %v5918, %v5916
    %v6061 = vpack.c.b16 %v5921, %v5919
    %v6062 = vpack.c.b16 %v5922, %v5920
    %v6063 = vpack.c.b16 %v5925, %v5923
    %v6064 = vpack.c.b16 %v5926, %v5924
    %v6065 = vpack.c.b16 %v5929, %v5927
    %v6066 = vpack.c.b16 %v5930, %v5928
    %v6067 = vpack.c.b16 %v5933, %v5931
    %v6068 = vpack.c.b16 %v5934, %v5932
    %v6069 = vpack.c.b16 %v5937, %v5935
    %v6070 = vpack.c.b16 %v5938, %v5936
    %v6071 = vpack.c.b16 %v5941, %v5939
    %v6072 = vpack.c.b16 %v5942, %v5940
    %v6073 = vpack.c.b16 %v5945, %v5943
    %v6074 = vpack.c.b16 %v5946, %v5944
    %6203 = vmatprep.subr.bf16.mxu0 %v5962
    %6204 = vmatpush1.bf16.msra.mxu0 %v5961
    %6205 = vmatprep.subr.bf16.mxu0 %v5960
    %6206 = vmatpush1.bf16.msra.mxu0 %v5959
    %6207 = vmatprep.subr.bf16.mxu0 %v5958
    %6208 = vmatpush1.bf16.msra.mxu0 %v5957
    %6209 = vmatprep.subr.bf16.mxu0 %v5956
    %6210 = vmatpush1.bf16.msra.mxu0 %v5955
    %6211 = vmatprep.subr.bf16.mxu0 %v5954
    %6212 = vmatpush1.bf16.msra.mxu0 %v5953
    %6213 = vmatprep.subr.bf16.mxu0 %v5952
    %6214 = vmatpush1.bf16.msra.mxu0 %v5951
    %6215 = vmatprep.subr.bf16.mxu0 %v5950
    %6216 = vmatpush1.bf16.msra.mxu0 %v5949
    %6217 = vmatprep.subr.bf16.mxu0 %v5948
    %6218 = vmatpush1.bf16.msra.mxu0 %v5947
    %6219 = vmatprep.subr.bf16.mxu0 %v5978
    %6220 = vmatpush2.bf16.msra.mxu0 %v5977
    %6221 = vmatprep.subr.bf16.mxu0 %v5976
    %6222 = vmatpush2.bf16.msra.mxu0 %v5975
    %6223 = vmatprep.subr.bf16.mxu0 %v5974
    %6224 = vmatpush2.bf16.msra.mxu0 %v5973
    %6225 = vmatprep.subr.bf16.mxu0 %v5972
    %6226 = vmatpush2.bf16.msra.mxu0 %v5971
    %6227 = vmatprep.subr.bf16.mxu0 %v5970
    %6228 = vmatpush2.bf16.msra.mxu0 %v5969
    %6229 = vmatprep.subr.bf16.mxu0 %v5968
    %6230 = vmatpush2.bf16.msra.mxu0 %v5967
    %6231 = vmatprep.subr.bf16.mxu0 %v5966
    %6232 = vmatpush2.bf16.msra.mxu0 %v5965
    %6233 = vmatprep.subr.bf16.mxu0 %v5964
    %6234 = vmatpush2.bf16.msra.mxu0 %v5963
    %6235 = vmatprep.mubr.bf16.mxu0 %v5416
    %6236 = vmatmul.mubr.bf16.gmra.mxu0 %v5415
    %v6237 = vpop.f32.mrf.mxu0
    %v6238 = vadd.f32 %v5556, %v6237
    %v6239 = vpop.f32.mrf.mxu0
    %v6240 = vadd.f32 %v5560, %v6239
    %v6241 = vpop.f32.mrf.mxu0
    %v6242 = vpop.f32.mrf.mxu0
    %6243 = vdwg.mxu0
    %6244 = vmatprep.subr.bf16.mxu0 %v5994
    %6245 = vmatpush1.bf16.msra.mxu0 %v5993
    %6246 = vmatprep.subr.bf16.mxu0 %v5992
    %6247 = vmatpush1.bf16.msra.mxu0 %v5991
    %6248 = vmatprep.subr.bf16.mxu0 %v5990
    %6249 = vmatpush1.bf16.msra.mxu0 %v5989
    %6250 = vmatprep.subr.bf16.mxu0 %v5988
    %6251 = vmatpush1.bf16.msra.mxu0 %v5987
    %6252 = vmatprep.subr.bf16.mxu0 %v5986
    %6253 = vmatpush1.bf16.msra.mxu0 %v5985
    %6254 = vmatprep.subr.bf16.mxu0 %v5984
    %6255 = vmatpush1.bf16.msra.mxu0 %v5983
    %6256 = vmatprep.subr.bf16.mxu0 %v5982
    %6257 = vmatpush1.bf16.msra.mxu0 %v5981
    %6258 = vmatprep.subr.bf16.mxu0 %v5980
    %6259 = vmatpush1.bf16.msra.mxu0 %v5979
    %6260 = vmatprep.subr.bf16.mxu0 %v6010
    %6261 = vmatpush2.bf16.msra.mxu0 %v6009
    %6262 = vmatprep.subr.bf16.mxu0 %v6008
    %6263 = vmatpush2.bf16.msra.mxu0 %v6007
    %6264 = vmatprep.subr.bf16.mxu0 %v6006
    %6265 = vmatpush2.bf16.msra.mxu0 %v6005
    %6266 = vmatprep.subr.bf16.mxu0 %v6004
    %6267 = vmatpush2.bf16.msra.mxu0 %v6003
    %6268 = vmatprep.subr.bf16.mxu0 %v6002
    %6269 = vmatpush2.bf16.msra.mxu0 %v6001
    %6270 = vmatprep.subr.bf16.mxu0 %v6000
    %6271 = vmatpush2.bf16.msra.mxu0 %v5999
    %6272 = vmatprep.subr.bf16.mxu0 %v5998
    %6273 = vmatpush2.bf16.msra.mxu0 %v5997
    %6274 = vmatprep.subr.bf16.mxu0 %v5996
    %6275 = vmatpush2.bf16.msra.mxu0 %v5995
    %6276 = vmatprep.mubr.bf16.mxu0 %v5418
    %6277 = vmatmul.mubr.bf16.gmra.mxu0 %v5417
    %v6278 = vpop.f32.mrf.mxu0
    %v6279 = vadd.f32 %v6238, %v6278
    %v6280 = vpop.f32.mrf.mxu0
    %v6281 = vadd.f32 %v6240, %v6280
    %v6282 = vpop.f32.mrf.mxu0
    %v6283 = vpop.f32.mrf.mxu0
    %6284 = vdwg.mxu0
    %6285 = vmatprep.subr.bf16.mxu0 %v6026
    %6286 = vmatpush1.bf16.msra.mxu0 %v6025
    %6287 = vmatprep.subr.bf16.mxu0 %v6024
    %6288 = vmatpush1.bf16.msra.mxu0 %v6023
    %6289 = vmatprep.subr.bf16.mxu0 %v6022
    %6290 = vmatpush1.bf16.msra.mxu0 %v6021
    %6291 = vmatprep.subr.bf16.mxu0 %v6020
    %6292 = vmatpush1.bf16.msra.mxu0 %v6019
    %6293 = vmatprep.subr.bf16.mxu0 %v6018
    %6294 = vmatpush1.bf16.msra.mxu0 %v6017
    %6295 = vmatprep.subr.bf16.mxu0 %v6016
    %6296 = vmatpush1.bf16.msra.mxu0 %v6015
    %6297 = vmatprep.subr.bf16.mxu0 %v6014
    %6298 = vmatpush1.bf16.msra.mxu0 %v6013
    %6299 = vmatprep.subr.bf16.mxu0 %v6012
    %6300 = vmatpush1.bf16.msra.mxu0 %v6011
    %6301 = vmatprep.subr.bf16.mxu0 %v6042
    %6302 = vmatpush2.bf16.msra.mxu0 %v6041
    %6303 = vmatprep.subr.bf16.mxu0 %v6040
    %6304 = vmatpush2.bf16.msra.mxu0 %v6039
    %6305 = vmatprep.subr.bf16.mxu0 %v6038
    %6306 = vmatpush2.bf16.msra.mxu0 %v6037
    %6307 = vmatprep.subr.bf16.mxu0 %v6036
    %6308 = vmatpush2.bf16.msra.mxu0 %v6035
    %6309 = vmatprep.subr.bf16.mxu0 %v6034
    %6310 = vmatpush2.bf16.msra.mxu0 %v6033
    %6311 = vmatprep.subr.bf16.mxu0 %v6032
    %6312 = vmatpush2.bf16.msra.mxu0 %v6031
    %6313 = vmatprep.subr.bf16.mxu0 %v6030
    %6314 = vmatpush2.bf16.msra.mxu0 %v6029
    %6315 = vmatprep.subr.bf16.mxu0 %v6028
    %6316 = vmatpush2.bf16.msra.mxu0 %v6027
    %6317 = vmatprep.mubr.bf16.mxu0 %v5420
    %6318 = vmatmul.mubr.bf16.gmra.mxu0 %v5419
    %v6319 = vpop.f32.mrf.mxu0
    %v6320 = vadd.f32 %v6279, %v6319
    %v6321 = vpop.f32.mrf.mxu0
    %v6322 = vadd.f32 %v6281, %v6321
    %v6323 = vpop.f32.mrf.mxu0
    %v6324 = vpop.f32.mrf.mxu0
    %6325 = vdwg.mxu0
    %6326 = vmatprep.subr.bf16.mxu0 %v6058
    %6327 = vmatpush1.bf16.msra.mxu0 %v6057
    %6328 = vmatprep.subr.bf16.mxu0 %v6056
    %6329 = vmatpush1.bf16.msra.mxu0 %v6055
    %6330 = vmatprep.subr.bf16.mxu0 %v6054
    %6331 = vmatpush1.bf16.msra.mxu0 %v6053
    %6332 = vmatprep.subr.bf16.mxu0 %v6052
    %6333 = vmatpush1.bf16.msra.mxu0 %v6051
    %6334 = vmatprep.subr.bf16.mxu0 %v6050
    %6335 = vmatpush1.bf16.msra.mxu0 %v6049
    %6336 = vmatprep.subr.bf16.mxu0 %v6048
    %6337 = vmatpush1.bf16.msra.mxu0 %v6047
    %6338 = vmatprep.subr.bf16.mxu0 %v6046
    %6339 = vmatpush1.bf16.msra.mxu0 %v6045
    %6340 = vmatprep.subr.bf16.mxu0 %v6044
    %6341 = vmatpush1.bf16.msra.mxu0 %v6043
    %6342 = vmatprep.subr.bf16.mxu0 %v6074
    %6343 = vmatpush2.bf16.msra.mxu0 %v6073
    %6344 = vmatprep.subr.bf16.mxu0 %v6072
    %6345 = vmatpush2.bf16.msra.mxu0 %v6071
    %6346 = vmatprep.subr.bf16.mxu0 %v6070
    %6347 = vmatpush2.bf16.msra.mxu0 %v6069
    %6348 = vmatprep.subr.bf16.mxu0 %v6068
    %6349 = vmatpush2.bf16.msra.mxu0 %v6067
    %6350 = vmatprep.subr.bf16.mxu0 %v6066
    %6351 = vmatpush2.bf16.msra.mxu0 %v6065
    %6352 = vmatprep.subr.bf16.mxu0 %v6064
    %6353 = vmatpush2.bf16.msra.mxu0 %v6063
    %6354 = vmatprep.subr.bf16.mxu0 %v6062
    %6355 = vmatpush2.bf16.msra.mxu0 %v6061
    %6356 = vmatprep.subr.bf16.mxu0 %v6060
    %6357 = vmatpush2.bf16.msra.mxu0 %v6059
    %6358 = vmatprep.mubr.bf16.mxu0 %v5422
    %6359 = vmatmul.mubr.bf16.gmra.mxu0 %v5421
    %v6360 = vpop.f32.mrf.mxu0
    %v6361 = vadd.f32 %v6320, %v6360
    %v6362 = vpop.f32.mrf.mxu0
    %v6363 = vadd.f32 %v6322, %v6362
    %v6364 = vpop.f32.mrf.mxu0
    %v6365 = vpop.f32.mrf.mxu0
    %6366 = vdwg.mxu0
    %6367 = vst [vmem:[#allocation11] sm:$0xff] %v6361
    %6368 = vst [vmem:[#allocation11 + $0x8] sm:$0xff] %v6363
    // Predicated region
    $region70: #{autoencoder_forward.1} parent=1 // pred_check
      _
    $region71: #{autoencoder_forward.1} parent=1 // pred_check_branch
      %6370 = sbr.rel (0) target = $region73
    $region72: #{autoencoder_forward.1} parent=1 // pred_region
      %s6372 = ssub.s32 128, 128
      %6373 = vsyncadd [#allocation4], %s6372
      %s6375 = sshll.u32 [#allocation10], 4
      %s6376 = int_to_ptr.vmem [resolvable:$true] %s6375
      %6378 = dma.vmem_to_hbm [thread:$0]  %s6376, 128, %s13, [#allocation4]
    $region73: #{autoencoder_forward.1} parent=1 // pred_fallthru
      _
    // Predicated region
    $region74: #{autoencoder_forward.1} parent=1 // pred_check
      _
    $region75: #{autoencoder_forward.1} parent=1 // pred_check_branch
      %6380 = sbr.rel (0) target = $region77
    $region76: #{autoencoder_forward.1} parent=1 // pred_region
      %s6382 = ssub.s32 256, 256
      %6383 = vsyncadd [#allocation12], %s6382
      %s6385 = sshll.u32 [#allocation11], 4
      %s6386 = int_to_ptr.vmem [resolvable:$true] %s6385
      %6388 = dma.vmem_to_hbm [thread:$0]  %s6386, 256, %s14, [#allocation12]
    $region77: #{autoencoder_forward.1} parent=1 // pred_fallthru
      _
    // Predicated region
    $region78: #{autoencoder_forward.1} parent=1 // pred_check
      _
    $region79: #{autoencoder_forward.1} parent=1 // pred_check_branch
      %6390 = sbr.rel (0) target = $region81
    $region80: #{autoencoder_forward.1} parent=1 // pred_region
      %6391 = dma.done [#allocation4], 128
    $region81: #{autoencoder_forward.1} parent=1 // pred_fallthru
      _
    // Predicated region
    $region82: #{autoencoder_forward.1} parent=1 // pred_check
      _
    $region83: #{autoencoder_forward.1} parent=1 // pred_check_branch
      %6393 = sbr.rel (0) target = $region85
    $region84: #{autoencoder_forward.1} parent=1 // pred_region
      %6394 = dma.done [#allocation12], 256
    $region85: #{autoencoder_forward.1} parent=1 // pred_fallthru
      _
    %6395 = vsyncpa [#allocation3], 1
    %6396 = vsyncpa [#allocation6], 1
    %6397 = vsyncpa [#allocation9], 1
    %6398 = vsyncpa [#allocation4], 1
    %6399 = vsyncpa [#allocation12], 1

</llo_original>
